<compile_context>
chip_gen: v7x
topology: tpu7x:2x2x1
jax: 0.10.0
libtpu: 0.0.40
codegen_flags: <defaults>
</compile_context>

<pallas_src>
import functools
import math

import jax
import jax.numpy as jnp
from jax.experimental import pallas as pl
from jax.experimental.pallas import tpu as pltpu


_LABEL_WKEYS = ("wq", "bq", "wo", "bo", "ln1g", "ln1b",
                "wf1", "bf1", "wf2", "bf2", "ln2g", "ln2b")
_ENC_WKEYS = ("wq", "bq", "wkv", "bkv", "wo", "bo", "ln1g", "ln1b",
              "wf1", "bf1", "wf2", "bf2", "ln2g", "ln2b")

_MOSAIC_PARAMS = pltpu.CompilerParams(
    dimension_semantics=("parallel", "arbitrary"),
)


def _row_tile(m, max_tile=512):
    """Largest multiple-of-8 divisor of m <= max_tile, preferring >=2 blocks."""
    if m % 8 != 0:
        return m
    best = m
    t = 8
    while t <= min(m // 2, max_tile):
        if m % t == 0:
            best = t
        t += 8
    return best


def _stacked_specs(stack, keys):
    # All stacked per-layer weights are 3D: [n_layers, d0, d1].
    return [pl.BlockSpec((1,) + stack[k].shape[1:], lambda i, l: (l, 0, 0))
            for k in keys]


def _seg_matrix(heads, lk):
    """[H*Lk, H*Lk] block-diagonal ones: per-head softmax denominator via matmul."""
    a = jnp.arange(heads * lk) // lk
    return (a[:, None] == a[None, :]).astype(jnp.float32)


def _head_block_mask(heads, lk, embed):
    """[H*Lk, E] 0/1 mask selecting head h's channel block on rows h*Lk..(h+1)*Lk."""
    dh = embed // heads
    r = (jnp.arange(heads * lk) // lk)[:, None]
    c = (jnp.arange(embed) // dh)[None, :]
    return (r == c).astype(jnp.float32)


def _label_kv_stacks(label_table, wkv, bkv, heads):
    """Precompute per-layer block-diagonal K/V tables from the label embeddings.

    label_table: [L, E] f32, wkv: [nl, E, 2E] bf16, bkv: [nl, 1, 2E] f32
    returns K2, V2: [nl, H*L, E] bf16 (block-diagonal per head).
    """
    nl, E, _ = wkv.shape
    L = label_table.shape[0]
    kv = jnp.einsum("le,ned->nld", label_table, wkv.astype(jnp.float32)) + bkv
    k, v = kv[..., :E], kv[..., E:]
    bm = _head_block_mask(heads, L, E)                      # [H*L, E]
    k_rep = jnp.tile(k, (1, heads, 1))                      # [nl, H*L, E]
    v_rep = jnp.tile(v, (1, heads, 1))
    return (k_rep * bm).astype(jnp.bfloat16), (v_rep * bm).astype(jnp.bfloat16)


# ----------------------------------------------------------------------------
# In-kernel helpers
# ----------------------------------------------------------------------------
def _layernorm(x, g, b, eps):
    mu = jnp.mean(x, axis=-1, keepdims=True)
    xc = x - mu
    var = jnp.mean(xc * xc, axis=-1, keepdims=True)
    return xc * jax.lax.rsqrt(var + eps) * g + b


def _transformer_layer(x, k2, v2, addm, seg, w, *, heads, eps):
    """Post-norm transformer layer; heads folded into block-diagonal K/V.

    x   : [M, E] f32 queries (residual stream)
    k2  : [H*Lk, E] bf16 block-diagonal keys (head h block on rows h*Lk..)
    v2  : [H*Lk, E] bf16 block-diagonal values
    addm: [1, H*Lk] f32 additive key mask (or None)
    seg : [H*Lk, H*Lk] f32 block-diagonal ones (per-head softmax denominator)
    """
    E = x.shape[-1]
    scale = 1.0 / math.sqrt(E // heads)

    q = jnp.dot(x.astype(jnp.bfloat16), w["wq"],
                preferred_element_type=jnp.float32) + w["bq"]
    # All heads' scores in ONE dot: [M, E] x [H*Lk, E]^T -> [M, H*Lk]
    s = jax.lax.dot_general(q.astype(jnp.bfloat16), k2,
                            (((1,), (1,)), ((), ())),
                            preferred_element_type=jnp.float32) * scale
    if addm is not None:
        s = s + addm
    # Per-head softmax in the concatenated layout: row-global max for stability,
    # per-head denominator via the block-diagonal `seg` matrix (kept f32).
    p = jnp.exp(s - jnp.max(s, axis=-1, keepdims=True))
    denom = jnp.dot(p, seg, preferred_element_type=jnp.float32)
    p = p * pl.reciprocal(denom, approx=True)
    # Attention output arrives pre-concatenated across heads.
    attn = jnp.dot(p.astype(jnp.bfloat16), v2, preferred_element_type=jnp.float32)

    proj = jnp.dot(attn.astype(jnp.bfloat16), w["wo"],
                   preferred_element_type=jnp.float32) + w["bo"]
    x1 = _layernorm(proj + x, w["ln1g"], w["ln1b"], eps)

    h = jnp.maximum(jnp.dot(x1.astype(jnp.bfloat16), w["wf1"],
                            preferred_element_type=jnp.float32) + w["bf1"], 0.0)
    y = jnp.dot(h.astype(jnp.bfloat16), w["wf2"],
                preferred_element_type=jnp.float32) + w["bf2"]
    return _layernorm(y + x1, w["ln2g"], w["ln2b"], eps)


def _load_layer_weights(refs):
    return {name: ref[0] for name, ref in refs.items()}


# ----------------------------------------------------------------------------
# Fused kernels
# ----------------------------------------------------------------------------
def _word_kernel(hid_ref, pos_ref, seg_ref,
                 fc1w_ref, fc1b_ref, fc2w_ref, fc2b_ref,
                 k2_ref, v2_ref,
                 wq_ref, bq_ref, wo_ref, bo_ref,
                 ln1g_ref, ln1b_ref, wf1_ref, bf1_ref, wf2_ref, bf2_ref,
                 ln2g_ref, ln2b_ref,
                 o_ref, acc_ref, *, heads, eps):
    """Whole word-level path for a [tm, 768] row tile.

    Grid = (row_tiles, n_layers); the activation is carried across the layer
    axis in the `acc_ref` VMEM scratch, layer weights stream per grid step.
    """
    l = pl.program_id(1)

    @pl.when(l == 0)
    def _():
        # reshape_fc1 -> reshape_fc2; the [tm, 3E] intermediate never hits HBM.
        h3 = jnp.dot(hid_ref[...], fc1w_ref[...],
                     preferred_element_type=jnp.float32) + fc1b_ref[...]
        acc_ref[...] = jnp.dot(h3.astype(jnp.bfloat16), fc2w_ref[...],
                               preferred_element_type=jnp.float32) + fc2b_ref[...]

    w = _load_layer_weights(dict(
        wq=wq_ref, bq=bq_ref, wo=wo_ref, bo=bo_ref,
        ln1g=ln1g_ref, ln1b=ln1b_ref, wf1=wf1_ref, bf1=bf1_ref,
        wf2=wf2_ref, bf2=bf2_ref, ln2g=ln2g_ref, ln2b=ln2b_ref))
    # Label cross-attention: K/V precomputed (block-diagonal) per layer.
    new = _transformer_layer(acc_ref[...], k2_ref[0], v2_ref[0], None,
                             seg_ref[...], w, heads=heads, eps=eps)
    acc_ref[...] = new

    @pl.when(l == pl.num_programs(1) - 1)
    def _():
        # CLS rows + learned position embedding (dropout = eval identity).
        o_ref[...] = (new + pos_ref[...]).astype(o_ref.dtype)


def _encoder_kernel(x_ref, mask_ref, seg_ref, bm_ref,
                    wq_ref, bq_ref, wkv_ref, bkv_ref, wo_ref, bo_ref,
                    ln1g_ref, ln1b_ref, wf1_ref, bf1_ref, wf2_ref, bf2_ref,
                    ln2g_ref, ln2b_ref,
                    o_ref, acc_ref, *, heads, eps):
    """Whole sentence-level encoder stack for one batch element.

    Grid = (batch, n_layers); masked self-attention over the P sentences with
    the activation carried in VMEM scratch across the layer axis.
    """
    l = pl.program_id(1)

    @pl.when(l == 0)
    def _():
        acc_ref[...] = x_ref[0]

    cur = acc_ref[...]                                   # [P, E] f32
    E = cur.shape[-1]

    # This layer's K/V from the current activation, folded block-diagonally.
    kv = jnp.dot(cur.astype(jnp.bfloat16), wkv_ref[0],
                 preferred_element_type=jnp.float32) + bkv_ref[0]
    k, v = kv[:, :E], kv[:, E:]
    bm = bm_ref[...]                                     # [H*P, E] 0/1 head-block mask
    k2 = (jnp.concatenate([k] * heads, axis=0) * bm).astype(jnp.bfloat16)
    v2 = (jnp.concatenate([v] * heads, axis=0) * bm).astype(jnp.bfloat16)

    # Additive key mask over all heads at once (no per-head where).
    keym = mask_ref[0]                                   # [1, P]
    addm = (jnp.concatenate([keym] * heads, axis=1) - 1.0) * 1e9   # [1, H*P]

    w = _load_layer_weights(dict(
        wq=wq_ref, bq=bq_ref, wo=wo_ref, bo=bo_ref,
        ln1g=ln1g_ref, ln1b=ln1b_ref, wf1=wf1_ref, bf1=bf1_ref,
        wf2=wf2_ref, bf2=bf2_ref, ln2g=ln2g_ref, ln2b=ln2b_ref))
    new = _transformer_layer(cur, k2, v2, addm, seg_ref[...], w,
                             heads=heads, eps=eps)
    acc_ref[...] = new

    @pl.when(l == pl.num_programs(1) - 1)
    def _():
        o_ref[0] = new.astype(o_ref.dtype)


# ----------------------------------------------------------------------------
# Python wrappers
# ----------------------------------------------------------------------------
def word_level_forward(wl, fc, hidden, pos, label_table, heads, eps=1e-5):
    """hidden: [M, 768] bf16 CLS rows, pos: [M, E] f32 -> [M, E] f32."""
    M, D = hidden.shape
    E = pos.shape[1]
    nl = wl["wq"].shape[0]
    L = label_table.shape[0]
    tm = _row_tile(M)

    seg = _seg_matrix(heads, L)                               # [H*L, H*L]
    K2s, V2s = _label_kv_stacks(label_table, wl["wkv"], wl["bkv"], heads)

    kernel = functools.partial(_word_kernel, heads=heads, eps=eps)
    in_specs = [
        pl.BlockSpec((tm, D), lambda i, l: (i, 0)),
        pl.BlockSpec((tm, E), lambda i, l: (i, 0)),
        pl.BlockSpec(seg.shape, lambda i, l: (0, 0)),
        pl.BlockSpec(fc["fc1_w"].shape, lambda i, l: (0, 0)),
        pl.BlockSpec(fc["fc1_b"].shape, lambda i, l: (0, 0)),
        pl.BlockSpec(fc["fc2_w"].shape, lambda i, l: (0, 0)),
        pl.BlockSpec(fc["fc2_b"].shape, lambda i, l: (0, 0)),
        pl.BlockSpec((1,) + K2s.shape[1:], lambda i, l: (l, 0, 0)),
        pl.BlockSpec((1,) + V2s.shape[1:], lambda i, l: (l, 0, 0)),
    ] + _stacked_specs(wl, _LABEL_WKEYS)

    return pl.pallas_call(
        kernel,
        out_shape=jax.ShapeDtypeStruct((M, E), jnp.float32),
        grid=(M // tm, nl),
        in_specs=in_specs,
        out_specs=pl.BlockSpec((tm, E), lambda i, l: (i, 0)),
        scratch_shapes=[pltpu.VMEM((tm, E), jnp.float32)],
        compiler_params=_MOSAIC_PARAMS,
    )(hidden, pos, seg,
      fc["fc1_w"], fc["fc1_b"], fc["fc2_w"], fc["fc2_b"],
      K2s, V2s, *(wl[k] for k in _LABEL_WKEYS))


def encoder_forward(enc, x, key_mask, heads, eps=1e-5):
    """x: [N, P, E] f32, key_mask: [N, 1, P] f32 -> [N, P, E] f32."""
    N, P, E = x.shape
    nl = enc["wq"].shape[0]
    seg = _seg_matrix(heads, P)                               # [H*P, H*P]
    bm = _head_block_mask(heads, P, E)                        # [H*P, E]

    kernel = functools.partial(_encoder_kernel, heads=heads, eps=eps)
    in_specs = [
        pl.BlockSpec((1, P, E), lambda i, l: (i, 0, 0)),
        pl.BlockSpec((1, 1, P), lambda i, l: (i, 0, 0)),
        pl.BlockSpec(seg.shape, lambda i, l: (0, 0)),
        pl.BlockSpec(bm.shape, lambda i, l: (0, 0)),
    ] + _stacked_specs(enc, _ENC_WKEYS)

    return pl.pallas_call(
        kernel,
        out_shape=jax.ShapeDtypeStruct((N, P, E), jnp.float32),
        grid=(N, nl),
        in_specs=in_specs,
        out_specs=pl.BlockSpec((1, P, E), lambda i, l: (i, 0, 0)),
        scratch_shapes=[pltpu.VMEM((P, E), jnp.float32)],
        compiler_params=_MOSAIC_PARAMS,
    )(x, key_mask, seg, bm, *(enc[k] for k in _ENC_WKEYS))


# ----------------------------------------------------------------------------
# SentenceEncoder forward
# ----------------------------------------------------------------------------
def sentence_encoder_forward(params, x, mask, cfg):
    N, P, S = x.shape
    E = cfg["embed"]
    H = cfg["heads"]

    # --- frozen word-level encoder stub --------------------------------------
    # TODO(synk): pretrained SciBERT replaced by a deterministic frozen
    # embedding-lookup stub (gather stays in XLA).  Only the CLS token feeds the
    # output (the label-attention stub is per-token independent; the reference's
    # pooled path never reaches the output), so only CLS rows are processed.
    cls_ids = x[:, :, 0].reshape(N * P)
    cls_m = mask[:, :, 0].reshape(N * P, 1).astype(jnp.bfloat16)
    hidden = params["tok_embed"][cls_ids] * cls_m                 # [N*P, 768] bf16

    pos = jnp.broadcast_to(params["position_embedding"][:P][None, :, :],
                           (N, P, E)).reshape(N * P, E)           # [N*P, E]

    # --- word-level path: FCs + label-attention stack (one pallas_call) ------
    cls_out = word_level_forward(params["word_label_layers"], params,
                                 hidden, pos, params["word_embedding"], H)

    # --- sentence-level encoder stack (one pallas_call) ----------------------
    sent = cls_out.reshape(N, P, E)
    sent_mask = jnp.any(mask.astype(bool), axis=2).astype(jnp.float32)[:, None, :]
    # TODO(synk): EncoderTransformerBlock definition unavailable; label_embed is
    # not consumed in this canonical masked self-attention block.
    return encoder_forward(params["layers"], sent, sent_mask, H)


# ----------------------------------------------------------------------------
# deterministic parameter init (matrices bf16, biases / LN params f32, stacked
# per layer along a leading axis so a whole stack is one pallas_call)
# ----------------------------------------------------------------------------
def _init_dense(key, d_in, d_out):
    k1, k2 = jax.random.split(key)
    w = (jax.random.normal(k1, (d_in, d_out), jnp.float32) * 0.02).astype(jnp.bfloat16)
    b = jax.random.normal(k2, (1, d_out), jnp.float32) * 0.02
    return w, b


def _init_block_stack(key, E, FE, n_layers):
    blocks = []
    for i in range(n_layers):
        ki = jax.random.fold_in(key, i)
        ks = jax.random.split(ki, 5)
        wq, bq = _init_dense(ks[0], E, E)
        wkv, bkv = _init_dense(ks[1], E, 2 * E)
        wo, bo = _init_dense(ks[2], E, E)
        wf1, bf1 = _init_dense(ks[3], E, FE * E)
        wf2, bf2 = _init_dense(ks[4], FE * E, E)
        blocks.append(dict(
            wq=wq, bq=bq, wkv=wkv, bkv=bkv, wo=wo, bo=bo,
            ln1g=jnp.ones((1, E), jnp.float32), ln1b=jnp.zeros((1, E), jnp.float32),
            wf1=wf1, bf1=bf1, wf2=wf2, bf2=bf2,
            ln2g=jnp.ones((1, E), jnp.float32), ln2b=jnp.zeros((1, E), jnp.float32)))
    return {k: jnp.stack([b[k] for b in blocks]) for k in blocks[0]}


def init_params(key, cfg):
    E, FE = cfg["embed"], cfg["forward_expansion"]
    nl = cfg["num_layers"]
    ks = jax.random.split(key, 7)
    fc1_w, fc1_b = _init_dense(ks[1], cfg["bert_dim"], 3 * E)
    fc2_w, fc2_b = _init_dense(ks[2], 3 * E, E)
    return {
        # bf16 embedding table: halves HBM traffic of the dominant gather.
        "tok_embed": (jax.random.normal(ks[0], (cfg["vocab"], cfg["bert_dim"]),
                                        jnp.float32) * 0.02).astype(jnp.bfloat16),
        "fc1_w": fc1_w, "fc1_b": fc1_b,
        "fc2_w": fc2_w, "fc2_b": fc2_b,
        "word_embedding": jax.random.normal(ks[3], (cfg["num_labels"], E),
                                            jnp.float32) * 0.02,
        "position_embedding": jax.random.normal(ks[4], (cfg["max_par_len"], E),
                                                jnp.float32) * 0.02,
        "word_label_layers": _init_block_stack(ks[5], E, FE, nl),
        "layers": _init_block_stack(ks[6], E, FE, nl),
    }


# ----------------------------------------------------------------------------
if __name__ == "__main__":
    cfg = dict(
        embed=32,
        heads=4,
        num_layers=2,
        forward_expansion=2,
        num_labels=5,
        max_par_len=8,
        max_seq_len=16,
        vocab=100,
        bert_dim=768,
    )

    N, P, S = 2, 4, 8  # batch, paragraph length (sentences), tokens per sentence

    key = jax.random.PRNGKey(0)
    k_ids, k_len, k_par = jax.random.split(key, 3)
    x = jax.random.randint(k_ids, (N, P, S), 1, cfg["vocab"], dtype=jnp.int32)
    lengths = jax.random.randint(k_len, (N, P), 3, S + 1)
    mask = (jnp.arange(S)[None, None, :] < lengths[..., None]).astype(jnp.int32)

    params = init_params(k_par, cfg)

    fwd = jax.jit(lambda p, xi, mi: sentence_encoder_forward(p, xi, mi, cfg))
    out = fwd(params, x, mask)
    jax.block_until_ready(out)

    assert out.shape == (N, P, cfg["embed"]), out.shape
    assert bool(jnp.all(jnp.isfinite(out)))
    print("KERNEL_OK")
</pallas_src>

<mosaic_0001>
module attributes {stable_mosaic.version = 11 : i64} {
  func.func @_word_kernel(%arg0: i32, %arg1: i32, %arg2: memref<8x768xbf16, #tpu.memory_space<vmem>>, %arg3: memref<8x32xf32, #tpu.memory_space<vmem>>, %arg4: memref<20x20xf32, #tpu.memory_space<vmem>>, %arg5: memref<768x96xbf16, #tpu.memory_space<vmem>>, %arg6: memref<1x96xf32, #tpu.memory_space<vmem>>, %arg7: memref<96x32xbf16, #tpu.memory_space<vmem>>, %arg8: memref<1x32xf32, #tpu.memory_space<vmem>>, %arg9: memref<1x20x32xbf16, #tpu.memory_space<vmem>>, %arg10: memref<1x20x32xbf16, #tpu.memory_space<vmem>>, %arg11: memref<1x32x32xbf16, #tpu.memory_space<vmem>>, %arg12: memref<1x1x32xf32, #tpu.memory_space<vmem>>, %arg13: memref<1x32x32xbf16, #tpu.memory_space<vmem>>, %arg14: memref<1x1x32xf32, #tpu.memory_space<vmem>>, %arg15: memref<1x1x32xf32, #tpu.memory_space<vmem>>, %arg16: memref<1x1x32xf32, #tpu.memory_space<vmem>>, %arg17: memref<1x32x64xbf16, #tpu.memory_space<vmem>>, %arg18: memref<1x1x64xf32, #tpu.memory_space<vmem>>, %arg19: memref<1x64x32xbf16, #tpu.memory_space<vmem>>, %arg20: memref<1x1x32xf32, #tpu.memory_space<vmem>>, %arg21: memref<1x1x32xf32, #tpu.memory_space<vmem>>, %arg22: memref<1x1x32xf32, #tpu.memory_space<vmem>>, %arg23: memref<8x32xf32, #tpu.memory_space<vmem>>, %arg24: memref<8x32xf32, #tpu.memory_space<vmem>>) attributes {dimension_semantics = [#tpu.dimension_semantics<parallel>, #tpu.dimension_semantics<arbitrary>], iteration_bounds = array<i64: 1, 2>, scalar_prefetch = 0 : i64, scratch_operands = 1 : i64, tpu.core_type = #tpu.core_type<tc>, window_params = [{transform_indices = @transform_0, window_bounds = array<i64: 8, 768>}, {transform_indices = @transform_1, window_bounds = array<i64: 8, 32>}, {pipeline_mode = #tpu.pipeline_mode<synchronous>, transform_indices = @transform_2, window_bounds = array<i64: 20, 20>}, {pipeline_mode = #tpu.pipeline_mode<synchronous>, transform_indices = @transform_3, window_bounds = array<i64: 768, 96>}, {pipeline_mode = #tpu.pipeline_mode<synchronous>, transform_indices = @transform_4, window_bounds = array<i64: 1, 96>}, {pipeline_mode = #tpu.pipeline_mode<synchronous>, transform_indices = @transform_5, window_bounds = array<i64: 96, 32>}, {pipeline_mode = #tpu.pipeline_mode<synchronous>, transform_indices = @transform_6, window_bounds = array<i64: 1, 32>}, {transform_indices = @transform_7, window_bounds = array<i64: 1, 20, 32>}, {transform_indices = @transform_8, window_bounds = array<i64: 1, 20, 32>}, {transform_indices = @transform_9, window_bounds = array<i64: 1, 32, 32>}, {transform_indices = @transform_10, window_bounds = array<i64: 1, 1, 32>}, {transform_indices = @transform_11, window_bounds = array<i64: 1, 32, 32>}, {transform_indices = @transform_12, window_bounds = array<i64: 1, 1, 32>}, {transform_indices = @transform_13, window_bounds = array<i64: 1, 1, 32>}, {transform_indices = @transform_14, window_bounds = array<i64: 1, 1, 32>}, {transform_indices = @transform_15, window_bounds = array<i64: 1, 32, 64>}, {transform_indices = @transform_16, window_bounds = array<i64: 1, 1, 64>}, {transform_indices = @transform_17, window_bounds = array<i64: 1, 64, 32>}, {transform_indices = @transform_18, window_bounds = array<i64: 1, 1, 32>}, {transform_indices = @transform_19, window_bounds = array<i64: 1, 1, 32>}, {transform_indices = @transform_20, window_bounds = array<i64: 1, 1, 32>}, {transform_indices = @transform_21, window_bounds = array<i64: 8, 32>}]} {
    %c0_i32 = arith.constant 0 : i32
    %0 = arith.cmpi eq, %arg1, %c0_i32 : i32
    %1 = arith.extui %0 : i1 to i32
    %c0_i32_0 = arith.constant 0 : i32
    %2 = arith.cmpi ne, %1, %c0_i32_0 : i32
    scf.if %2 {
      %c0_68 = arith.constant 0 : index
      %c0_69 = arith.constant 0 : index
      %111 = vector.load %arg2[%c0_68, %c0_69] : memref<8x768xbf16, #tpu.memory_space<vmem>>, vector<8x768xbf16>
      %c0_70 = arith.constant 0 : index
      %c0_71 = arith.constant 0 : index
      %112 = vector.load %arg5[%c0_70, %c0_71] : memref<768x96xbf16, #tpu.memory_space<vmem>>, vector<768x96xbf16>
      %cst_72 = arith.constant dense<0.000000e+00> : vector<8x96xf32>
      %113 = tpu.matmul %111, %112, %cst_72 {dimension_numbers = #tpu.dot_dimension_numbers<[1], [0], [0], [1], [0, 0, 1, 1], [], []>} : vector<8x768xbf16>, vector<768x96xbf16>, vector<8x96xf32> -> vector<8x96xf32>
      %c0_73 = arith.constant 0 : index
      %c0_74 = arith.constant 0 : index
      %114 = vector.load %arg6[%c0_73, %c0_74] : memref<1x96xf32, #tpu.memory_space<vmem>>, vector<1x96xf32>
      %115 = vector.broadcast %114 : vector<1x96xf32> to vector<8x96xf32>
      %116 = arith.addf %113, %115 : vector<8x96xf32>
      %117 = arith.truncf %116 : vector<8x96xf32> to vector<8x96xbf16>
      %c0_75 = arith.constant 0 : index
      %c0_76 = arith.constant 0 : index
      %118 = vector.load %arg7[%c0_75, %c0_76] : memref<96x32xbf16, #tpu.memory_space<vmem>>, vector<96x32xbf16>
      %cst_77 = arith.constant dense<0.000000e+00> : vector<8x32xf32>
      %119 = tpu.matmul %117, %118, %cst_77 {dimension_numbers = #tpu.dot_dimension_numbers<[1], [0], [0], [1], [0, 0, 1, 1], [], []>} : vector<8x96xbf16>, vector<96x32xbf16>, vector<8x32xf32> -> vector<8x32xf32>
      %c0_78 = arith.constant 0 : index
      %c0_79 = arith.constant 0 : index
      %120 = vector.load %arg8[%c0_78, %c0_79] : memref<1x32xf32, #tpu.memory_space<vmem>>, vector<1x32xf32>
      %121 = vector.broadcast %120 : vector<1x32xf32> to vector<8x32xf32>
      %122 = arith.addf %119, %121 : vector<8x32xf32>
      %c0_80 = arith.constant 0 : index
      %c0_81 = arith.constant 0 : index
      %123 = vector.load %arg24[%c0_80, %c0_81] : memref<8x32xf32, #tpu.memory_space<vmem>>, vector<8x32xf32>
      tpu.vector_store %arg24[%c0_80, %c0_81], %122 {strides = array<i32>} : memref<8x32xf32, #tpu.memory_space<vmem>>, vector<8x32xf32>,
    } else {
    }
    %c0 = arith.constant 0 : index
    %c0_1 = arith.constant 0 : index
    %c0_2 = arith.constant 0 : index
    %3 = vector.load %arg11[%c0, %c0_1, %c0_2] : memref<1x32x32xbf16, #tpu.memory_space<vmem>>, vector<1x32x32xbf16>
    %4 = vector.shape_cast %3 : vector<1x32x32xbf16> to vector<32x32xbf16>
    %c0_3 = arith.constant 0 : index
    %c0_4 = arith.constant 0 : index
    %c0_5 = arith.constant 0 : index
    %5 = vector.load %arg12[%c0_3, %c0_4, %c0_5] : memref<1x1x32xf32, #tpu.memory_space<vmem>>, vector<1x1x32xf32>
    %6 = vector.shape_cast %5 : vector<1x1x32xf32> to vector<1x32xf32>
    %c0_6 = arith.constant 0 : index
    %c0_7 = arith.constant 0 : index
    %c0_8 = arith.constant 0 : index
    %7 = vector.load %arg13[%c0_6, %c0_7, %c0_8] : memref<1x32x32xbf16, #tpu.memory_space<vmem>>, vector<1x32x32xbf16>
    %8 = vector.shape_cast %7 : vector<1x32x32xbf16> to vector<32x32xbf16>
    %c0_9 = arith.constant 0 : index
    %c0_10 = arith.constant 0 : index
    %c0_11 = arith.constant 0 : index
    %9 = vector.load %arg14[%c0_9, %c0_10, %c0_11] : memref<1x1x32xf32, #tpu.memory_space<vmem>>, vector<1x1x32xf32>
    %10 = vector.shape_cast %9 : vector<1x1x32xf32> to vector<1x32xf32>
    %c0_12 = arith.constant 0 : index
    %c0_13 = arith.constant 0 : index
    %c0_14 = arith.constant 0 : index
    %11 = vector.load %arg15[%c0_12, %c0_13, %c0_14] : memref<1x1x32xf32, #tpu.memory_space<vmem>>, vector<1x1x32xf32>
    %12 = vector.shape_cast %11 : vector<1x1x32xf32> to vector<1x32xf32>
    %c0_15 = arith.constant 0 : index
    %c0_16 = arith.constant 0 : index
    %c0_17 = arith.constant 0 : index
    %13 = vector.load %arg16[%c0_15, %c0_16, %c0_17] : memref<1x1x32xf32, #tpu.memory_space<vmem>>, vector<1x1x32xf32>
    %14 = vector.shape_cast %13 : vector<1x1x32xf32> to vector<1x32xf32>
    %c0_18 = arith.constant 0 : index
    %c0_19 = arith.constant 0 : index
    %c0_20 = arith.constant 0 : index
    %15 = vector.load %arg17[%c0_18, %c0_19, %c0_20] : memref<1x32x64xbf16, #tpu.memory_space<vmem>>, vector<1x32x64xbf16>
    %16 = vector.shape_cast %15 : vector<1x32x64xbf16> to vector<32x64xbf16>
    %c0_21 = arith.constant 0 : index
    %c0_22 = arith.constant 0 : index
    %c0_23 = arith.constant 0 : index
    %17 = vector.load %arg18[%c0_21, %c0_22, %c0_23] : memref<1x1x64xf32, #tpu.memory_space<vmem>>, vector<1x1x64xf32>
    %18 = vector.shape_cast %17 : vector<1x1x64xf32> to vector<1x64xf32>
    %c0_24 = arith.constant 0 : index
    %c0_25 = arith.constant 0 : index
    %c0_26 = arith.constant 0 : index
    %19 = vector.load %arg19[%c0_24, %c0_25, %c0_26] : memref<1x64x32xbf16, #tpu.memory_space<vmem>>, vector<1x64x32xbf16>
    %20 = vector.shape_cast %19 : vector<1x64x32xbf16> to vector<64x32xbf16>
    %c0_27 = arith.constant 0 : index
    %c0_28 = arith.constant 0 : index
    %c0_29 = arith.constant 0 : index
    %21 = vector.load %arg20[%c0_27, %c0_28, %c0_29] : memref<1x1x32xf32, #tpu.memory_space<vmem>>, vector<1x1x32xf32>
    %22 = vector.shape_cast %21 : vector<1x1x32xf32> to vector<1x32xf32>
    %c0_30 = arith.constant 0 : index
    %c0_31 = arith.constant 0 : index
    %c0_32 = arith.constant 0 : index
    %23 = vector.load %arg21[%c0_30, %c0_31, %c0_32] : memref<1x1x32xf32, #tpu.memory_space<vmem>>, vector<1x1x32xf32>
    %24 = vector.shape_cast %23 : vector<1x1x32xf32> to vector<1x32xf32>
    %c0_33 = arith.constant 0 : index
    %c0_34 = arith.constant 0 : index
    %c0_35 = arith.constant 0 : index
    %25 = vector.load %arg22[%c0_33, %c0_34, %c0_35] : memref<1x1x32xf32, #tpu.memory_space<vmem>>, vector<1x1x32xf32>
    %26 = vector.shape_cast %25 : vector<1x1x32xf32> to vector<1x32xf32>
    %c0_36 = arith.constant 0 : index
    %c0_37 = arith.constant 0 : index
    %27 = vector.load %arg24[%c0_36, %c0_37] : memref<8x32xf32, #tpu.memory_space<vmem>>, vector<8x32xf32>
    %c0_38 = arith.constant 0 : index
    %c0_39 = arith.constant 0 : index
    %c0_40 = arith.constant 0 : index
    %28 = vector.load %arg9[%c0_38, %c0_39, %c0_40] : memref<1x20x32xbf16, #tpu.memory_space<vmem>>, vector<1x20x32xbf16>
    %29 = vector.shape_cast %28 : vector<1x20x32xbf16> to vector<20x32xbf16>
    %c0_41 = arith.constant 0 : index
    %c0_42 = arith.constant 0 : index
    %c0_43 = arith.constant 0 : index
    %30 = vector.load %arg10[%c0_41, %c0_42, %c0_43] : memref<1x20x32xbf16, #tpu.memory_space<vmem>>, vector<1x20x32xbf16>
    %31 = vector.shape_cast %30 : vector<1x20x32xbf16> to vector<20x32xbf16>
    %c0_44 = arith.constant 0 : index
    %c0_45 = arith.constant 0 : index
    %32 = vector.load %arg4[%c0_44, %c0_45] : memref<20x20xf32, #tpu.memory_space<vmem>>, vector<20x20xf32>
    %33 = arith.truncf %27 : vector<8x32xf32> to vector<8x32xbf16>
    %cst = arith.constant dense<0.000000e+00> : vector<8x32xf32>
    %34 = tpu.matmul %33, %4, %cst {dimension_numbers = #tpu.dot_dimension_numbers<[1], [0], [0], [1], [0, 0, 1, 1], [], []>} : vector<8x32xbf16>, vector<32x32xbf16>, vector<8x32xf32> -> vector<8x32xf32>
    %35 = vector.broadcast %6 : vector<1x32xf32> to vector<8x32xf32>
    %36 = arith.addf %34, %35 : vector<8x32xf32>
    %37 = arith.truncf %36 : vector<8x32xf32> to vector<8x32xbf16>
    %cst_46 = arith.constant dense<0.000000e+00> : vector<8x20xf32>
    %38 = tpu.matmul %37, %29, %cst_46 {dimension_numbers = #tpu.dot_dimension_numbers<[1], [1], [0], [0], [0, 0, 1, 0], [], []>} : vector<8x32xbf16>, vector<20x32xbf16>, vector<8x20xf32> -> vector<8x20xf32>
    %cst_47 = arith.constant 0.353553385 : f32
    %39 = vector.broadcast %cst_47 : f32 to vector<8x20xf32>
    %40 = arith.mulf %38, %39 : vector<8x20xf32>
    %cst_48 = arith.constant dense<0xFF800000> : vector<8xf32>
    %41 = vector.multi_reduction <maximumf>, %40, %cst_48 [1] : vector<8x20xf32> to vector<8xf32>
    %42 = vector.shape_cast %41 : vector<8xf32> to vector<8x1xf32>
    %43 = vector.broadcast %42 : vector<8x1xf32> to vector<8x20xf32>
    %44 = arith.subf %40, %43 : vector<8x20xf32>
    %45 = math.exp %44 : vector<8x20xf32>
    %cst_49 = arith.constant dense<0.000000e+00> : vector<8x20xf32>
    %46 = tpu.matmul %45, %32, %cst_49 {dimension_numbers = #tpu.dot_dimension_numbers<[1], [0], [0], [1], [0, 0, 1, 1], [], []>} : vector<8x20xf32>, vector<20x20xf32>, vector<8x20xf32> -> vector<8x20xf32>
    %47 = tpu.reciprocal %46 {approx = true} : vector<8x20xf32> -> vector<8x20xf32>
    %48 = arith.mulf %45, %47 : vector<8x20xf32>
    %49 = arith.truncf %48 : vector<8x20xf32> to vector<8x20xbf16>
    %cst_50 = arith.constant dense<0.000000e+00> : vector<8x32xf32>
    %50 = tpu.matmul %49, %31, %cst_50 {dimension_numbers = #tpu.dot_dimension_numbers<[1], [0], [0], [1], [0, 0, 1, 1], [], []>} : vector<8x20xbf16>, vector<20x32xbf16>, vector<8x32xf32> -> vector<8x32xf32>
    %51 = arith.truncf %50 : vector<8x32xf32> to vector<8x32xbf16>
    %cst_51 = arith.constant dense<0.000000e+00> : vector<8x32xf32>
    %52 = tpu.matmul %51, %8, %cst_51 {dimension_numbers = #tpu.dot_dimension_numbers<[1], [0], [0], [1], [0, 0, 1, 1], [], []>} : vector<8x32xbf16>, vector<32x32xbf16>, vector<8x32xf32> -> vector<8x32xf32>
    %53 = vector.broadcast %10 : vector<1x32xf32> to vector<8x32xf32>
    %54 = arith.addf %52, %53 : vector<8x32xf32>
    %55 = arith.addf %54, %27 : vector<8x32xf32>
    %cst_52 = arith.constant dense<0.000000e+00> : vector<8xf32>
    %56 = vector.multi_reduction <add>, %55, %cst_52 [1] : vector<8x32xf32> to vector<8xf32>
    %57 = vector.shape_cast %56 : vector<8xf32> to vector<8x1xf32>
    %cst_53 = arith.constant 3.200000e+01 : f32
    %58 = vector.broadcast %cst_53 : f32 to vector<8x1xf32>
    %59 = arith.divf %57, %58 : vector<8x1xf32>
    %60 = vector.broadcast %59 : vector<8x1xf32> to vector<8x32xf32>
    %61 = arith.subf %55, %60 : vector<8x32xf32>
    %62 = arith.mulf %61, %61 : vector<8x32xf32>
    %cst_54 = arith.constant dense<0.000000e+00> : vector<8xf32>
    %63 = vector.multi_reduction <add>, %62, %cst_54 [1] : vector<8x32xf32> to vector<8xf32>
    %64 = vector.shape_cast %63 : vector<8xf32> to vector<8x1xf32>
    %cst_55 = arith.constant 3.200000e+01 : f32
    %65 = vector.broadcast %cst_55 : f32 to vector<8x1xf32>
    %66 = arith.divf %64, %65 : vector<8x1xf32>
    %cst_56 = arith.constant 9.99999974E-6 : f32
    %67 = vector.broadcast %cst_56 : f32 to vector<8x1xf32>
    %68 = arith.addf %66, %67 : vector<8x1xf32>
    %69 = math.rsqrt %68 : vector<8x1xf32>
    %70 = vector.broadcast %69 : vector<8x1xf32> to vector<8x32xf32>
    %71 = arith.mulf %61, %70 : vector<8x32xf32>
    %72 = vector.broadcast %12 : vector<1x32xf32> to vector<8x32xf32>
    %73 = arith.mulf %71, %72 : vector<8x32xf32>
    %74 = vector.broadcast %14 : vector<1x32xf32> to vector<8x32xf32>
    %75 = arith.addf %73, %74 : vector<8x32xf32>
    %76 = arith.truncf %75 : vector<8x32xf32> to vector<8x32xbf16>
    %cst_57 = arith.constant dense<0.000000e+00> : vector<8x64xf32>
    %77 = tpu.matmul %76, %16, %cst_57 {dimension_numbers = #tpu.dot_dimension_numbers<[1], [0], [0], [1], [0, 0, 1, 1], [], []>} : vector<8x32xbf16>, vector<32x64xbf16>, vector<8x64xf32> -> vector<8x64xf32>
    %78 = vector.broadcast %18 : vector<1x64xf32> to vector<8x64xf32>
    %79 = arith.addf %77, %78 : vector<8x64xf32>
    %cst_58 = arith.constant 0.000000e+00 : f32
    %80 = vector.broadcast %cst_58 : f32 to vector<8x64xf32>
    %81 = arith.maximumf %79, %80 : vector<8x64xf32>
    %82 = arith.truncf %81 : vector<8x64xf32> to vector<8x64xbf16>
    %cst_59 = arith.constant dense<0.000000e+00> : vector<8x32xf32>
    %83 = tpu.matmul %82, %20, %cst_59 {dimension_numbers = #tpu.dot_dimension_numbers<[1], [0], [0], [1], [0, 0, 1, 1], [], []>} : vector<8x64xbf16>, vector<64x32xbf16>, vector<8x32xf32> -> vector<8x32xf32>
    %84 = vector.broadcast %22 : vector<1x32xf32> to vector<8x32xf32>
    %85 = arith.addf %83, %84 : vector<8x32xf32>
    %86 = arith.addf %85, %75 : vector<8x32xf32>
    %cst_60 = arith.constant dense<0.000000e+00> : vector<8xf32>
    %87 = vector.multi_reduction <add>, %86, %cst_60 [1] : vector<8x32xf32> to vector<8xf32>
    %88 = vector.shape_cast %87 : vector<8xf32> to vector<8x1xf32>
    %cst_61 = arith.constant 3.200000e+01 : f32
    %89 = vector.broadcast %cst_61 : f32 to vector<8x1xf32>
    %90 = arith.divf %88, %89 : vector<8x1xf32>
    %91 = vector.broadcast %90 : vector<8x1xf32> to vector<8x32xf32>
    %92 = arith.subf %86, %91 : vector<8x32xf32>
    %93 = arith.mulf %92, %92 : vector<8x32xf32>
    %cst_62 = arith.constant dense<0.000000e+00> : vector<8xf32>
    %94 = vector.multi_reduction <add>, %93, %cst_62 [1] : vector<8x32xf32> to vector<8xf32>
    %95 = vector.shape_cast %94 : vector<8xf32> to vector<8x1xf32>
    %cst_63 = arith.constant 3.200000e+01 : f32
    %96 = vector.broadcast %cst_63 : f32 to vector<8x1xf32>
    %97 = arith.divf %95, %96 : vector<8x1xf32>
    %cst_64 = arith.constant 9.99999974E-6 : f32
    %98 = vector.broadcast %cst_64 : f32 to vector<8x1xf32>
    %99 = arith.addf %97, %98 : vector<8x1xf32>
    %100 = math.rsqrt %99 : vector<8x1xf32>
    %101 = vector.broadcast %100 : vector<8x1xf32> to vector<8x32xf32>
    %102 = arith.mulf %92, %101 : vector<8x32xf32>
    %103 = vector.broadcast %24 : vector<1x32xf32> to vector<8x32xf32>
    %104 = arith.mulf %102, %103 : vector<8x32xf32>
    %105 = vector.broadcast %26 : vector<1x32xf32> to vector<8x32xf32>
    %106 = arith.addf %104, %105 : vector<8x32xf32>
    %c0_65 = arith.constant 0 : index
    %c0_66 = arith.constant 0 : index
    %107 = vector.load %arg24[%c0_65, %c0_66] : memref<8x32xf32, #tpu.memory_space<vmem>>, vector<8x32xf32>
    tpu.vector_store %arg24[%c0_65, %c0_66], %106 {strides = array<i32>} : memref<8x32xf32, #tpu.memory_space<vmem>>, vector<8x32xf32>,
    %c1_i32 = arith.constant 1 : i32
    %108 = arith.cmpi eq, %arg1, %c1_i32 : i32
    %109 = arith.extui %108 : i1 to i32
    %c0_i32_67 = arith.constant 0 : i32
    %110 = arith.cmpi ne, %109, %c0_i32_67 : i32
    scf.if %110 {
      %c0_68 = arith.constant 0 : index
      %c0_69 = arith.constant 0 : index
      %111 = vector.load %arg3[%c0_68, %c0_69] : memref<8x32xf32, #tpu.memory_space<vmem>>, vector<8x32xf32>
      %112 = arith.addf %106, %111 : vector<8x32xf32>
      %c0_70 = arith.constant 0 : index
      %c0_71 = arith.constant 0 : index
      %113 = vector.load %arg23[%c0_70, %c0_71] : memref<8x32xf32, #tpu.memory_space<vmem>>, vector<8x32xf32>
      tpu.vector_store %arg23[%c0_70, %c0_71], %112 {strides = array<i32>} : memref<8x32xf32, #tpu.memory_space<vmem>>, vector<8x32xf32>,
    } else {
    }
    return
  }
  func.func @transform_0(%arg0: i32, %arg1: i32) -> (i32, i32) {
    %c0_i32 = arith.constant 0 : i32
    %c0_i32_0 = arith.constant 0 : i32
    return %arg0, %c0_i32 : i32, i32
  }
  func.func @transform_1(%arg0: i32, %arg1: i32) -> (i32, i32) {
    %c0_i32 = arith.constant 0 : i32
    %c0_i32_0 = arith.constant 0 : i32
    return %arg0, %c0_i32 : i32, i32
  }
  func.func @transform_2(%arg0: i32, %arg1: i32) -> (i32, i32) {
    %c0_i32 = arith.constant 0 : i32
    %c0_i32_0 = arith.constant 0 : i32
    %c0_i32_1 = arith.constant 0 : i32
    return %c0_i32, %c0_i32_0 : i32, i32
  }
  func.func @transform_3(%arg0: i32, %arg1: i32) -> (i32, i32) {
    %c0_i32 = arith.constant 0 : i32
    %c0_i32_0 = arith.constant 0 : i32
    %c0_i32_1 = arith.constant 0 : i32
    return %c0_i32, %c0_i32_0 : i32, i32
  }
  func.func @transform_4(%arg0: i32, %arg1: i32) -> (i32, i32) {
    %c0_i32 = arith.constant 0 : i32
    %c0_i32_0 = arith.constant 0 : i32
    %c0_i32_1 = arith.constant 0 : i32
    return %c0_i32, %c0_i32_0 : i32, i32
  }
  func.func @transform_5(%arg0: i32, %arg1: i32) -> (i32, i32) {
    %c0_i32 = arith.constant 0 : i32
    %c0_i32_0 = arith.constant 0 : i32
    %c0_i32_1 = arith.constant 0 : i32
    return %c0_i32, %c0_i32_0 : i32, i32
  }
  func.func @transform_6(%arg0: i32, %arg1: i32) -> (i32, i32) {
    %c0_i32 = arith.constant 0 : i32
    %c0_i32_0 = arith.constant 0 : i32
    %c0_i32_1 = arith.constant 0 : i32
    return %c0_i32, %c0_i32_0 : i32, i32
  }
  func.func @transform_7(%arg0: i32, %arg1: i32) -> (i32, i32, i32) {
    %c0_i32 = arith.constant 0 : i32
    %c0_i32_0 = arith.constant 0 : i32
    %c0_i32_1 = arith.constant 0 : i32
    return %arg1, %c0_i32, %c0_i32_0 : i32, i32, i32
  }
  func.func @transform_8(%arg0: i32, %arg1: i32) -> (i32, i32, i32) {
    %c0_i32 = arith.constant 0 : i32
    %c0_i32_0 = arith.constant 0 : i32
    %c0_i32_1 = arith.constant 0 : i32
    return %arg1, %c0_i32, %c0_i32_0 : i32, i32, i32
  }
  func.func @transform_9(%arg0: i32, %arg1: i32) -> (i32, i32, i32) {
    %c0_i32 = arith.constant 0 : i32
    %c0_i32_0 = arith.constant 0 : i32
    %c0_i32_1 = arith.constant 0 : i32
    return %arg1, %c0_i32, %c0_i32_0 : i32, i32, i32
  }
  func.func @transform_10(%arg0: i32, %arg1: i32) -> (i32, i32, i32) {
    %c0_i32 = arith.constant 0 : i32
    %c0_i32_0 = arith.constant 0 : i32
    %c0_i32_1 = arith.constant 0 : i32
    return %arg1, %c0_i32, %c0_i32_0 : i32, i32, i32
  }
  func.func @transform_11(%arg0: i32, %arg1: i32) -> (i32, i32, i32) {
    %c0_i32 = arith.constant 0 : i32
    %c0_i32_0 = arith.constant 0 : i32
    %c0_i32_1 = arith.constant 0 : i32
    return %arg1, %c0_i32, %c0_i32_0 : i32, i32, i32
  }
  func.func @transform_12(%arg0: i32, %arg1: i32) -> (i32, i32, i32) {
    %c0_i32 = arith.constant 0 : i32
    %c0_i32_0 = arith.constant 0 : i32
    %c0_i32_1 = arith.constant 0 : i32
    return %arg1, %c0_i32, %c0_i32_0 : i32, i32, i32
  }
  func.func @transform_13(%arg0: i32, %arg1: i32) -> (i32, i32, i32) {
    %c0_i32 = arith.constant 0 : i32
    %c0_i32_0 = arith.constant 0 : i32
    %c0_i32_1 = arith.constant 0 : i32
    return %arg1, %c0_i32, %c0_i32_0 : i32, i32, i32
  }
  func.func @transform_14(%arg0: i32, %arg1: i32) -> (i32, i32, i32) {
    %c0_i32 = arith.constant 0 : i32
    %c0_i32_0 = arith.constant 0 : i32
    %c0_i32_1 = arith.constant 0 : i32
    return %arg1, %c0_i32, %c0_i32_0 : i32, i32, i32
  }
  func.func @transform_15(%arg0: i32, %arg1: i32) -> (i32, i32, i32) {
    %c0_i32 = arith.constant 0 : i32
    %c0_i32_0 = arith.constant 0 : i32
    %c0_i32_1 = arith.constant 0 : i32
    return %arg1, %c0_i32, %c0_i32_0 : i32, i32, i32
  }
  func.func @transform_16(%arg0: i32, %arg1: i32) -> (i32, i32, i32) {
    %c0_i32 = arith.constant 0 : i32
    %c0_i32_0 = arith.constant 0 : i32
    %c0_i32_1 = arith.constant 0 : i32
    return %arg1, %c0_i32, %c0_i32_0 : i32, i32, i32
  }
  func.func @transform_17(%arg0: i32, %arg1: i32) -> (i32, i32, i32) {
    %c0_i32 = arith.constant 0 : i32
    %c0_i32_0 = arith.constant 0 : i32
    %c0_i32_1 = arith.constant 0 : i32
    return %arg1, %c0_i32, %c0_i32_0 : i32, i32, i32
  }
  func.func @transform_18(%arg0: i32, %arg1: i32) -> (i32, i32, i32) {
    %c0_i32 = arith.constant 0 : i32
    %c0_i32_0 = arith.constant 0 : i32
    %c0_i32_1 = arith.constant 0 : i32
    return %arg1, %c0_i32, %c0_i32_0 : i32, i32, i32
  }
  func.func @transform_19(%arg0: i32, %arg1: i32) -> (i32, i32, i32) {
    %c0_i32 = arith.constant 0 : i32
    %c0_i32_0 = arith.constant 0 : i32
    %c0_i32_1 = arith.constant 0 : i32
    return %arg1, %c0_i32, %c0_i32_0 : i32, i32, i32
  }
  func.func @transform_20(%arg0: i32, %arg1: i32) -> (i32, i32, i32) {
    %c0_i32 = arith.constant 0 : i32
    %c0_i32_0 = arith.constant 0 : i32
    %c0_i32_1 = arith.constant 0 : i32
    return %arg1, %c0_i32, %c0_i32_0 : i32, i32, i32
  }
  func.func @transform_21(%arg0: i32, %arg1: i32) -> (i32, i32) {
    %c0_i32 = arith.constant 0 : i32
    %c0_i32_0 = arith.constant 0 : i32
    return %arg0, %c0_i32 : i32, i32
  }
}

module attributes {stable_mosaic.version = 11 : i64} {
  func.func @_encoder_kernel(%arg0: i32, %arg1: i32, %arg2: memref<1x4x32xf32, #tpu.memory_space<vmem>>, %arg3: memref<1x1x4xf32, #tpu.memory_space<vmem>>, %arg4: memref<16x16xf32, #tpu.memory_space<vmem>>, %arg5: memref<16x32xf32, #tpu.memory_space<vmem>>, %arg6: memref<1x32x32xbf16, #tpu.memory_space<vmem>>, %arg7: memref<1x1x32xf32, #tpu.memory_space<vmem>>, %arg8: memref<1x32x64xbf16, #tpu.memory_space<vmem>>, %arg9: memref<1x1x64xf32, #tpu.memory_space<vmem>>, %arg10: memref<1x32x32xbf16, #tpu.memory_space<vmem>>, %arg11: memref<1x1x32xf32, #tpu.memory_space<vmem>>, %arg12: memref<1x1x32xf32, #tpu.memory_space<vmem>>, %arg13: memref<1x1x32xf32, #tpu.memory_space<vmem>>, %arg14: memref<1x32x64xbf16, #tpu.memory_space<vmem>>, %arg15: memref<1x1x64xf32, #tpu.memory_space<vmem>>, %arg16: memref<1x64x32xbf16, #tpu.memory_space<vmem>>, %arg17: memref<1x1x32xf32, #tpu.memory_space<vmem>>, %arg18: memref<1x1x32xf32, #tpu.memory_space<vmem>>, %arg19: memref<1x1x32xf32, #tpu.memory_space<vmem>>, %arg20: memref<1x4x32xf32, #tpu.memory_space<vmem>>, %arg21: memref<4x32xf32, #tpu.memory_space<vmem>>) attributes {dimension_semantics = [#tpu.dimension_semantics<parallel>, #tpu.dimension_semantics<arbitrary>], iteration_bounds = array<i64: 2, 2>, scalar_prefetch = 0 : i64, scratch_operands = 1 : i64, tpu.core_type = #tpu.core_type<tc>, window_params = [{transform_indices = @transform_0, window_bounds = array<i64: 1, 4, 32>}, {transform_indices = @transform_1, window_bounds = array<i64: 1, 1, 4>}, {pipeline_mode = #tpu.pipeline_mode<synchronous>, transform_indices = @transform_2, window_bounds = array<i64: 16, 16>}, {pipeline_mode = #tpu.pipeline_mode<synchronous>, transform_indices = @transform_3, window_bounds = array<i64: 16, 32>}, {transform_indices = @transform_4, window_bounds = array<i64: 1, 32, 32>}, {transform_indices = @transform_5, window_bounds = array<i64: 1, 1, 32>}, {transform_indices = @transform_6, window_bounds = array<i64: 1, 32, 64>}, {transform_indices = @transform_7, window_bounds = array<i64: 1, 1, 64>}, {transform_indices = @transform_8, window_bounds = array<i64: 1, 32, 32>}, {transform_indices = @transform_9, window_bounds = array<i64: 1, 1, 32>}, {transform_indices = @transform_10, window_bounds = array<i64: 1, 1, 32>}, {transform_indices = @transform_11, window_bounds = array<i64: 1, 1, 32>}, {transform_indices = @transform_12, window_bounds = array<i64: 1, 32, 64>}, {transform_indices = @transform_13, window_bounds = array<i64: 1, 1, 64>}, {transform_indices = @transform_14, window_bounds = array<i64: 1, 64, 32>}, {transform_indices = @transform_15, window_bounds = array<i64: 1, 1, 32>}, {transform_indices = @transform_16, window_bounds = array<i64: 1, 1, 32>}, {transform_indices = @transform_17, window_bounds = array<i64: 1, 1, 32>}, {transform_indices = @transform_18, window_bounds = array<i64: 1, 4, 32>}]} {
    %c0_i32 = arith.constant 0 : i32
    %0 = arith.cmpi eq, %arg1, %c0_i32 : i32
    %1 = arith.extui %0 : i1 to i32
    %c0_i32_0 = arith.constant 0 : i32
    %2 = arith.cmpi ne, %1, %c0_i32_0 : i32
    scf.if %2 {
      %c0_76 = arith.constant 0 : index
      %c0_77 = arith.constant 0 : index
      %c0_78 = arith.constant 0 : index
      %133 = vector.load %arg2[%c0_76, %c0_77, %c0_78] : memref<1x4x32xf32, #tpu.memory_space<vmem>>, vector<1x4x32xf32>
      %134 = vector.shape_cast %133 : vector<1x4x32xf32> to vector<4x32xf32>
      %c0_79 = arith.constant 0 : index
      %c0_80 = arith.constant 0 : index
      %135 = vector.load %arg21[%c0_79, %c0_80] : memref<4x32xf32, #tpu.memory_space<vmem>>, vector<4x32xf32>
      tpu.vector_store %arg21[%c0_79, %c0_80], %134 {strides = array<i32>} : memref<4x32xf32, #tpu.memory_space<vmem>>, vector<4x32xf32>,
    } else {
    }
    %c0 = arith.constant 0 : index
    %c0_1 = arith.constant 0 : index
    %3 = vector.load %arg21[%c0, %c0_1] : memref<4x32xf32, #tpu.memory_space<vmem>>, vector<4x32xf32>
    %4 = arith.truncf %3 : vector<4x32xf32> to vector<4x32xbf16>
    %c0_2 = arith.constant 0 : index
    %c0_3 = arith.constant 0 : index
    %c0_4 = arith.constant 0 : index
    %5 = vector.load %arg8[%c0_2, %c0_3, %c0_4] : memref<1x32x64xbf16, #tpu.memory_space<vmem>>, vector<1x32x64xbf16>
    %6 = vector.shape_cast %5 : vector<1x32x64xbf16> to vector<32x64xbf16>
    %cst = arith.constant dense<0.000000e+00> : vector<4x64xf32>
    %7 = tpu.matmul %4, %6, %cst {dimension_numbers = #tpu.dot_dimension_numbers<[1], [0], [0], [1], [0, 0, 1, 1], [], []>} : vector<4x32xbf16>, vector<32x64xbf16>, vector<4x64xf32> -> vector<4x64xf32>
    %c0_5 = arith.constant 0 : index
    %c0_6 = arith.constant 0 : index
    %c0_7 = arith.constant 0 : index
    %8 = vector.load %arg9[%c0_5, %c0_6, %c0_7] : memref<1x1x64xf32, #tpu.memory_space<vmem>>, vector<1x1x64xf32>
    %9 = vector.shape_cast %8 : vector<1x1x64xf32> to vector<1x64xf32>
    %10 = vector.broadcast %9 : vector<1x64xf32> to vector<4x64xf32>
    %11 = arith.addf %7, %10 : vector<4x64xf32>
    %12 = vector.extract_strided_slice %11 {offsets = [0, 0], sizes = [4, 32], strides = [1, 1]} : vector<4x64xf32> to vector<4x32xf32>
    %13 = vector.extract_strided_slice %11 {offsets = [0, 32], sizes = [4, 32], strides = [1, 1]} : vector<4x64xf32> to vector<4x32xf32>
    %c0_8 = arith.constant 0 : index
    %c0_9 = arith.constant 0 : index
    %14 = vector.load %arg5[%c0_8, %c0_9] : memref<16x32xf32, #tpu.memory_space<vmem>>, vector<16x32xf32>
    %15 = tpu.concatenate %12, %12, %12, %12 in 0 : vector<4x32xf32>, vector<4x32xf32>, vector<4x32xf32>, vector<4x32xf32> -> vector<16x32xf32>
    %16 = arith.mulf %15, %14 : vector<16x32xf32>
    %17 = arith.truncf %16 : vector<16x32xf32> to vector<16x32xbf16>
    %18 = tpu.concatenate %13, %13, %13, %13 in 0 : vector<4x32xf32>, vector<4x32xf32>, vector<4x32xf32>, vector<4x32xf32> -> vector<16x32xf32>
    %19 = arith.mulf %18, %14 : vector<16x32xf32>
    %20 = arith.truncf %19 : vector<16x32xf32> to vector<16x32xbf16>
    %c0_10 = arith.constant 0 : index
    %c0_11 = arith.constant 0 : index
    %c0_12 = arith.constant 0 : index
    %21 = vector.load %arg3[%c0_10, %c0_11, %c0_12] : memref<1x1x4xf32, #tpu.memory_space<vmem>>, vector<1x1x4xf32>
    %22 = vector.shape_cast %21 : vector<1x1x4xf32> to vector<1x4xf32>
    %23 = tpu.concatenate %22, %22, %22, %22 in 1 : vector<1x4xf32>, vector<1x4xf32>, vector<1x4xf32>, vector<1x4xf32> -> vector<1x16xf32>
    %cst_13 = arith.constant 1.000000e+00 : f32
    %24 = vector.broadcast %cst_13 : f32 to vector<1x16xf32>
    %25 = arith.subf %23, %24 : vector<1x16xf32>
    %cst_14 = arith.constant 1.000000e+09 : f32
    %26 = vector.broadcast %cst_14 : f32 to vector<1x16xf32>
    %27 = arith.mulf %25, %26 : vector<1x16xf32>
    %c0_15 = arith.constant 0 : index
    %c0_16 = arith.constant 0 : index
    %c0_17 = arith.constant 0 : index
    %28 = vector.load %arg6[%c0_15, %c0_16, %c0_17] : memref<1x32x32xbf16, #tpu.memory_space<vmem>>, vector<1x32x32xbf16>
    %29 = vector.shape_cast %28 : vector<1x32x32xbf16> to vector<32x32xbf16>
    %c0_18 = arith.constant 0 : index
    %c0_19 = arith.constant 0 : index
    %c0_20 = arith.constant 0 : index
    %30 = vector.load %arg7[%c0_18, %c0_19, %c0_20] : memref<1x1x32xf32, #tpu.memory_space<vmem>>, vector<1x1x32xf32>
    %31 = vector.shape_cast %30 : vector<1x1x32xf32> to vector<1x32xf32>
    %c0_21 = arith.constant 0 : index
    %c0_22 = arith.constant 0 : index
    %c0_23 = arith.constant 0 : index
    %32 = vector.load %arg10[%c0_21, %c0_22, %c0_23] : memref<1x32x32xbf16, #tpu.memory_space<vmem>>, vector<1x32x32xbf16>
    %33 = vector.shape_cast %32 : vector<1x32x32xbf16> to vector<32x32xbf16>
    %c0_24 = arith.constant 0 : index
    %c0_25 = arith.constant 0 : index
    %c0_26 = arith.constant 0 : index
    %34 = vector.load %arg11[%c0_24, %c0_25, %c0_26] : memref<1x1x32xf32, #tpu.memory_space<vmem>>, vector<1x1x32xf32>
    %35 = vector.shape_cast %34 : vector<1x1x32xf32> to vector<1x32xf32>
    %c0_27 = arith.constant 0 : index
    %c0_28 = arith.constant 0 : index
    %c0_29 = arith.constant 0 : index
    %36 = vector.load %arg12[%c0_27, %c0_28, %c0_29] : memref<1x1x32xf32, #tpu.memory_space<vmem>>, vector<1x1x32xf32>
    %37 = vector.shape_cast %36 : vector<1x1x32xf32> to vector<1x32xf32>
    %c0_30 = arith.constant 0 : index
    %c0_31 = arith.constant 0 : index
    %c0_32 = arith.constant 0 : index
    %38 = vector.load %arg13[%c0_30, %c0_31, %c0_32] : memref<1x1x32xf32, #tpu.memory_space<vmem>>, vector<1x1x32xf32>
    %39 = vector.shape_cast %38 : vector<1x1x32xf32> to vector<1x32xf32>
    %c0_33 = arith.constant 0 : index
    %c0_34 = arith.constant 0 : index
    %c0_35 = arith.constant 0 : index
    %40 = vector.load %arg14[%c0_33, %c0_34, %c0_35] : memref<1x32x64xbf16, #tpu.memory_space<vmem>>, vector<1x32x64xbf16>
    %41 = vector.shape_cast %40 : vector<1x32x64xbf16> to vector<32x64xbf16>
    %c0_36 = arith.constant 0 : index
    %c0_37 = arith.constant 0 : index
    %c0_38 = arith.constant 0 : index
    %42 = vector.load %arg15[%c0_36, %c0_37, %c0_38] : memref<1x1x64xf32, #tpu.memory_space<vmem>>, vector<1x1x64xf32>
    %43 = vector.shape_cast %42 : vector<1x1x64xf32> to vector<1x64xf32>
    %c0_39 = arith.constant 0 : index
    %c0_40 = arith.constant 0 : index
    %c0_41 = arith.constant 0 : index
    %44 = vector.load %arg16[%c0_39, %c0_40, %c0_41] : memref<1x64x32xbf16, #tpu.memory_space<vmem>>, vector<1x64x32xbf16>
    %45 = vector.shape_cast %44 : vector<1x64x32xbf16> to vector<64x32xbf16>
    %c0_42 = arith.constant 0 : index
    %c0_43 = arith.constant 0 : index
    %c0_44 = arith.constant 0 : index
    %46 = vector.load %arg17[%c0_42, %c0_43, %c0_44] : memref<1x1x32xf32, #tpu.memory_space<vmem>>, vector<1x1x32xf32>
    %47 = vector.shape_cast %46 : vector<1x1x32xf32> to vector<1x32xf32>
    %c0_45 = arith.constant 0 : index
    %c0_46 = arith.constant 0 : index
    %c0_47 = arith.constant 0 : index
    %48 = vector.load %arg18[%c0_45, %c0_46, %c0_47] : memref<1x1x32xf32, #tpu.memory_space<vmem>>, vector<1x1x32xf32>
    %49 = vector.shape_cast %48 : vector<1x1x32xf32> to vector<1x32xf32>
    %c0_48 = arith.constant 0 : index
    %c0_49 = arith.constant 0 : index
    %c0_50 = arith.constant 0 : index
    %50 = vector.load %arg19[%c0_48, %c0_49, %c0_50] : memref<1x1x32xf32, #tpu.memory_space<vmem>>, vector<1x1x32xf32>
    %51 = vector.shape_cast %50 : vector<1x1x32xf32> to vector<1x32xf32>
    %c0_51 = arith.constant 0 : index
    %c0_52 = arith.constant 0 : index
    %52 = vector.load %arg4[%c0_51, %c0_52] : memref<16x16xf32, #tpu.memory_space<vmem>>, vector<16x16xf32>
    %53 = arith.truncf %3 : vector<4x32xf32> to vector<4x32xbf16>
    %cst_53 = arith.constant dense<0.000000e+00> : vector<4x32xf32>
    %54 = tpu.matmul %53, %29, %cst_53 {dimension_numbers = #tpu.dot_dimension_numbers<[1], [0], [0], [1], [0, 0, 1, 1], [], []>} : vector<4x32xbf16>, vector<32x32xbf16>, vector<4x32xf32> -> vector<4x32xf32>
    %55 = vector.broadcast %31 : vector<1x32xf32> to vector<4x32xf32>
    %56 = arith.addf %54, %55 : vector<4x32xf32>
    %57 = arith.truncf %56 : vector<4x32xf32> to vector<4x32xbf16>
    %cst_54 = arith.constant dense<0.000000e+00> : vector<4x16xf32>
    %58 = tpu.matmul %57, %17, %cst_54 {dimension_numbers = #tpu.dot_dimension_numbers<[1], [1], [0], [0], [0, 0, 1, 0], [], []>} : vector<4x32xbf16>, vector<16x32xbf16>, vector<4x16xf32> -> vector<4x16xf32>
    %cst_55 = arith.constant 0.353553385 : f32
    %59 = vector.broadcast %cst_55 : f32 to vector<4x16xf32>
    %60 = arith.mulf %58, %59 : vector<4x16xf32>
    %61 = vector.broadcast %27 : vector<1x16xf32> to vector<4x16xf32>
    %62 = arith.addf %60, %61 : vector<4x16xf32>
    %cst_56 = arith.constant dense<0xFF800000> : vector<4xf32>
    %63 = vector.multi_reduction <maximumf>, %62, %cst_56 [1] : vector<4x16xf32> to vector<4xf32>
    %64 = vector.shape_cast %63 : vector<4xf32> to vector<4x1xf32>
    %65 = vector.broadcast %64 : vector<4x1xf32> to vector<4x16xf32>
    %66 = arith.subf %62, %65 : vector<4x16xf32>
    %67 = math.exp %66 : vector<4x16xf32>
    %cst_57 = arith.constant dense<0.000000e+00> : vector<4x16xf32>
    %68 = tpu.matmul %67, %52, %cst_57 {dimension_numbers = #tpu.dot_dimension_numbers<[1], [0], [0], [1], [0, 0, 1, 1], [], []>} : vector<4x16xf32>, vector<16x16xf32>, vector<4x16xf32> -> vector<4x16xf32>
    %69 = tpu.reciprocal %68 {approx = true} : vector<4x16xf32> -> vector<4x16xf32>
    %70 = arith.mulf %67, %69 : vector<4x16xf32>
    %71 = arith.truncf %70 : vector<4x16xf32> to vector<4x16xbf16>
    %cst_58 = arith.constant dense<0.000000e+00> : vector<4x32xf32>
    %72 = tpu.matmul %71, %20, %cst_58 {dimension_numbers = #tpu.dot_dimension_numbers<[1], [0], [0], [1], [0, 0, 1, 1], [], []>} : vector<4x16xbf16>, vector<16x32xbf16>, vector<4x32xf32> -> vector<4x32xf32>
    %73 = arith.truncf %72 : vector<4x32xf32> to vector<4x32xbf16>
    %cst_59 = arith.constant dense<0.000000e+00> : vector<4x32xf32>
    %74 = tpu.matmul %73, %33, %cst_59 {dimension_numbers = #tpu.dot_dimension_numbers<[1], [0], [0], [1], [0, 0, 1, 1], [], []>} : vector<4x32xbf16>, vector<32x32xbf16>, vector<4x32xf32> -> vector<4x32xf32>
    %75 = vector.broadcast %35 : vector<1x32xf32> to vector<4x32xf32>
    %76 = arith.addf %74, %75 : vector<4x32xf32>
    %77 = arith.addf %76, %3 : vector<4x32xf32>
    %cst_60 = arith.constant dense<0.000000e+00> : vector<4xf32>
    %78 = vector.multi_reduction <add>, %77, %cst_60 [1] : vector<4x32xf32> to vector<4xf32>
    %79 = vector.shape_cast %78 : vector<4xf32> to vector<4x1xf32>
    %cst_61 = arith.constant 3.200000e+01 : f32
    %80 = vector.broadcast %cst_61 : f32 to vector<4x1xf32>
    %81 = arith.divf %79, %80 : vector<4x1xf32>
    %82 = vector.broadcast %81 : vector<4x1xf32> to vector<4x32xf32>
    %83 = arith.subf %77, %82 : vector<4x32xf32>
    %84 = arith.mulf %83, %83 : vector<4x32xf32>
    %cst_62 = arith.constant dense<0.000000e+00> : vector<4xf32>
    %85 = vector.multi_reduction <add>, %84, %cst_62 [1] : vector<4x32xf32> to vector<4xf32>
    %86 = vector.shape_cast %85 : vector<4xf32> to vector<4x1xf32>
    %cst_63 = arith.constant 3.200000e+01 : f32
    %87 = vector.broadcast %cst_63 : f32 to vector<4x1xf32>
    %88 = arith.divf %86, %87 : vector<4x1xf32>
    %cst_64 = arith.constant 9.99999974E-6 : f32
    %89 = vector.broadcast %cst_64 : f32 to vector<4x1xf32>
    %90 = arith.addf %88, %89 : vector<4x1xf32>
    %91 = math.rsqrt %90 : vector<4x1xf32>
    %92 = vector.broadcast %91 : vector<4x1xf32> to vector<4x32xf32>
    %93 = arith.mulf %83, %92 : vector<4x32xf32>
    %94 = vector.broadcast %37 : vector<1x32xf32> to vector<4x32xf32>
    %95 = arith.mulf %93, %94 : vector<4x32xf32>
    %96 = vector.broadcast %39 : vector<1x32xf32> to vector<4x32xf32>
    %97 = arith.addf %95, %96 : vector<4x32xf32>
    %98 = arith.truncf %97 : vector<4x32xf32> to vector<4x32xbf16>
    %cst_65 = arith.constant dense<0.000000e+00> : vector<4x64xf32>
    %99 = tpu.matmul %98, %41, %cst_65 {dimension_numbers = #tpu.dot_dimension_numbers<[1], [0], [0], [1], [0, 0, 1, 1], [], []>} : vector<4x32xbf16>, vector<32x64xbf16>, vector<4x64xf32> -> vector<4x64xf32>
    %100 = vector.broadcast %43 : vector<1x64xf32> to vector<4x64xf32>
    %101 = arith.addf %99, %100 : vector<4x64xf32>
    %cst_66 = arith.constant 0.000000e+00 : f32
    %102 = vector.broadcast %cst_66 : f32 to vector<4x64xf32>
    %103 = arith.maximumf %101, %102 : vector<4x64xf32>
    %104 = arith.truncf %103 : vector<4x64xf32> to vector<4x64xbf16>
    %cst_67 = arith.constant dense<0.000000e+00> : vector<4x32xf32>
    %105 = tpu.matmul %104, %45, %cst_67 {dimension_numbers = #tpu.dot_dimension_numbers<[1], [0], [0], [1], [0, 0, 1, 1], [], []>} : vector<4x64xbf16>, vector<64x32xbf16>, vector<4x32xf32> -> vector<4x32xf32>
    %106 = vector.broadcast %47 : vector<1x32xf32> to vector<4x32xf32>
    %107 = arith.addf %105, %106 : vector<4x32xf32>
    %108 = arith.addf %107, %97 : vector<4x32xf32>
    %cst_68 = arith.constant dense<0.000000e+00> : vector<4xf32>
    %109 = vector.multi_reduction <add>, %108, %cst_68 [1] : vector<4x32xf32> to vector<4xf32>
    %110 = vector.shape_cast %109 : vector<4xf32> to vector<4x1xf32>
    %cst_69 = arith.constant 3.200000e+01 : f32
    %111 = vector.broadcast %cst_69 : f32 to vector<4x1xf32>
    %112 = arith.divf %110, %111 : vector<4x1xf32>
    %113 = vector.broadcast %112 : vector<4x1xf32> to vector<4x32xf32>
    %114 = arith.subf %108, %113 : vector<4x32xf32>
    %115 = arith.mulf %114, %114 : vector<4x32xf32>
    %cst_70 = arith.constant dense<0.000000e+00> : vector<4xf32>
    %116 = vector.multi_reduction <add>, %115, %cst_70 [1] : vector<4x32xf32> to vector<4xf32>
    %117 = vector.shape_cast %116 : vector<4xf32> to vector<4x1xf32>
    %cst_71 = arith.constant 3.200000e+01 : f32
    %118 = vector.broadcast %cst_71 : f32 to vector<4x1xf32>
    %119 = arith.divf %117, %118 : vector<4x1xf32>
    %cst_72 = arith.constant 9.99999974E-6 : f32
    %120 = vector.broadcast %cst_72 : f32 to vector<4x1xf32>
    %121 = arith.addf %119, %120 : vector<4x1xf32>
    %122 = math.rsqrt %121 : vector<4x1xf32>
    %123 = vector.broadcast %122 : vector<4x1xf32> to vector<4x32xf32>
    %124 = arith.mulf %114, %123 : vector<4x32xf32>
    %125 = vector.broadcast %49 : vector<1x32xf32> to vector<4x32xf32>
    %126 = arith.mulf %124, %125 : vector<4x32xf32>
    %127 = vector.broadcast %51 : vector<1x32xf32> to vector<4x32xf32>
    %128 = arith.addf %126, %127 : vector<4x32xf32>
    %c0_73 = arith.constant 0 : index
    %c0_74 = arith.constant 0 : index
    %129 = vector.load %arg21[%c0_73, %c0_74] : memref<4x32xf32, #tpu.memory_space<vmem>>, vector<4x32xf32>
    tpu.vector_store %arg21[%c0_73, %c0_74], %128 {strides = array<i32>} : memref<4x32xf32, #tpu.memory_space<vmem>>, vector<4x32xf32>,
    %c1_i32 = arith.constant 1 : i32
    %130 = arith.cmpi eq, %arg1, %c1_i32 : i32
    %131 = arith.extui %130 : i1 to i32
    %c0_i32_75 = arith.constant 0 : i32
    %132 = arith.cmpi ne, %131, %c0_i32_75 : i32
    scf.if %132 {
      %c0_76 = arith.constant 0 : index
      %c0_77 = arith.constant 0 : index
      %c0_78 = arith.constant 0 : index
      %133 = vector.load %arg20[%c0_76, %c0_77, %c0_78] : memref<1x4x32xf32, #tpu.memory_space<vmem>>, vector<1x4x32xf32>
      %134 = vector.shape_cast %133 : vector<1x4x32xf32> to vector<4x32xf32>
      %135 = vector.shape_cast %128 : vector<4x32xf32> to vector<1x4x32xf32>
      tpu.vector_store %arg20[%c0_76, %c0_77, %c0_78], %135 {strides = array<i32>} : memref<1x4x32xf32, #tpu.memory_space<vmem>>, vector<1x4x32xf32>,
    } else {
    }
    return
  }
  func.func @transform_0(%arg0: i32, %arg1: i32) -> (i32, i32, i32) {
    %c0_i32 = arith.constant 0 : i32
    %c0_i32_0 = arith.constant 0 : i32
    %c0_i32_1 = arith.constant 0 : i32
    return %arg0, %c0_i32, %c0_i32_0 : i32, i32, i32
  }
  func.func @transform_1(%arg0: i32, %arg1: i32) -> (i32, i32, i32) {
    %c0_i32 = arith.constant 0 : i32
    %c0_i32_0 = arith.constant 0 : i32
    %c0_i32_1 = arith.constant 0 : i32
    return %arg0, %c0_i32, %c0_i32_0 : i32, i32, i32
  }
  func.func @transform_2(%arg0: i32, %arg1: i32) -> (i32, i32) {
    %c0_i32 = arith.constant 0 : i32
    %c0_i32_0 = arith.constant 0 : i32
    %c0_i32_1 = arith.constant 0 : i32
    return %c0_i32, %c0_i32_0 : i32, i32
  }
  func.func @transform_3(%arg0: i32, %arg1: i32) -> (i32, i32) {
    %c0_i32 = arith.constant 0 : i32
    %c0_i32_0 = arith.constant 0 : i32
    %c0_i32_1 = arith.constant 0 : i32
    return %c0_i32, %c0_i32_0 : i32, i32
  }
  func.func @transform_4(%arg0: i32, %arg1: i32) -> (i32, i32, i32) {
    %c0_i32 = arith.constant 0 : i32
    %c0_i32_0 = arith.constant 0 : i32
    %c0_i32_1 = arith.constant 0 : i32
    return %arg1, %c0_i32, %c0_i32_0 : i32, i32, i32
  }
  func.func @transform_5(%arg0: i32, %arg1: i32) -> (i32, i32, i32) {
    %c0_i32 = arith.constant 0 : i32
    %c0_i32_0 = arith.constant 0 : i32
    %c0_i32_1 = arith.constant 0 : i32
    return %arg1, %c0_i32, %c0_i32_0 : i32, i32, i32
  }
  func.func @transform_6(%arg0: i32, %arg1: i32) -> (i32, i32, i32) {
    %c0_i32 = arith.constant 0 : i32
    %c0_i32_0 = arith.constant 0 : i32
    %c0_i32_1 = arith.constant 0 : i32
    return %arg1, %c0_i32, %c0_i32_0 : i32, i32, i32
  }
  func.func @transform_7(%arg0: i32, %arg1: i32) -> (i32, i32, i32) {
    %c0_i32 = arith.constant 0 : i32
    %c0_i32_0 = arith.constant 0 : i32
    %c0_i32_1 = arith.constant 0 : i32
    return %arg1, %c0_i32, %c0_i32_0 : i32, i32, i32
  }
  func.func @transform_8(%arg0: i32, %arg1: i32) -> (i32, i32, i32) {
    %c0_i32 = arith.constant 0 : i32
    %c0_i32_0 = arith.constant 0 : i32
    %c0_i32_1 = arith.constant 0 : i32
    return %arg1, %c0_i32, %c0_i32_0 : i32, i32, i32
  }
  func.func @transform_9(%arg0: i32, %arg1: i32) -> (i32, i32, i32) {
    %c0_i32 = arith.constant 0 : i32
    %c0_i32_0 = arith.constant 0 : i32
    %c0_i32_1 = arith.constant 0 : i32
    return %arg1, %c0_i32, %c0_i32_0 : i32, i32, i32
  }
  func.func @transform_10(%arg0: i32, %arg1: i32) -> (i32, i32, i32) {
    %c0_i32 = arith.constant 0 : i32
    %c0_i32_0 = arith.constant 0 : i32
    %c0_i32_1 = arith.constant 0 : i32
    return %arg1, %c0_i32, %c0_i32_0 : i32, i32, i32
  }
  func.func @transform_11(%arg0: i32, %arg1: i32) -> (i32, i32, i32) {
    %c0_i32 = arith.constant 0 : i32
    %c0_i32_0 = arith.constant 0 : i32
    %c0_i32_1 = arith.constant 0 : i32
    return %arg1, %c0_i32, %c0_i32_0 : i32, i32, i32
  }
  func.func @transform_12(%arg0: i32, %arg1: i32) -> (i32, i32, i32) {
    %c0_i32 = arith.constant 0 : i32
    %c0_i32_0 = arith.constant 0 : i32
    %c0_i32_1 = arith.constant 0 : i32
    return %arg1, %c0_i32, %c0_i32_0 : i32, i32, i32
  }
  func.func @transform_13(%arg0: i32, %arg1: i32) -> (i32, i32, i32) {
    %c0_i32 = arith.constant 0 : i32
    %c0_i32_0 = arith.constant 0 : i32
    %c0_i32_1 = arith.constant 0 : i32
    return %arg1, %c0_i32, %c0_i32_0 : i32, i32, i32
  }
  func.func @transform_14(%arg0: i32, %arg1: i32) -> (i32, i32, i32) {
    %c0_i32 = arith.constant 0 : i32
    %c0_i32_0 = arith.constant 0 : i32
    %c0_i32_1 = arith.constant 0 : i32
    return %arg1, %c0_i32, %c0_i32_0 : i32, i32, i32
  }
  func.func @transform_15(%arg0: i32, %arg1: i32) -> (i32, i32, i32) {
    %c0_i32 = arith.constant 0 : i32
    %c0_i32_0 = arith.constant 0 : i32
    %c0_i32_1 = arith.constant 0 : i32
    return %arg1, %c0_i32, %c0_i32_0 : i32, i32, i32
  }
  func.func @transform_16(%arg0: i32, %arg1: i32) -> (i32, i32, i32) {
    %c0_i32 = arith.constant 0 : i32
    %c0_i32_0 = arith.constant 0 : i32
    %c0_i32_1 = arith.constant 0 : i32
    return %arg1, %c0_i32, %c0_i32_0 : i32, i32, i32
  }
  func.func @transform_17(%arg0: i32, %arg1: i32) -> (i32, i32, i32) {
    %c0_i32 = arith.constant 0 : i32
    %c0_i32_0 = arith.constant 0 : i32
    %c0_i32_1 = arith.constant 0 : i32
    return %arg1, %c0_i32, %c0_i32_0 : i32, i32, i32
  }
  func.func @transform_18(%arg0: i32, %arg1: i32) -> (i32, i32, i32) {
    %c0_i32 = arith.constant 0 : i32
    %c0_i32_0 = arith.constant 0 : i32
    %c0_i32_1 = arith.constant 0 : i32
    return %arg0, %c0_i32, %c0_i32_0 : i32, i32, i32
  }
}

</mosaic_0001>

<llo_original>
// kernel: _lambda_.3
$region0: #{_lambda_.3}
  #allocation0 [shape = 'u32[]', space=smem, size = 0x4, offset = 0x4, fixed_abs, tag = 'smem constant byte address 0x4 - core index']
  #allocation1 [shape = 'u32[144,128]{1,0:T(1,128)}', space=vmem, size = 0x12000, scoped, tag = 'internal scratch']
  #allocation2 [shape = 'f32[4,32]{1,0:T(4,128)}', space=vmem, size = 0x800, scoped, tag = 'scratch operand']
  %s0 = inlined_call_operand.vmem [shape: f32[2,4,32], index: 0, kind: input, shape index: {}]
  %s1 = inlined_call_operand.vmem [shape: f32[2,1,4], index: 1, kind: input, shape index: {}]
  %s2 = inlined_call_operand.vmem [shape: f32[16,16], index: 2, kind: input, shape index: {}]
  %s3 = inlined_call_operand.vmem [shape: f32[16,32], index: 3, kind: input, shape index: {}]
  %s4 = inlined_call_operand.vmem [shape: bf16[2,32,32], index: 4, kind: input, shape index: {}]
  %s5 = inlined_call_operand.vmem [shape: f32[2,1,32], index: 5, kind: input, shape index: {}]
  %s6 = inlined_call_operand.vmem [shape: bf16[2,32,64], index: 6, kind: input, shape index: {}]
  %s7 = inlined_call_operand.vmem [shape: f32[2,1,64], index: 7, kind: input, shape index: {}]
  %s8 = inlined_call_operand.vmem [shape: bf16[2,32,32], index: 8, kind: input, shape index: {}]
  %s9 = inlined_call_operand.vmem [shape: f32[2,1,32], index: 9, kind: input, shape index: {}]
  %s10 = inlined_call_operand.vmem [shape: f32[2,1,32], index: 10, kind: input, shape index: {}]
  %s11 = inlined_call_operand.vmem [shape: f32[2,1,32], index: 11, kind: input, shape index: {}]
  %s12 = inlined_call_operand.vmem [shape: bf16[2,32,64], index: 12, kind: input, shape index: {}]
  %s13 = inlined_call_operand.vmem [shape: f32[2,1,64], index: 13, kind: input, shape index: {}]
  %s14 = inlined_call_operand.vmem [shape: bf16[2,64,32], index: 14, kind: input, shape index: {}]
  %s15 = inlined_call_operand.vmem [shape: f32[2,1,32], index: 15, kind: input, shape index: {}]
  %s16 = inlined_call_operand.vmem [shape: f32[2,1,32], index: 16, kind: input, shape index: {}]
  %s17 = inlined_call_operand.vmem [shape: f32[2,1,32], index: 17, kind: input, shape index: {}]
  %s18 = inlined_call_operand.hbm [shape: f32[2,4,32], index: 18, kind: output, shape index: {}]
  %s19 = sld [smem:[#allocation0]]
  $region113: #{_lambda_.3} parent=0
    _
  %s21 = ssub.s32 1, %s19
  %s22 = scalar_select 0, %s21, %s19
  $region1: #{_lambda_.3} parent=0
    #allocation3 [shape = 'u8[4096]{0}', space=vmem, size = 0x1000, scoped, tag = 'output window, operand 0']
    #allocation4 [shape = 's32[2]{0}', space=sflag, size = 0x8, scoped, tag = 'scoped memory for _lambda_.3']
    %23 = vsyncpa [#allocation4], 0
    %s24 = scalar_lea.sflag [#allocation4], 1
    %25 = vsyncpa %s24, 0
    loop: start=0, step=1, limit=6
    $region2: #{_lambda_.3} parent=1 // loop_pre_header
      _
    $region3: #{_lambda_.3} parent=1 // loop_header
      %s27 = sphi 0, %s31
      %p28 = scmp.ge.s32.totalorder %s27, 6
      %s34 = sphi 0, %s46
      %s35 = sphi 0, %s42
      %s36 = sphi 0, %s34
      %s37 = sphi 0, %s35
      %s38 = sphi 0, %s36
      %s39 = sphi 0, %s37
      %s49 = sphi 0, %s51
      %s52 = sphi 0, %s49
      %s53 = sphi 0, %s52
      %s69 = sphi 0, %s53
      %s75 = sphi 0, %s77
      %s78 = sphi 0, %s75
      %s79 = sphi 0, %s78
      %s95 = sphi 0, %s79
      %s99 = sphi 0, %s99
      %s101 = sphi 0, %s99
      %s102 = sphi 0, %s101
      %s116 = sphi 0, %s102
      %s120 = sphi 0, %s120
      %s122 = sphi 0, %s120
      %s123 = sphi 0, %s122
      %s137 = sphi 0, %s123
      %s143 = sphi 0, %s145
      %s146 = sphi 0, %s143
      %s147 = sphi 0, %s146
      %s163 = sphi 0, %s147
      %s169 = sphi 0, %s171
      %s172 = sphi 0, %s169
      %s173 = sphi 0, %s172
      %s189 = sphi 0, %s173
      %s195 = sphi 0, %s197
      %s198 = sphi 0, %s195
      %s199 = sphi 0, %s198
      %s215 = sphi 0, %s199
      %s221 = sphi 0, %s223
      %s224 = sphi 0, %s221
      %s225 = sphi 0, %s224
      %s241 = sphi 0, %s225
      %s247 = sphi 0, %s249
      %s250 = sphi 0, %s247
      %s251 = sphi 0, %s250
      %s267 = sphi 0, %s251
      %s273 = sphi 0, %s275
      %s276 = sphi 0, %s273
      %s277 = sphi 0, %s276
      %s293 = sphi 0, %s277
      %s299 = sphi 0, %s301
      %s302 = sphi 0, %s299
      %s303 = sphi 0, %s302
      %s319 = sphi 0, %s303
      %s325 = sphi 0, %s327
      %s328 = sphi 0, %s325
      %s329 = sphi 0, %s328
      %s345 = sphi 0, %s329
      %s351 = sphi 0, %s353
      %s354 = sphi 0, %s351
      %s355 = sphi 0, %s354
      %s371 = sphi 0, %s355
      %s377 = sphi 0, %s379
      %s380 = sphi 0, %s377
      %s381 = sphi 0, %s380
      %s397 = sphi 0, %s381
      %s403 = sphi 0, %s405
      %s406 = sphi 0, %s403
      %s407 = sphi 0, %s406
      %s423 = sphi 0, %s407
      %s429 = sphi 0, %s431
      %s432 = sphi 0, %s429
      %s433 = sphi 0, %s432
      %s449 = sphi 0, %s433
      %s455 = sphi 0, %s457
      %s458 = sphi 0, %s455
      %s459 = sphi 0, %s458
      %s475 = sphi 0, %s459
      %s481 = sphi 0, %s483
      %s484 = sphi 0, %s481
      %s485 = sphi 0, %s484
      %s501 = sphi 0, %s485
      %s507 = sphi 0, %s509
      %s510 = sphi 0, %s507
      %s511 = sphi 0, %s510
      %s527 = sphi 0, %s511
    $region4: #{_lambda_.3} parent=1 // loop_header_branch
      %30 = sbr.rel (%p28) target = $region8
    $region5: #{_lambda_.3} parent=1 // loop_body
      %s32 = ssub.s32 %s27, 1
      %s33 = ssub.s32 %s27, 2
      %s40 = sadd.s32 1, %s35
      %p41 = scmp.ge.s32.totalorder %s40, 2
      %s42 = scalar_select %p41, 0, %s40
      %s43 = sadd.s32 1, %s34
      %s44 = scalar_select %p41, %s43, %s34
      %p45 = scmp.ge.s32.totalorder %s44, 2
      %s46 = scalar_select %p45, 0, %s44
      %s47 = ssub.s32 %s34, %s46
      %p48 = scmp.eq.s32.totalorder %s47, 0
      %s50 = sadd.s32 %s49, 1
      %s51 = scalar_select %p48, %s49, %s50
      %p54 = pneg %p48
      %p55 = scmp.eq.s32.totalorder %s27, 3
      %p56 = por %p54, %p55
      %p57 = scmp.ne.s32.totalorder %s49, %s52
      %p58 = scmp.eq.s32.totalorder %s27, 0
      %p59 = por %p57, %p58
      %p60 = scmp.ne.s32.totalorder %s49, %s52
      %p61 = scmp.eq.s32.totalorder %s32, 3
      %p62 = por %p60, %p61
      %p63 = scmp.ne.s32.totalorder %s52, %s53
      %p64 = scmp.eq.s32.totalorder %s32, 0
      %p65 = por %p63, %p64
      %p66 = scmp.ne.s32.totalorder %s52, %s53
      %p67 = scmp.eq.s32.totalorder %s33, 3
      %p68 = por %p66, %p67
      %p70 = scmp.ne.s32.totalorder %s53, %s69
      %p71 = scmp.eq.s32.totalorder %s33, 0
      %p72 = por %p70, %p71
      %s73 = ssub.s32 %s34, %s46
      %p74 = scmp.eq.s32.totalorder %s73, 0
      %s76 = sadd.s32 %s75, 1
      %s77 = scalar_select %p74, %s75, %s76
      %p80 = pneg %p74
      %p81 = scmp.eq.s32.totalorder %s27, 3
      %p82 = por %p80, %p81
      %p83 = scmp.ne.s32.totalorder %s75, %s78
      %p84 = scmp.eq.s32.totalorder %s27, 0
      %p85 = por %p83, %p84
      %p86 = scmp.ne.s32.totalorder %s75, %s78
      %p87 = scmp.eq.s32.totalorder %s32, 3
      %p88 = por %p86, %p87
      %p89 = scmp.ne.s32.totalorder %s78, %s79
      %p90 = scmp.eq.s32.totalorder %s32, 0
      %p91 = por %p89, %p90
      %p92 = scmp.ne.s32.totalorder %s78, %s79
      %p93 = scmp.eq.s32.totalorder %s33, 3
      %p94 = por %p92, %p93
      %p96 = scmp.ne.s32.totalorder %s79, %s95
      %p97 = scmp.eq.s32.totalorder %s33, 0
      %p98 = por %p96, %p97
      %s100 = sadd.s32 %s99, 1
      %p103 = scmp.eq.s32.totalorder %s27, 3
      %p104 = scmp.ne.s32.totalorder %s99, %s101
      %p105 = scmp.eq.s32.totalorder %s27, 0
      %p106 = por %p104, %p105
      %p107 = scmp.ne.s32.totalorder %s99, %s101
      %p108 = scmp.eq.s32.totalorder %s32, 3
      %p109 = por %p107, %p108
      %p110 = scmp.ne.s32.totalorder %s101, %s102
      %p111 = scmp.eq.s32.totalorder %s32, 0
      %p112 = por %p110, %p111
      %p113 = scmp.ne.s32.totalorder %s101, %s102
      %p114 = scmp.eq.s32.totalorder %s33, 3
      %p115 = por %p113, %p114
      %p117 = scmp.ne.s32.totalorder %s102, %s116
      %p118 = scmp.eq.s32.totalorder %s33, 0
      %p119 = por %p117, %p118
      %s121 = sadd.s32 %s120, 1
      %p124 = scmp.eq.s32.totalorder %s27, 3
      %p125 = scmp.ne.s32.totalorder %s120, %s122
      %p126 = scmp.eq.s32.totalorder %s27, 0
      %p127 = por %p125, %p126
      %p128 = scmp.ne.s32.totalorder %s120, %s122
      %p129 = scmp.eq.s32.totalorder %s32, 3
      %p130 = por %p128, %p129
      %p131 = scmp.ne.s32.totalorder %s122, %s123
      %p132 = scmp.eq.s32.totalorder %s32, 0
      %p133 = por %p131, %p132
      %p134 = scmp.ne.s32.totalorder %s122, %s123
      %p135 = scmp.eq.s32.totalorder %s33, 3
      %p136 = por %p134, %p135
      %p138 = scmp.ne.s32.totalorder %s123, %s137
      %p139 = scmp.eq.s32.totalorder %s33, 0
      %p140 = por %p138, %p139
      %s141 = ssub.s32 %s35, %s42
      %p142 = scmp.eq.s32.totalorder %s141, 0
      %s144 = sadd.s32 %s143, 1
      %s145 = scalar_select %p142, %s143, %s144
      %p148 = pneg %p142
      %p149 = scmp.eq.s32.totalorder %s27, 3
      %p150 = por %p148, %p149
      %p151 = scmp.ne.s32.totalorder %s143, %s146
      %p152 = scmp.eq.s32.totalorder %s27, 0
      %p153 = por %p151, %p152
      %p154 = scmp.ne.s32.totalorder %s143, %s146
      %p155 = scmp.eq.s32.totalorder %s32, 3
      %p156 = por %p154, %p155
      %p157 = scmp.ne.s32.totalorder %s146, %s147
      %p158 = scmp.eq.s32.totalorder %s32, 0
      %p159 = por %p157, %p158
      %p160 = scmp.ne.s32.totalorder %s146, %s147
      %p161 = scmp.eq.s32.totalorder %s33, 3
      %p162 = por %p160, %p161
      %p164 = scmp.ne.s32.totalorder %s147, %s163
      %p165 = scmp.eq.s32.totalorder %s33, 0
      %p166 = por %p164, %p165
      %s167 = ssub.s32 %s35, %s42
      %p168 = scmp.eq.s32.totalorder %s167, 0
      %s170 = sadd.s32 %s169, 1
      %s171 = scalar_select %p168, %s169, %s170
      %p174 = pneg %p168
      %p175 = scmp.eq.s32.totalorder %s27, 3
      %p176 = por %p174, %p175
      %p177 = scmp.ne.s32.totalorder %s169, %s172
      %p178 = scmp.eq.s32.totalorder %s27, 0
      %p179 = por %p177, %p178
      %p180 = scmp.ne.s32.totalorder %s169, %s172
      %p181 = scmp.eq.s32.totalorder %s32, 3
      %p182 = por %p180, %p181
      %p183 = scmp.ne.s32.totalorder %s172, %s173
      %p184 = scmp.eq.s32.totalorder %s32, 0
      %p185 = por %p183, %p184
      %p186 = scmp.ne.s32.totalorder %s172, %s173
      %p187 = scmp.eq.s32.totalorder %s33, 3
      %p188 = por %p186, %p187
      %p190 = scmp.ne.s32.totalorder %s173, %s189
      %p191 = scmp.eq.s32.totalorder %s33, 0
      %p192 = por %p190, %p191
      %s193 = ssub.s32 %s35, %s42
      %p194 = scmp.eq.s32.totalorder %s193, 0
      %s196 = sadd.s32 %s195, 1
      %s197 = scalar_select %p194, %s195, %s196
      %p200 = pneg %p194
      %p201 = scmp.eq.s32.totalorder %s27, 3
      %p202 = por %p200, %p201
      %p203 = scmp.ne.s32.totalorder %s195, %s198
      %p204 = scmp.eq.s32.totalorder %s27, 0
      %p205 = por %p203, %p204
      %p206 = scmp.ne.s32.totalorder %s195, %s198
      %p207 = scmp.eq.s32.totalorder %s32, 3
      %p208 = por %p206, %p207
      %p209 = scmp.ne.s32.totalorder %s198, %s199
      %p210 = scmp.eq.s32.totalorder %s32, 0
      %p211 = por %p209, %p210
      %p212 = scmp.ne.s32.totalorder %s198, %s199
      %p213 = scmp.eq.s32.totalorder %s33, 3
      %p214 = por %p212, %p213
      %p216 = scmp.ne.s32.totalorder %s199, %s215
      %p217 = scmp.eq.s32.totalorder %s33, 0
      %p218 = por %p216, %p217
      %s219 = ssub.s32 %s35, %s42
      %p220 = scmp.eq.s32.totalorder %s219, 0
      %s222 = sadd.s32 %s221, 1
      %s223 = scalar_select %p220, %s221, %s222
      %p226 = pneg %p220
      %p227 = scmp.eq.s32.totalorder %s27, 3
      %p228 = por %p226, %p227
      %p229 = scmp.ne.s32.totalorder %s221, %s224
      %p230 = scmp.eq.s32.totalorder %s27, 0
      %p231 = por %p229, %p230
      %p232 = scmp.ne.s32.totalorder %s221, %s224
      %p233 = scmp.eq.s32.totalorder %s32, 3
      %p234 = por %p232, %p233
      %p235 = scmp.ne.s32.totalorder %s224, %s225
      %p236 = scmp.eq.s32.totalorder %s32, 0
      %p237 = por %p235, %p236
      %p238 = scmp.ne.s32.totalorder %s224, %s225
      %p239 = scmp.eq.s32.totalorder %s33, 3
      %p240 = por %p238, %p239
      %p242 = scmp.ne.s32.totalorder %s225, %s241
      %p243 = scmp.eq.s32.totalorder %s33, 0
      %p244 = por %p242, %p243
      %s245 = ssub.s32 %s35, %s42
      %p246 = scmp.eq.s32.totalorder %s245, 0
      %s248 = sadd.s32 %s247, 1
      %s249 = scalar_select %p246, %s247, %s248
      %p252 = pneg %p246
      %p253 = scmp.eq.s32.totalorder %s27, 3
      %p254 = por %p252, %p253
      %p255 = scmp.ne.s32.totalorder %s247, %s250
      %p256 = scmp.eq.s32.totalorder %s27, 0
      %p257 = por %p255, %p256
      %p258 = scmp.ne.s32.totalorder %s247, %s250
      %p259 = scmp.eq.s32.totalorder %s32, 3
      %p260 = por %p258, %p259
      %p261 = scmp.ne.s32.totalorder %s250, %s251
      %p262 = scmp.eq.s32.totalorder %s32, 0
      %p263 = por %p261, %p262
      %p264 = scmp.ne.s32.totalorder %s250, %s251
      %p265 = scmp.eq.s32.totalorder %s33, 3
      %p266 = por %p264, %p265
      %p268 = scmp.ne.s32.totalorder %s251, %s267
      %p269 = scmp.eq.s32.totalorder %s33, 0
      %p270 = por %p268, %p269
      %s271 = ssub.s32 %s35, %s42
      %p272 = scmp.eq.s32.totalorder %s271, 0
      %s274 = sadd.s32 %s273, 1
      %s275 = scalar_select %p272, %s273, %s274
      %p278 = pneg %p272
      %p279 = scmp.eq.s32.totalorder %s27, 3
      %p280 = por %p278, %p279
      %p281 = scmp.ne.s32.totalorder %s273, %s276
      %p282 = scmp.eq.s32.totalorder %s27, 0
      %p283 = por %p281, %p282
      %p284 = scmp.ne.s32.totalorder %s273, %s276
      %p285 = scmp.eq.s32.totalorder %s32, 3
      %p286 = por %p284, %p285
      %p287 = scmp.ne.s32.totalorder %s276, %s277
      %p288 = scmp.eq.s32.totalorder %s32, 0
      %p289 = por %p287, %p288
      %p290 = scmp.ne.s32.totalorder %s276, %s277
      %p291 = scmp.eq.s32.totalorder %s33, 3
      %p292 = por %p290, %p291
      %p294 = scmp.ne.s32.totalorder %s277, %s293
      %p295 = scmp.eq.s32.totalorder %s33, 0
      %p296 = por %p294, %p295
      %s297 = ssub.s32 %s35, %s42
      %p298 = scmp.eq.s32.totalorder %s297, 0
      %s300 = sadd.s32 %s299, 1
      %s301 = scalar_select %p298, %s299, %s300
      %p304 = pneg %p298
      %p305 = scmp.eq.s32.totalorder %s27, 3
      %p306 = por %p304, %p305
      %p307 = scmp.ne.s32.totalorder %s299, %s302
      %p308 = scmp.eq.s32.totalorder %s27, 0
      %p309 = por %p307, %p308
      %p310 = scmp.ne.s32.totalorder %s299, %s302
      %p311 = scmp.eq.s32.totalorder %s32, 3
      %p312 = por %p310, %p311
      %p313 = scmp.ne.s32.totalorder %s302, %s303
      %p314 = scmp.eq.s32.totalorder %s32, 0
      %p315 = por %p313, %p314
      %p316 = scmp.ne.s32.totalorder %s302, %s303
      %p317 = scmp.eq.s32.totalorder %s33, 3
      %p318 = por %p316, %p317
      %p320 = scmp.ne.s32.totalorder %s303, %s319
      %p321 = scmp.eq.s32.totalorder %s33, 0
      %p322 = por %p320, %p321
      %s323 = ssub.s32 %s35, %s42
      %p324 = scmp.eq.s32.totalorder %s323, 0
      %s326 = sadd.s32 %s325, 1
      %s327 = scalar_select %p324, %s325, %s326
      %p330 = pneg %p324
      %p331 = scmp.eq.s32.totalorder %s27, 3
      %p332 = por %p330, %p331
      %p333 = scmp.ne.s32.totalorder %s325, %s328
      %p334 = scmp.eq.s32.totalorder %s27, 0
      %p335 = por %p333, %p334
      %p336 = scmp.ne.s32.totalorder %s325, %s328
      %p337 = scmp.eq.s32.totalorder %s32, 3
      %p338 = por %p336, %p337
      %p339 = scmp.ne.s32.totalorder %s328, %s329
      %p340 = scmp.eq.s32.totalorder %s32, 0
      %p341 = por %p339, %p340
      %p342 = scmp.ne.s32.totalorder %s328, %s329
      %p343 = scmp.eq.s32.totalorder %s33, 3
      %p344 = por %p342, %p343
      %p346 = scmp.ne.s32.totalorder %s329, %s345
      %p347 = scmp.eq.s32.totalorder %s33, 0
      %p348 = por %p346, %p347
      %s349 = ssub.s32 %s35, %s42
      %p350 = scmp.eq.s32.totalorder %s349, 0
      %s352 = sadd.s32 %s351, 1
      %s353 = scalar_select %p350, %s351, %s352
      %p356 = pneg %p350
      %p357 = scmp.eq.s32.totalorder %s27, 3
      %p358 = por %p356, %p357
      %p359 = scmp.ne.s32.totalorder %s351, %s354
      %p360 = scmp.eq.s32.totalorder %s27, 0
      %p361 = por %p359, %p360
      %p362 = scmp.ne.s32.totalorder %s351, %s354
      %p363 = scmp.eq.s32.totalorder %s32, 3
      %p364 = por %p362, %p363
      %p365 = scmp.ne.s32.totalorder %s354, %s355
      %p366 = scmp.eq.s32.totalorder %s32, 0
      %p367 = por %p365, %p366
      %p368 = scmp.ne.s32.totalorder %s354, %s355
      %p369 = scmp.eq.s32.totalorder %s33, 3
      %p370 = por %p368, %p369
      %p372 = scmp.ne.s32.totalorder %s355, %s371
      %p373 = scmp.eq.s32.totalorder %s33, 0
      %p374 = por %p372, %p373
      %s375 = ssub.s32 %s35, %s42
      %p376 = scmp.eq.s32.totalorder %s375, 0
      %s378 = sadd.s32 %s377, 1
      %s379 = scalar_select %p376, %s377, %s378
      %p382 = pneg %p376
      %p383 = scmp.eq.s32.totalorder %s27, 3
      %p384 = por %p382, %p383
      %p385 = scmp.ne.s32.totalorder %s377, %s380
      %p386 = scmp.eq.s32.totalorder %s27, 0
      %p387 = por %p385, %p386
      %p388 = scmp.ne.s32.totalorder %s377, %s380
      %p389 = scmp.eq.s32.totalorder %s32, 3
      %p390 = por %p388, %p389
      %p391 = scmp.ne.s32.totalorder %s380, %s381
      %p392 = scmp.eq.s32.totalorder %s32, 0
      %p393 = por %p391, %p392
      %p394 = scmp.ne.s32.totalorder %s380, %s381
      %p395 = scmp.eq.s32.totalorder %s33, 3
      %p396 = por %p394, %p395
      %p398 = scmp.ne.s32.totalorder %s381, %s397
      %p399 = scmp.eq.s32.totalorder %s33, 0
      %p400 = por %p398, %p399
      %s401 = ssub.s32 %s35, %s42
      %p402 = scmp.eq.s32.totalorder %s401, 0
      %s404 = sadd.s32 %s403, 1
      %s405 = scalar_select %p402, %s403, %s404
      %p408 = pneg %p402
      %p409 = scmp.eq.s32.totalorder %s27, 3
      %p410 = por %p408, %p409
      %p411 = scmp.ne.s32.totalorder %s403, %s406
      %p412 = scmp.eq.s32.totalorder %s27, 0
      %p413 = por %p411, %p412
      %p414 = scmp.ne.s32.totalorder %s403, %s406
      %p415 = scmp.eq.s32.totalorder %s32, 3
      %p416 = por %p414, %p415
      %p417 = scmp.ne.s32.totalorder %s406, %s407
      %p418 = scmp.eq.s32.totalorder %s32, 0
      %p419 = por %p417, %p418
      %p420 = scmp.ne.s32.totalorder %s406, %s407
      %p421 = scmp.eq.s32.totalorder %s33, 3
      %p422 = por %p420, %p421
      %p424 = scmp.ne.s32.totalorder %s407, %s423
      %p425 = scmp.eq.s32.totalorder %s33, 0
      %p426 = por %p424, %p425
      %s427 = ssub.s32 %s35, %s42
      %p428 = scmp.eq.s32.totalorder %s427, 0
      %s430 = sadd.s32 %s429, 1
      %s431 = scalar_select %p428, %s429, %s430
      %p434 = pneg %p428
      %p435 = scmp.eq.s32.totalorder %s27, 3
      %p436 = por %p434, %p435
      %p437 = scmp.ne.s32.totalorder %s429, %s432
      %p438 = scmp.eq.s32.totalorder %s27, 0
      %p439 = por %p437, %p438
      %p440 = scmp.ne.s32.totalorder %s429, %s432
      %p441 = scmp.eq.s32.totalorder %s32, 3
      %p442 = por %p440, %p441
      %p443 = scmp.ne.s32.totalorder %s432, %s433
      %p444 = scmp.eq.s32.totalorder %s32, 0
      %p445 = por %p443, %p444
      %p446 = scmp.ne.s32.totalorder %s432, %s433
      %p447 = scmp.eq.s32.totalorder %s33, 3
      %p448 = por %p446, %p447
      %p450 = scmp.ne.s32.totalorder %s433, %s449
      %p451 = scmp.eq.s32.totalorder %s33, 0
      %p452 = por %p450, %p451
      %s453 = ssub.s32 %s35, %s42
      %p454 = scmp.eq.s32.totalorder %s453, 0
      %s456 = sadd.s32 %s455, 1
      %s457 = scalar_select %p454, %s455, %s456
      %p460 = pneg %p454
      %p461 = scmp.eq.s32.totalorder %s27, 3
      %p462 = por %p460, %p461
      %p463 = scmp.ne.s32.totalorder %s455, %s458
      %p464 = scmp.eq.s32.totalorder %s27, 0
      %p465 = por %p463, %p464
      %p466 = scmp.ne.s32.totalorder %s455, %s458
      %p467 = scmp.eq.s32.totalorder %s32, 3
      %p468 = por %p466, %p467
      %p469 = scmp.ne.s32.totalorder %s458, %s459
      %p470 = scmp.eq.s32.totalorder %s32, 0
      %p471 = por %p469, %p470
      %p472 = scmp.ne.s32.totalorder %s458, %s459
      %p473 = scmp.eq.s32.totalorder %s33, 3
      %p474 = por %p472, %p473
      %p476 = scmp.ne.s32.totalorder %s459, %s475
      %p477 = scmp.eq.s32.totalorder %s33, 0
      %p478 = por %p476, %p477
      %s479 = ssub.s32 %s35, %s42
      %p480 = scmp.eq.s32.totalorder %s479, 0
      %s482 = sadd.s32 %s481, 1
      %s483 = scalar_select %p480, %s481, %s482
      %p486 = pneg %p480
      %p487 = scmp.eq.s32.totalorder %s27, 3
      %p488 = por %p486, %p487
      %p489 = scmp.ne.s32.totalorder %s481, %s484
      %p490 = scmp.eq.s32.totalorder %s27, 0
      %p491 = por %p489, %p490
      %p492 = scmp.ne.s32.totalorder %s481, %s484
      %p493 = scmp.eq.s32.totalorder %s32, 3
      %p494 = por %p492, %p493
      %p495 = scmp.ne.s32.totalorder %s484, %s485
      %p496 = scmp.eq.s32.totalorder %s32, 0
      %p497 = por %p495, %p496
      %p498 = scmp.ne.s32.totalorder %s484, %s485
      %p499 = scmp.eq.s32.totalorder %s33, 3
      %p500 = por %p498, %p499
      %p502 = scmp.ne.s32.totalorder %s485, %s501
      %p503 = scmp.eq.s32.totalorder %s33, 0
      %p504 = por %p502, %p503
      %s505 = ssub.s32 %s34, %s46
      %p506 = scmp.eq.s32.totalorder %s505, 0
      %s508 = sadd.s32 %s507, 1
      %s509 = scalar_select %p506, %s507, %s508
      %p512 = pneg %p506
      %p513 = scmp.eq.s32.totalorder %s27, 3
      %p514 = por %p512, %p513
      %p515 = scmp.ne.s32.totalorder %s507, %s510
      %p516 = scmp.eq.s32.totalorder %s27, 0
      %p517 = por %p515, %p516
      %p518 = scmp.ne.s32.totalorder %s507, %s510
      %p519 = scmp.eq.s32.totalorder %s32, 3
      %p520 = por %p518, %p519
      %p521 = scmp.ne.s32.totalorder %s510, %s511
      %p522 = scmp.eq.s32.totalorder %s32, 0
      %p523 = por %p521, %p522
      %p524 = scmp.ne.s32.totalorder %s510, %s511
      %p525 = scmp.eq.s32.totalorder %s33, 3
      %p526 = por %p524, %p525
      %p528 = scmp.ne.s32.totalorder %s511, %s527
      %p529 = scmp.eq.s32.totalorder %s33, 0
      %p530 = por %p528, %p529
      %p531 = scmp.le.s32.totalorder 1, %s27
      %p532 = scmp.lt.s32.totalorder %s27, 5
      %p533 = pnand %p531, %p532
      %p534 = pneg %p533
      // Predicated region
      $region9: #{_lambda_.3} parent=5 // pred_check
        _
      $region10: #{_lambda_.3} parent=5 // pred_check_branch
        %536 = sbr.rel (%p533) target = $region12
      $region11: #{_lambda_.3} parent=5 // pred_region
        %s537 = ssub.s32 %s27, 1
        // Predicated region
        $region13: #{_lambda_.3} parent=11 // pred_check
          %p538 = pneg %p112
        $region14: #{_lambda_.3} parent=11 // pred_check_branch
          %540 = sbr.rel (%p538) target = $region16
        $region15: #{_lambda_.3} parent=11 // pred_region
          _
        $region16: #{_lambda_.3} parent=11 // pred_fallthru
          _
        // Predicated region
        $region17: #{_lambda_.3} parent=11 // pred_check
          %p541 = pneg %p133
        $region18: #{_lambda_.3} parent=11 // pred_check_branch
          %543 = sbr.rel (%p541) target = $region20
        $region19: #{_lambda_.3} parent=11 // pred_region
          _
        $region20: #{_lambda_.3} parent=11 // pred_fallthru
          _
      $region12: #{_lambda_.3} parent=5 // pred_fallthru
        _
      %p544 = scmp.lt.s32.totalorder %s27, 4
      // Predicated region
      $region21: #{_lambda_.3} parent=5 // pred_check
        %p545 = pneg %p544
      $region22: #{_lambda_.3} parent=5 // pred_check_branch
        %547 = sbr.rel (%p545) target = $region24
      $region23: #{_lambda_.3} parent=5 // pred_region
        // Predicated region
        $region25: #{_lambda_.3} parent=23 // pred_check
          %p548 = pneg %p59
        $region26: #{_lambda_.3} parent=23 // pred_check_branch
          %550 = sbr.rel (%p548) target = $region28
        $region27: #{_lambda_.3} parent=23 // pred_region
          %p551 = scmp.lt.s32.totalorder %s34, 1
          %s552 = scalar_select %p551, %s34, 1
          %s553 = smul.addr %s552, 4
          %s554 = scalar_lea.vmem %s0, %s553
        $region28: #{_lambda_.3} parent=23 // pred_fallthru
          _
        // Predicated region
        $region29: #{_lambda_.3} parent=23 // pred_check
          %p555 = pneg %p85
        $region30: #{_lambda_.3} parent=23 // pred_check_branch
          %557 = sbr.rel (%p555) target = $region32
        $region31: #{_lambda_.3} parent=23 // pred_region
          %p558 = scmp.lt.s32.totalorder %s34, 1
          %s559 = scalar_select %p558, %s34, 1
          %s560 = scalar_lea.vmem %s1, %s559
        $region32: #{_lambda_.3} parent=23 // pred_fallthru
          _
        // Predicated region
        $region33: #{_lambda_.3} parent=23 // pred_check
          %p561 = pneg %p153
        $region34: #{_lambda_.3} parent=23 // pred_check_branch
          %563 = sbr.rel (%p561) target = $region36
        $region35: #{_lambda_.3} parent=23 // pred_region
          %p564 = scmp.lt.s32.totalorder %s35, 1
          %s565 = scalar_select %p564, %s35, 1
          %s566 = smul.addr %s565, 4
          %s567 = smul.addr %s566, 4
          %s568 = scalar_lea.vmem %s4, %s567
        $region36: #{_lambda_.3} parent=23 // pred_fallthru
          _
        // Predicated region
        $region37: #{_lambda_.3} parent=23 // pred_check
          %p569 = pneg %p179
        $region38: #{_lambda_.3} parent=23 // pred_check_branch
          %571 = sbr.rel (%p569) target = $region40
        $region39: #{_lambda_.3} parent=23 // pred_region
          %p572 = scmp.lt.s32.totalorder %s35, 1
          %s573 = scalar_select %p572, %s35, 1
          %s574 = scalar_lea.vmem %s5, %s573
        $region40: #{_lambda_.3} parent=23 // pred_fallthru
          _
        // Predicated region
        $region41: #{_lambda_.3} parent=23 // pred_check
          %p575 = pneg %p205
        $region42: #{_lambda_.3} parent=23 // pred_check_branch
          %577 = sbr.rel (%p575) target = $region44
        $region43: #{_lambda_.3} parent=23 // pred_region
          %p578 = scmp.lt.s32.totalorder %s35, 1
          %s579 = scalar_select %p578, %s35, 1
          %s580 = smul.addr %s579, 4
          %s581 = smul.addr %s580, 4
          %s582 = scalar_lea.vmem %s6, %s581
        $region44: #{_lambda_.3} parent=23 // pred_fallthru
          _
        // Predicated region
        $region45: #{_lambda_.3} parent=23 // pred_check
          %p583 = pneg %p231
        $region46: #{_lambda_.3} parent=23 // pred_check_branch
          %585 = sbr.rel (%p583) target = $region48
        $region47: #{_lambda_.3} parent=23 // pred_region
          %p586 = scmp.lt.s32.totalorder %s35, 1
          %s587 = scalar_select %p586, %s35, 1
          %s588 = scalar_lea.vmem %s7, %s587
        $region48: #{_lambda_.3} parent=23 // pred_fallthru
          _
        // Predicated region
        $region49: #{_lambda_.3} parent=23 // pred_check
          %p589 = pneg %p257
        $region50: #{_lambda_.3} parent=23 // pred_check_branch
          %591 = sbr.rel (%p589) target = $region52
        $region51: #{_lambda_.3} parent=23 // pred_region
          %p592 = scmp.lt.s32.totalorder %s35, 1
          %s593 = scalar_select %p592, %s35, 1
          %s594 = smul.addr %s593, 4
          %s595 = smul.addr %s594, 4
          %s596 = scalar_lea.vmem %s8, %s595
        $region52: #{_lambda_.3} parent=23 // pred_fallthru
          _
        // Predicated region
        $region53: #{_lambda_.3} parent=23 // pred_check
          %p597 = pneg %p283
        $region54: #{_lambda_.3} parent=23 // pred_check_branch
          %599 = sbr.rel (%p597) target = $region56
        $region55: #{_lambda_.3} parent=23 // pred_region
          %p600 = scmp.lt.s32.totalorder %s35, 1
          %s601 = scalar_select %p600, %s35, 1
          %s602 = scalar_lea.vmem %s9, %s601
        $region56: #{_lambda_.3} parent=23 // pred_fallthru
          _
        // Predicated region
        $region57: #{_lambda_.3} parent=23 // pred_check
          %p603 = pneg %p309
        $region58: #{_lambda_.3} parent=23 // pred_check_branch
          %605 = sbr.rel (%p603) target = $region60
        $region59: #{_lambda_.3} parent=23 // pred_region
          %p606 = scmp.lt.s32.totalorder %s35, 1
          %s607 = scalar_select %p606, %s35, 1
          %s608 = scalar_lea.vmem %s10, %s607
        $region60: #{_lambda_.3} parent=23 // pred_fallthru
          _
        // Predicated region
        $region61: #{_lambda_.3} parent=23 // pred_check
          %p609 = pneg %p335
        $region62: #{_lambda_.3} parent=23 // pred_check_branch
          %611 = sbr.rel (%p609) target = $region64
        $region63: #{_lambda_.3} parent=23 // pred_region
          %p612 = scmp.lt.s32.totalorder %s35, 1
          %s613 = scalar_select %p612, %s35, 1
          %s614 = scalar_lea.vmem %s11, %s613
        $region64: #{_lambda_.3} parent=23 // pred_fallthru
          _
        // Predicated region
        $region65: #{_lambda_.3} parent=23 // pred_check
          %p615 = pneg %p361
        $region66: #{_lambda_.3} parent=23 // pred_check_branch
          %617 = sbr.rel (%p615) target = $region68
        $region67: #{_lambda_.3} parent=23 // pred_region
          %p618 = scmp.lt.s32.totalorder %s35, 1
          %s619 = scalar_select %p618, %s35, 1
          %s620 = smul.addr %s619, 4
          %s621 = smul.addr %s620, 4
          %s622 = scalar_lea.vmem %s12, %s621
        $region68: #{_lambda_.3} parent=23 // pred_fallthru
          _
        // Predicated region
        $region69: #{_lambda_.3} parent=23 // pred_check
          %p623 = pneg %p387
        $region70: #{_lambda_.3} parent=23 // pred_check_branch
          %625 = sbr.rel (%p623) target = $region72
        $region71: #{_lambda_.3} parent=23 // pred_region
          %p626 = scmp.lt.s32.totalorder %s35, 1
          %s627 = scalar_select %p626, %s35, 1
          %s628 = scalar_lea.vmem %s13, %s627
        $region72: #{_lambda_.3} parent=23 // pred_fallthru
          _
        // Predicated region
        $region73: #{_lambda_.3} parent=23 // pred_check
          %p629 = pneg %p413
        $region74: #{_lambda_.3} parent=23 // pred_check_branch
          %631 = sbr.rel (%p629) target = $region76
        $region75: #{_lambda_.3} parent=23 // pred_region
          %p632 = scmp.lt.s32.totalorder %s35, 1
          %s633 = scalar_select %p632, %s35, 1
          %s634 = smul.addr %s633, 8
          %s635 = smul.addr %s634, 4
          %s636 = scalar_lea.vmem %s14, %s635
        $region76: #{_lambda_.3} parent=23 // pred_fallthru
          _
        // Predicated region
        $region77: #{_lambda_.3} parent=23 // pred_check
          %p637 = pneg %p439
        $region78: #{_lambda_.3} parent=23 // pred_check_branch
          %639 = sbr.rel (%p637) target = $region80
        $region79: #{_lambda_.3} parent=23 // pred_region
          %p640 = scmp.lt.s32.totalorder %s35, 1
          %s641 = scalar_select %p640, %s35, 1
          %s642 = scalar_lea.vmem %s15, %s641
        $region80: #{_lambda_.3} parent=23 // pred_fallthru
          _
        // Predicated region
        $region81: #{_lambda_.3} parent=23 // pred_check
          %p643 = pneg %p465
        $region82: #{_lambda_.3} parent=23 // pred_check_branch
          %645 = sbr.rel (%p643) target = $region84
        $region83: #{_lambda_.3} parent=23 // pred_region
          %p646 = scmp.lt.s32.totalorder %s35, 1
          %s647 = scalar_select %p646, %s35, 1
          %s648 = scalar_lea.vmem %s16, %s647
        $region84: #{_lambda_.3} parent=23 // pred_fallthru
          _
        // Predicated region
        $region85: #{_lambda_.3} parent=23 // pred_check
          %p649 = pneg %p491
        $region86: #{_lambda_.3} parent=23 // pred_check_branch
          %651 = sbr.rel (%p649) target = $region88
        $region87: #{_lambda_.3} parent=23 // pred_region
          %p652 = scmp.lt.s32.totalorder %s35, 1
          %s653 = scalar_select %p652, %s35, 1
          %s654 = scalar_lea.vmem %s17, %s653
        $region88: #{_lambda_.3} parent=23 // pred_fallthru
          _
      $region24: #{_lambda_.3} parent=5 // pred_fallthru
        _
      %p655 = scmp.le.s32.totalorder 1, %s27
      %p656 = scmp.lt.s32.totalorder %s27, 5
      %p657 = pnand %p655, %p656
      %p658 = pneg %p657
      // Predicated region
      $region89: #{_lambda_.3} parent=5 // pred_check
        _
      $region90: #{_lambda_.3} parent=5 // pred_check_branch
        %660 = sbr.rel (%p657) target = $region92
      $region91: #{_lambda_.3} parent=5 // pred_region
        %s661 = ssub.s32 %s27, 1
        %p662 = scmp.lt.s32.totalorder %s36, 1
        %s663 = scalar_select %p662, %s36, 1
        %s664 = smul.addr %s663, 4
        %s665 = scalar_lea.vmem %s0, %s664
        %p666 = pneg %p65
        %p667 = pneg %p62
        %p668 = scmp.lt.s32.totalorder %s36, 1
        %s669 = scalar_select %p668, %s36, 1
        %s670 = scalar_lea.vmem %s1, %s669
        %p671 = pneg %p91
        %p672 = pneg %p88
        %p673 = pneg %p112
        %p674 = pneg %p109
        %p675 = pneg %p133
        %p676 = pneg %p130
        %p677 = scmp.lt.s32.totalorder %s37, 1
        %s678 = scalar_select %p677, %s37, 1
        %s679 = smul.addr %s678, 4
        %s680 = smul.addr %s679, 4
        %s681 = scalar_lea.vmem %s4, %s680
        %p682 = pneg %p159
        %p683 = pneg %p156
        %p684 = scmp.lt.s32.totalorder %s37, 1
        %s685 = scalar_select %p684, %s37, 1
        %s686 = scalar_lea.vmem %s5, %s685
        %p687 = pneg %p185
        %p688 = pneg %p182
        %p689 = scmp.lt.s32.totalorder %s37, 1
        %s690 = scalar_select %p689, %s37, 1
        %s691 = smul.addr %s690, 4
        %s692 = smul.addr %s691, 4
        %s693 = scalar_lea.vmem %s6, %s692
        %p694 = pneg %p211
        %p695 = pneg %p208
        %p696 = scmp.lt.s32.totalorder %s37, 1
        %s697 = scalar_select %p696, %s37, 1
        %s698 = scalar_lea.vmem %s7, %s697
        %p699 = pneg %p237
        %p700 = pneg %p234
        %p701 = scmp.lt.s32.totalorder %s37, 1
        %s702 = scalar_select %p701, %s37, 1
        %s703 = smul.addr %s702, 4
        %s704 = smul.addr %s703, 4
        %s705 = scalar_lea.vmem %s8, %s704
        %p706 = pneg %p263
        %p707 = pneg %p260
        %p708 = scmp.lt.s32.totalorder %s37, 1
        %s709 = scalar_select %p708, %s37, 1
        %s710 = scalar_lea.vmem %s9, %s709
        %p711 = pneg %p289
        %p712 = pneg %p286
        %p713 = scmp.lt.s32.totalorder %s37, 1
        %s714 = scalar_select %p713, %s37, 1
        %s715 = scalar_lea.vmem %s10, %s714
        %p716 = pneg %p315
        %p717 = pneg %p312
        %p718 = scmp.lt.s32.totalorder %s37, 1
        %s719 = scalar_select %p718, %s37, 1
        %s720 = scalar_lea.vmem %s11, %s719
        %p721 = pneg %p341
        %p722 = pneg %p338
        %p723 = scmp.lt.s32.totalorder %s37, 1
        %s724 = scalar_select %p723, %s37, 1
        %s725 = smul.addr %s724, 4
        %s726 = smul.addr %s725, 4
        %s727 = scalar_lea.vmem %s12, %s726
        %p728 = pneg %p367
        %p729 = pneg %p364
        %p730 = scmp.lt.s32.totalorder %s37, 1
        %s731 = scalar_select %p730, %s37, 1
        %s732 = scalar_lea.vmem %s13, %s731
        %p733 = pneg %p393
        %p734 = pneg %p390
        %p735 = scmp.lt.s32.totalorder %s37, 1
        %s736 = scalar_select %p735, %s37, 1
        %s737 = smul.addr %s736, 8
        %s738 = smul.addr %s737, 4
        %s739 = scalar_lea.vmem %s14, %s738
        %p740 = pneg %p419
        %p741 = pneg %p416
        %p742 = scmp.lt.s32.totalorder %s37, 1
        %s743 = scalar_select %p742, %s37, 1
        %s744 = scalar_lea.vmem %s15, %s743
        %p745 = pneg %p445
        %p746 = pneg %p442
        %p747 = scmp.lt.s32.totalorder %s37, 1
        %s748 = scalar_select %p747, %s37, 1
        %s749 = scalar_lea.vmem %s16, %s748
        %p750 = pneg %p471
        %p751 = pneg %p468
        %p752 = scmp.lt.s32.totalorder %s37, 1
        %s753 = scalar_select %p752, %s37, 1
        %s754 = scalar_lea.vmem %s17, %s753
        %p755 = pneg %p497
        %p756 = pneg %p494
        %p757 = pneg %p523
        %p758 = pneg %p520
        %s759 = sand.u32 %s510, 1
        %s760 = scalar_lea.sflag [#allocation4], %s759
        %s761 = sand.u32 %s510, 1
        %s762 = smul.addr %s761, 4
        %s763 = scalar_lea.vmem [#allocation3], %s762
        %p764 = scmp.lt.s32.totalorder %s36, 1
        %s765 = scalar_select %p764, %s36, 1
        %s766 = smul.addr %s765, 4
        %s767 = scalar_lea.vmem %s0, %s766
        %p768 = scmp.lt.s32.totalorder %s36, 1
        %s769 = scalar_select %p768, %s36, 1
        %s770 = scalar_lea.vmem %s1, %s769
        %p771 = scmp.lt.s32.totalorder %s37, 1
        %s772 = scalar_select %p771, %s37, 1
        %s773 = smul.addr %s772, 4
        %s774 = smul.addr %s773, 4
        %s775 = scalar_lea.vmem %s4, %s774
        %p776 = scmp.lt.s32.totalorder %s37, 1
        %s777 = scalar_select %p776, %s37, 1
        %s778 = scalar_lea.vmem %s5, %s777
        %p779 = scmp.lt.s32.totalorder %s37, 1
        %s780 = scalar_select %p779, %s37, 1
        %s781 = smul.addr %s780, 4
        %s782 = smul.addr %s781, 4
        %s783 = scalar_lea.vmem %s6, %s782
        %p784 = scmp.lt.s32.totalorder %s37, 1
        %s785 = scalar_select %p784, %s37, 1
        %s786 = scalar_lea.vmem %s7, %s785
        %p787 = scmp.lt.s32.totalorder %s37, 1
        %s788 = scalar_select %p787, %s37, 1
        %s789 = smul.addr %s788, 4
        %s790 = smul.addr %s789, 4
        %s791 = scalar_lea.vmem %s8, %s790
        %p792 = scmp.lt.s32.totalorder %s37, 1
        %s793 = scalar_select %p792, %s37, 1
        %s794 = scalar_lea.vmem %s9, %s793
        %p795 = scmp.lt.s32.totalorder %s37, 1
        %s796 = scalar_select %p795, %s37, 1
        %s797 = scalar_lea.vmem %s10, %s796
        %p798 = scmp.lt.s32.totalorder %s37, 1
        %s799 = scalar_select %p798, %s37, 1
        %s800 = scalar_lea.vmem %s11, %s799
        %p801 = scmp.lt.s32.totalorder %s37, 1
        %s802 = scalar_select %p801, %s37, 1
        %s803 = smul.addr %s802, 4
        %s804 = smul.addr %s803, 4
        %s805 = scalar_lea.vmem %s12, %s804
        %p806 = scmp.lt.s32.totalorder %s37, 1
        %s807 = scalar_select %p806, %s37, 1
        %s808 = scalar_lea.vmem %s13, %s807
        %p809 = scmp.lt.s32.totalorder %s37, 1
        %s810 = scalar_select %p809, %s37, 1
        %s811 = smul.addr %s810, 8
        %s812 = smul.addr %s811, 4
        %s813 = scalar_lea.vmem %s14, %s812
        %p814 = scmp.lt.s32.totalorder %s37, 1
        %s815 = scalar_select %p814, %s37, 1
        %s816 = scalar_lea.vmem %s15, %s815
        %p817 = scmp.lt.s32.totalorder %s37, 1
        %s818 = scalar_select %p817, %s37, 1
        %s819 = scalar_lea.vmem %s16, %s818
        %p820 = scmp.lt.s32.totalorder %s37, 1
        %s821 = scalar_select %p820, %s37, 1
        %s822 = scalar_lea.vmem %s17, %s821
        %p824 = scmp.eq.s32.totalorder %s37, 0
        // Predicated region
        $region93: #{_lambda_.3} parent=91 // pred_check
          %p825 = pneg %p824
        $region94: #{_lambda_.3} parent=91 // pred_check_branch
          %827 = sbr.rel (%p825) target = $region96
        $region95: #{_lambda_.3} parent=91 // pred_region
          %v828 = vld [vmem:[%s767] sm:$0xf]
          %vm829 = vcmask 257024
          %830 = vst.msk [vmem:[#allocation2] sm:$0xf] %vm829, %v828
        $region96: #{_lambda_.3} parent=91 // pred_fallthru
          _
        %v831 = vld [vmem:[#allocation2] sm:$0xf]
        %v832 = vpack.c.bf16 %v831, %v831
        %v833 = vld [vmem:[%s783] sm:$0xf]
        %v834 = vld [vmem:[%s783 + $0x4] sm:$0xf]
        %v835 = vld [vmem:[%s783 + $0x8] sm:$0xf]
        %v836 = vld [vmem:[%s783 + $0xc] sm:$0xf]
        %v837 = vld [vmem:[%s786] sm:$0x1]
        %v839 = vlaneseq
        %v840 = vshrl.u32 %v839, 7
        %v841 = vsub.s32 0, %v840
        %v842 = vrot.slane %v837, %v841
        %v848 = vunpack.c.l.b16 %v833
        %v849 = vunpack.c.l.b16 %v834
        %v850 = vunpack.c.l.b16 %v835
        %v851 = vunpack.c.l.b16 %v836
        %v852 = vpack.c.b16 %v849, %v848
        %v853 = vpack.c.b16 %v851, %v850
        %vm856 = vcmask 261120
        %v858 = vsel %vm856, %v832, 0
        %860 = vmatprep.subr.bf16.mxu0 0
        %861 = vmatpush1.bf16.msra.mxu0 %v852
        %862 = vmatprep.subr.bf16.mxu0 0
        %863 = vmatpush1.bf16.msra.mxu0 %v853
        %864 = vmatprep.subr.bf16.mxu0 0
        %865 = vmatpush1.bf16.msra.mxu0 0
        %866 = vmatprep.subr.bf16.mxu0 0
        %867 = vmatpush1.bf16.msra.mxu0 0
        %868 = vmatprep.subr.bf16.mxu0 0
        %869 = vmatpush1.bf16.msra.mxu0 0
        %870 = vmatprep.subr.bf16.mxu0 0
        %871 = vmatpush1.bf16.msra.mxu0 0
        %872 = vmatprep.subr.bf16.mxu0 0
        %873 = vmatpush1.bf16.msra.mxu0 0
        %874 = vmatprep.subr.bf16.mxu0 0
        %875 = vmatpush1.bf16.msra.mxu0 0
        %876 = vmatprep.subr.bf16.mxu0 0
        %877 = vmatpush1.bf16.msra.mxu0 0
        %878 = vmatprep.subr.bf16.mxu0 0
        %879 = vmatpush1.bf16.msra.mxu0 0
        %880 = vmatprep.subr.bf16.mxu0 0
        %881 = vmatpush1.bf16.msra.mxu0 0
        %882 = vmatprep.subr.bf16.mxu0 0
        %883 = vmatpush1.bf16.msra.mxu0 0
        %884 = vmatprep.subr.bf16.mxu0 0
        %885 = vmatpush1.bf16.msra.mxu0 0
        %886 = vmatprep.subr.bf16.mxu0 0
        %887 = vmatpush1.bf16.msra.mxu0 0
        %888 = vmatprep.subr.bf16.mxu0 0
        %889 = vmatpush1.bf16.msra.mxu0 0
        %890 = vmatprep.subr.bf16.mxu0 0
        %891 = vmatpush1.bf16.msra.mxu0 0
        %892 = vmatprep.mubr.bf16.mxu0 0
        %893 = vmatmul.mubr.bf16.gmra.mrb[0].mxu0 %v858
        %v894 = vpop.f32.mrb[0].mxu0
        %v895 = vadd.f32 %v842, %v894
        %v896 = vpop.f32.mrb[0].mxu0
        %v897 = vpop.f32.mrb[0].mxu0
        %v898 = vpop.f32.mrb[0].mxu0
        %899 = vdwg.mxu0
        %v900 = vld [vmem:[%s3] sm:$0xff]
        %v901 = vld [vmem:[%s3 + $0x8] sm:$0xff]
        %v903 = vrot.slane %v895, 4
        %vm905 = vcmask 1043456
        %v906 = vsel %vm905, %v895, %v903
        %v907 = vmul.f32 %v906, %v900
        %v908 = vmul.f32 %v906, %v901
        %v909 = vpack.c.bf16 %v908, %v907
        %912 = vrot.lane.b32.xlu0 %v900, 32
        %v913 = vpop.permute.xlu0 %912
        %914 = vrot.lane.b32.xlu0 %v901, 32
        %v915 = vpop.permute.xlu0 %914
        %v918 = vmul.f32 %v906, %v913
        %v919 = vmul.f32 %v906, %v915
        %v920 = vpack.c.bf16 %v919, %v918
        %v921 = vld [vmem:[%s770] sm:$0x1]
        %v923 = vlaneseq
        %v924 = vshrl.u32 %v923, 7
        %v925 = vsub.s32 0, %v924
        %v926 = vrot.slane %v921, %v925
        %927 = vrot.lane.b32.xlu0 %v926, 4
        %v928 = vpop.permute.xlu0 %927
        %930 = vrot.lane.b32.xlu0 %v926, 8
        %v931 = vpop.permute.xlu0 %930
        %933 = vrot.lane.b32.xlu0 %v926, 12
        %v934 = vpop.permute.xlu0 %933
        %vm936 = vcmask 31744
        %v937 = vsel %vm936, %v921, %v928
        %vm938 = vcmask 64512
        %v939 = vsel %vm938, %v937, %v931
        %vm940 = vcmask 97280
        %v941 = vsel %vm940, %v939, %v934
        %v942 = vsub.f32 %v941, 1.0
        %v943 = vmul.f32 %v942, 1e+09
        %v944 = vld [vmem:[%s775] sm:$0xf]
        %v945 = vld [vmem:[%s775 + $0x4] sm:$0xf]
        %v946 = vld [vmem:[%s775 + $0x8] sm:$0xf]
        %v947 = vld [vmem:[%s775 + $0xc] sm:$0xf]
        %v948 = vld [vmem:[%s778] sm:$0x1]
        %v949 = vld [vmem:[%s791] sm:$0xf]
        %v950 = vld [vmem:[%s791 + $0x4] sm:$0xf]
        %v951 = vld [vmem:[%s791 + $0x8] sm:$0xf]
        %v952 = vld [vmem:[%s791 + $0xc] sm:$0xf]
        %v953 = vld [vmem:[%s794] sm:$0x1]
        %v954 = vld [vmem:[%s797] sm:$0x1]
        %v955 = vld [vmem:[%s800] sm:$0x1]
        %v956 = vld [vmem:[%s805] sm:$0xf]
        %v957 = vld [vmem:[%s805 + $0x4] sm:$0xf]
        %v958 = vld [vmem:[%s805 + $0x8] sm:$0xf]
        %v959 = vld [vmem:[%s805 + $0xc] sm:$0xf]
        %v960 = vld [vmem:[%s808] sm:$0x1]
        %v961 = vld [vmem:[%s813] sm:$0xf]
        %v962 = vld [vmem:[%s813 + $0x4] sm:$0xf]
        %v963 = vld [vmem:[%s813 + $0x8] sm:$0xf]
        %v964 = vld [vmem:[%s813 + $0xc] sm:$0xf]
        %v965 = vld [vmem:[%s813 + $0x10] sm:$0xf]
        %v966 = vld [vmem:[%s813 + $0x14] sm:$0xf]
        %v967 = vld [vmem:[%s813 + $0x18] sm:$0xf]
        %v968 = vld [vmem:[%s813 + $0x1c] sm:$0xf]
        %v969 = vld [vmem:[%s816] sm:$0x1]
        %v970 = vld [vmem:[%s819] sm:$0x1]
        %v971 = vld [vmem:[%s822] sm:$0x1]
        %v972 = vld [vmem:[%s2] sm:$0xff]
        %v973 = vld [vmem:[%s2 + $0x8] sm:$0xff]
        %v975 = vlaneseq
        %v976 = vshrl.u32 %v975, 7
        %v977 = vsub.s32 0, %v976
        %v978 = vrot.slane %v948, %v977
        %v984 = vunpack.c.l.b16 %v944
        %v985 = vunpack.c.l.b16 %v945
        %v986 = vunpack.c.l.b16 %v946
        %v987 = vunpack.c.l.b16 %v947
        %v988 = vpack.c.b16 %v985, %v984
        %v989 = vpack.c.b16 %v987, %v986
        %992 = vmatprep.subr.bf16.mxu0 0
        %993 = vmatpush1.bf16.msra.mxu0 %v988
        %994 = vmatprep.subr.bf16.mxu0 0
        %995 = vmatpush1.bf16.msra.mxu0 %v989
        %996 = vmatprep.subr.bf16.mxu0 0
        %997 = vmatpush1.bf16.msra.mxu0 0
        %998 = vmatprep.subr.bf16.mxu0 0
        %999 = vmatpush1.bf16.msra.mxu0 0
        %1000 = vmatprep.subr.bf16.mxu0 0
        %1001 = vmatpush1.bf16.msra.mxu0 0
        %1002 = vmatprep.subr.bf16.mxu0 0
        %1003 = vmatpush1.bf16.msra.mxu0 0
        %1004 = vmatprep.subr.bf16.mxu0 0
        %1005 = vmatpush1.bf16.msra.mxu0 0
        %1006 = vmatprep.subr.bf16.mxu0 0
        %1007 = vmatpush1.bf16.msra.mxu0 0
        %1008 = vmatprep.subr.bf16.mxu0 0
        %1009 = vmatpush1.bf16.msra.mxu0 0
        %1010 = vmatprep.subr.bf16.mxu0 0
        %1011 = vmatpush1.bf16.msra.mxu0 0
        %1012 = vmatprep.subr.bf16.mxu0 0
        %1013 = vmatpush1.bf16.msra.mxu0 0
        %1014 = vmatprep.subr.bf16.mxu0 0
        %1015 = vmatpush1.bf16.msra.mxu0 0
        %1016 = vmatprep.subr.bf16.mxu0 0
        %1017 = vmatpush1.bf16.msra.mxu0 0
        %1018 = vmatprep.subr.bf16.mxu0 0
        %1019 = vmatpush1.bf16.msra.mxu0 0
        %1020 = vmatprep.subr.bf16.mxu0 0
        %1021 = vmatpush1.bf16.msra.mxu0 0
        %1022 = vmatprep.subr.bf16.mxu0 0
        %1023 = vmatpush1.bf16.msra.mxu0 0
        %1024 = vmatprep.mubr.bf16.mxu0 0
        %1025 = vmatmul.mubr.bf16.gmra.mrb[0].mxu0 %v858
        %v1026 = vpop.f32.mrb[0].mxu0
        %v1027 = vadd.f32 %v978, %v1026
        %v1028 = vpop.f32.mrb[0].mxu0
        %v1029 = vpop.f32.mrb[0].mxu0
        %v1030 = vpop.f32.mrb[0].mxu0
        %1031 = vdwg.mxu0
        %v1032 = vpack.c.bf16 %v1027, %v1027
        %v1034 = vsel %vm856, %v1032, 0
        %v1037 = vsel %vm856, %v909, 0
        %1039 = vmatprep.subr.bf16.mxu0 0
        %1040 = vmatpush1.bf16.xpose.msra.mxu0 %v1037
        %1041 = vmatprep.subr.bf16.mxu0 0
        %1042 = vmatpush1.bf16.xpose.msra.mxu0 0
        %1043 = vmatprep.subr.bf16.mxu0 0
        %1044 = vmatpush1.bf16.xpose.msra.mxu0 0
        %1045 = vmatprep.subr.bf16.mxu0 0
        %1046 = vmatpush1.bf16.xpose.msra.mxu0 0
        %1047 = vmatprep.subr.bf16.mxu0 0
        %1048 = vmatpush1.bf16.xpose.msra.mxu0 0
        %1049 = vmatprep.subr.bf16.mxu0 0
        %1050 = vmatpush1.bf16.xpose.msra.mxu0 0
        %1051 = vmatprep.subr.bf16.mxu0 0
        %1052 = vmatpush1.bf16.xpose.msra.mxu0 0
        %1053 = vmatprep.subr.bf16.mxu0 0
        %1054 = vmatpush1.bf16.xpose.msra.mxu0 0
        %1055 = vmatprep.subr.bf16.mxu0 0
        %1056 = vmatpush1.bf16.xpose.msra.mxu0 0
        %1057 = vmatprep.subr.bf16.mxu0 0
        %1058 = vmatpush1.bf16.xpose.msra.mxu0 0
        %1059 = vmatprep.subr.bf16.mxu0 0
        %1060 = vmatpush1.bf16.xpose.msra.mxu0 0
        %1061 = vmatprep.subr.bf16.mxu0 0
        %1062 = vmatpush1.bf16.xpose.msra.mxu0 0
        %1063 = vmatprep.subr.bf16.mxu0 0
        %1064 = vmatpush1.bf16.xpose.msra.mxu0 0
        %1065 = vmatprep.subr.bf16.mxu0 0
        %1066 = vmatpush1.bf16.xpose.msra.mxu0 0
        %1067 = vmatprep.subr.bf16.mxu0 0
        %1068 = vmatpush1.bf16.xpose.msra.mxu0 0
        %1069 = vmatprep.subr.bf16.mxu0 0
        %1070 = vmatpush1.bf16.xpose.msra.mxu0 0
        %1071 = vmatprep.mubr.bf16.mxu0 0
        %1072 = vmatmul.mubr.bf16.gmra.mrb[0].mxu0 %v1034
        %v1073 = vpop.f32.mrb[0].mxu0
        %v1074 = vadd.f32 0.0, %v1073
        %v1075 = vpop.f32.mrb[0].mxu0
        %v1076 = vpop.f32.mrb[0].mxu0
        %v1077 = vpop.f32.mrb[0].mxu0
        %1078 = vdwg.mxu0
        %v1079 = vmul.f32 %v1074, 0.35355338
        %v1080 = vlaneseq
        %v1081 = vshrl.u32 %v1080, 7
        %v1082 = vsub.s32 0, %v1081
        %v1083 = vrot.slane %v943, %v1082
        %v1084 = vadd.f32 %v1079, %v1083
        %vm1085 = vcmask 125952
        %v1086 = vsel %vm1085, %v1084, -inf
        %1087 = vmax.xlane.f32.xlu0 %v1086
        %v1088 = vpop.xlane.xlu0 %1087
        %v1089 = vsub.f32 %v1084, %v1088
        %v1090 = vmul.f32 %v1089, 1.442695
        %v1091 = vpow.pop %v1090
        %vm1092 = vcmask 130048
        %v1094 = vsel %vm1092, %v1091, 0
        %1096 = vmatprep.subr.mxu0 0.0
        %1097 = vmatpush1.msra.mxu0 %v972
        %1098 = vmatprep.subr.mxu0 0.0
        %1099 = vmatpush1.msra.mxu0 %v973
        %1100 = vmatprep.subr.mxu0 0.0
        %1101 = vmatpush1.msra.mxu0 0.0
        %1102 = vmatprep.subr.mxu0 0.0
        %1103 = vmatpush1.msra.mxu0 0.0
        %1104 = vmatprep.subr.mxu0 0.0
        %1105 = vmatpush1.msra.mxu0 0.0
        %1106 = vmatprep.subr.mxu0 0.0
        %1107 = vmatpush1.msra.mxu0 0.0
        %1108 = vmatprep.subr.mxu0 0.0
        %1109 = vmatpush1.msra.mxu0 0.0
        %1110 = vmatprep.subr.mxu0 0.0
        %1111 = vmatpush1.msra.mxu0 0.0
        %1112 = vmatprep.subr.mxu0 0.0
        %1113 = vmatpush1.msra.mxu0 0.0
        %1114 = vmatprep.subr.mxu0 0.0
        %1115 = vmatpush1.msra.mxu0 0.0
        %1116 = vmatprep.subr.mxu0 0.0
        %1117 = vmatpush1.msra.mxu0 0.0
        %1118 = vmatprep.subr.mxu0 0.0
        %1119 = vmatpush1.msra.mxu0 0.0
        %1120 = vmatprep.subr.mxu0 0.0
        %1121 = vmatpush1.msra.mxu0 0.0
        %1122 = vmatprep.subr.mxu0 0.0
        %1123 = vmatpush1.msra.mxu0 0.0
        %1124 = vmatprep.subr.mxu0 0.0
        %1125 = vmatpush1.msra.mxu0 0.0
        %1126 = vmatprep.subr.mxu0 0.0
        %1127 = vmatpush1.msra.mxu0 0.0
        %1128 = vmatprep.subr.mxu0 0.0
        %1129 = vmatpush1.msra.mxu0 0.0
        %1130 = vmatprep.subr.mxu0 0.0
        %1131 = vmatpush1.msra.mxu0 0.0
        %1132 = vmatprep.subr.mxu0 0.0
        %1133 = vmatpush1.msra.mxu0 0.0
        %1134 = vmatprep.subr.mxu0 0.0
        %1135 = vmatpush1.msra.mxu0 0.0
        %1136 = vmatprep.subr.mxu0 0.0
        %1137 = vmatpush1.msra.mxu0 0.0
        %1138 = vmatprep.subr.mxu0 0.0
        %1139 = vmatpush1.msra.mxu0 0.0
        %1140 = vmatprep.subr.mxu0 0.0
        %1141 = vmatpush1.msra.mxu0 0.0
        %1142 = vmatprep.subr.mxu0 0.0
        %1143 = vmatpush1.msra.mxu0 0.0
        %1144 = vmatprep.subr.mxu0 0.0
        %1145 = vmatpush1.msra.mxu0 0.0
        %1146 = vmatprep.subr.mxu0 0.0
        %1147 = vmatpush1.msra.mxu0 0.0
        %1148 = vmatprep.subr.mxu0 0.0
        %1149 = vmatpush1.msra.mxu0 0.0
        %1150 = vmatprep.subr.mxu0 0.0
        %1151 = vmatpush1.msra.mxu0 0.0
        %1152 = vmatprep.subr.mxu0 0.0
        %1153 = vmatpush1.msra.mxu0 0.0
        %1154 = vmatprep.subr.mxu0 0.0
        %1155 = vmatpush1.msra.mxu0 0.0
        %1156 = vmatprep.subr.mxu0 0.0
        %1157 = vmatpush1.msra.mxu0 0.0
        %1158 = vmatprep.subr.mxu0 0.0
        %1159 = vmatpush1.msra.mxu0 0.0
        %1160 = vmatprep.mubr.f32.mxu0 0.0
        %1161 = vmatmul.mubr.f32.gmra.mrb[0].mxu0 %v1094
        %v1162 = vpop.f32.mrb[0].mxu0
        %v1163 = vadd.f32 0.0, %v1162
        %v1164 = vpop.f32.mrb[0].mxu0
        %1165 = vdwg.mxu0
        %v1166 = vrcp.pop %v1163
        %v1167 = vmul.f32 %v1091, %v1166
        %v1168 = vpack.c.bf16 %v1167, %v1167
        %1170 = vrot.lane.b32.xlu0 %v920, 96
        %v1171 = vpop.permute.xlu0 %1170
        %v1174 = vsel %vm1092, %v1168, 0
        %1176 = vmatprep.subr.bf16.mxu0 0
        %1177 = vmatpush1.bf16.msra.mxu0 %v1171
        %1178 = vmatprep.subr.bf16.mxu0 0
        %1179 = vmatpush1.bf16.msra.mxu0 0
        %1180 = vmatprep.subr.bf16.mxu0 0
        %1181 = vmatpush1.bf16.msra.mxu0 0
        %1182 = vmatprep.subr.bf16.mxu0 0
        %1183 = vmatpush1.bf16.msra.mxu0 0
        %1184 = vmatprep.subr.bf16.mxu0 0
        %1185 = vmatpush1.bf16.msra.mxu0 0
        %1186 = vmatprep.subr.bf16.mxu0 0
        %1187 = vmatpush1.bf16.msra.mxu0 0
        %1188 = vmatprep.subr.bf16.mxu0 0
        %1189 = vmatpush1.bf16.msra.mxu0 0
        %1190 = vmatprep.subr.bf16.mxu0 0
        %1191 = vmatpush1.bf16.msra.mxu0 0
        %1192 = vmatprep.subr.bf16.mxu0 0
        %1193 = vmatpush1.bf16.msra.mxu0 0
        %1194 = vmatprep.subr.bf16.mxu0 0
        %1195 = vmatpush1.bf16.msra.mxu0 0
        %1196 = vmatprep.subr.bf16.mxu0 0
        %1197 = vmatpush1.bf16.msra.mxu0 0
        %1198 = vmatprep.subr.bf16.mxu0 0
        %1199 = vmatpush1.bf16.msra.mxu0 0
        %1200 = vmatprep.subr.bf16.mxu0 0
        %1201 = vmatpush1.bf16.msra.mxu0 0
        %1202 = vmatprep.subr.bf16.mxu0 0
        %1203 = vmatpush1.bf16.msra.mxu0 0
        %1204 = vmatprep.subr.bf16.mxu0 0
        %1205 = vmatpush1.bf16.msra.mxu0 0
        %1206 = vmatprep.subr.bf16.mxu0 0
        %1207 = vmatpush1.bf16.msra.mxu0 0
        %1208 = vmatprep.mubr.bf16.mxu0 0
        %1209 = vmatmul.mubr.bf16.gmra.mrb[0].mxu0 %v1174
        %v1210 = vpop.f32.mrb[0].mxu0
        %v1211 = vadd.f32 0.0, %v1210
        %v1212 = vpop.f32.mrb[0].mxu0
        %v1213 = vpop.f32.mrb[0].mxu0
        %v1214 = vpop.f32.mrb[0].mxu0
        %1215 = vdwg.mxu0
        %v1216 = vpack.c.bf16 %v1211, %v1211
        %v1218 = vlaneseq
        %v1219 = vshrl.u32 %v1218, 7
        %v1220 = vsub.s32 0, %v1219
        %v1221 = vrot.slane %v953, %v1220
        %v1227 = vunpack.c.l.b16 %v949
        %v1228 = vunpack.c.l.b16 %v950
        %v1229 = vunpack.c.l.b16 %v951
        %v1230 = vunpack.c.l.b16 %v952
        %v1231 = vpack.c.b16 %v1228, %v1227
        %v1232 = vpack.c.b16 %v1230, %v1229
        %v1236 = vsel %vm856, %v1216, 0
        %1238 = vmatprep.subr.bf16.mxu0 0
        %1239 = vmatpush1.bf16.msra.mxu0 %v1231
        %1240 = vmatprep.subr.bf16.mxu0 0
        %1241 = vmatpush1.bf16.msra.mxu0 %v1232
        %1242 = vmatprep.subr.bf16.mxu0 0
        %1243 = vmatpush1.bf16.msra.mxu0 0
        %1244 = vmatprep.subr.bf16.mxu0 0
        %1245 = vmatpush1.bf16.msra.mxu0 0
        %1246 = vmatprep.subr.bf16.mxu0 0
        %1247 = vmatpush1.bf16.msra.mxu0 0
        %1248 = vmatprep.subr.bf16.mxu0 0
        %1249 = vmatpush1.bf16.msra.mxu0 0
        %1250 = vmatprep.subr.bf16.mxu0 0
        %1251 = vmatpush1.bf16.msra.mxu0 0
        %1252 = vmatprep.subr.bf16.mxu0 0
        %1253 = vmatpush1.bf16.msra.mxu0 0
        %1254 = vmatprep.subr.bf16.mxu0 0
        %1255 = vmatpush1.bf16.msra.mxu0 0
        %1256 = vmatprep.subr.bf16.mxu0 0
        %1257 = vmatpush1.bf16.msra.mxu0 0
        %1258 = vmatprep.subr.bf16.mxu0 0
        %1259 = vmatpush1.bf16.msra.mxu0 0
        %1260 = vmatprep.subr.bf16.mxu0 0
        %1261 = vmatpush1.bf16.msra.mxu0 0
        %1262 = vmatprep.subr.bf16.mxu0 0
        %1263 = vmatpush1.bf16.msra.mxu0 0
        %1264 = vmatprep.subr.bf16.mxu0 0
        %1265 = vmatpush1.bf16.msra.mxu0 0
        %1266 = vmatprep.subr.bf16.mxu0 0
        %1267 = vmatpush1.bf16.msra.mxu0 0
        %1268 = vmatprep.subr.bf16.mxu0 0
        %1269 = vmatpush1.bf16.msra.mxu0 0
        %1270 = vmatprep.mubr.bf16.mxu0 0
        %1271 = vmatmul.mubr.bf16.gmra.mrb[0].mxu0 %v1236
        %v1272 = vpop.f32.mrb[0].mxu0
        %v1273 = vadd.f32 %v1221, %v1272
        %v1274 = vpop.f32.mrb[0].mxu0
        %v1275 = vpop.f32.mrb[0].mxu0
        %v1276 = vpop.f32.mrb[0].mxu0
        %1277 = vdwg.mxu0
        %v1278 = vadd.f32 %v1273, %v831
        %vm1279 = vcmask 257024
        %v1280 = vsel %vm1279, %v1278, 0.0
        %1281 = vadd.xlane.f32.xlu0 %v1280
        %v1282 = vpop.xlane.xlu0 %1281
        %v1283 = vrcp.pop 32.0
        %v1284 = vmul.f32 %v1282, %v1283
        %v1285 = vsub.f32 %v1278, %v1284
        %v1286 = vmul.f32 %v1285, %v1285
        %v1287 = vsel %vm1279, %v1286, 0.0
        %1288 = vadd.xlane.f32.xlu0 %v1287
        %v1289 = vpop.xlane.xlu0 %1288
        %v1290 = vmul.f32 %v1289, %v1283
        %v1291 = vadd.f32 %v1290, 1e-05
        %v1292 = vrsqrt.pop %v1291
        %v1293 = vmul.f32 %v1285, %v1292
        %v1295 = vlaneseq
        %v1296 = vshrl.u32 %v1295, 7
        %v1297 = vsub.s32 0, %v1296
        %v1298 = vrot.slane %v954, %v1297
        %v1300 = vmul.f32 %v1293, %v1298
        %v1302 = vlaneseq
        %v1303 = vshrl.u32 %v1302, 7
        %v1304 = vsub.s32 0, %v1303
        %v1305 = vrot.slane %v955, %v1304
        %v1307 = vadd.f32 %v1300, %v1305
        %v1308 = vpack.c.bf16 %v1307, %v1307
        %v1310 = vlaneseq
        %v1311 = vshrl.u32 %v1310, 7
        %v1312 = vsub.s32 0, %v1311
        %v1313 = vrot.slane %v960, %v1312
        %v1319 = vunpack.c.l.b16 %v956
        %v1320 = vunpack.c.l.b16 %v957
        %v1321 = vunpack.c.l.b16 %v958
        %v1322 = vunpack.c.l.b16 %v959
        %v1323 = vpack.c.b16 %v1320, %v1319
        %v1324 = vpack.c.b16 %v1322, %v1321
        %v1328 = vsel %vm856, %v1308, 0
        %1330 = vmatprep.subr.bf16.mxu0 0
        %1331 = vmatpush1.bf16.msra.mxu0 %v1323
        %1332 = vmatprep.subr.bf16.mxu0 0
        %1333 = vmatpush1.bf16.msra.mxu0 %v1324
        %1334 = vmatprep.subr.bf16.mxu0 0
        %1335 = vmatpush1.bf16.msra.mxu0 0
        %1336 = vmatprep.subr.bf16.mxu0 0
        %1337 = vmatpush1.bf16.msra.mxu0 0
        %1338 = vmatprep.subr.bf16.mxu0 0
        %1339 = vmatpush1.bf16.msra.mxu0 0
        %1340 = vmatprep.subr.bf16.mxu0 0
        %1341 = vmatpush1.bf16.msra.mxu0 0
        %1342 = vmatprep.subr.bf16.mxu0 0
        %1343 = vmatpush1.bf16.msra.mxu0 0
        %1344 = vmatprep.subr.bf16.mxu0 0
        %1345 = vmatpush1.bf16.msra.mxu0 0
        %1346 = vmatprep.subr.bf16.mxu0 0
        %1347 = vmatpush1.bf16.msra.mxu0 0
        %1348 = vmatprep.subr.bf16.mxu0 0
        %1349 = vmatpush1.bf16.msra.mxu0 0
        %1350 = vmatprep.subr.bf16.mxu0 0
        %1351 = vmatpush1.bf16.msra.mxu0 0
        %1352 = vmatprep.subr.bf16.mxu0 0
        %1353 = vmatpush1.bf16.msra.mxu0 0
        %1354 = vmatprep.subr.bf16.mxu0 0
        %1355 = vmatpush1.bf16.msra.mxu0 0
        %1356 = vmatprep.subr.bf16.mxu0 0
        %1357 = vmatpush1.bf16.msra.mxu0 0
        %1358 = vmatprep.subr.bf16.mxu0 0
        %1359 = vmatpush1.bf16.msra.mxu0 0
        %1360 = vmatprep.subr.bf16.mxu0 0
        %1361 = vmatpush1.bf16.msra.mxu0 0
        %1362 = vmatprep.mubr.bf16.mxu0 0
        %1363 = vmatmul.mubr.bf16.gmra.mrb[0].mxu0 %v1328
        %v1364 = vpop.f32.mrb[0].mxu0
        %v1365 = vadd.f32 %v1313, %v1364
        %v1366 = vpop.f32.mrb[0].mxu0
        %v1367 = vpop.f32.mrb[0].mxu0
        %v1368 = vpop.f32.mrb[0].mxu0
        %1369 = vdwg.mxu0
        %v1370 = vmax.f32 %v1365, 0.0
        %v1371 = vpack.c.bf16 %v1370, %v1370
        %v1373 = vlaneseq
        %v1374 = vshrl.u32 %v1373, 7
        %v1375 = vsub.s32 0, %v1374
        %v1376 = vrot.slane %v969, %v1375
        %v1386 = vunpack.c.l.b16 %v961
        %v1387 = vunpack.c.l.b16 %v962
        %v1388 = vunpack.c.l.b16 %v963
        %v1389 = vunpack.c.l.b16 %v964
        %v1390 = vunpack.c.l.b16 %v965
        %v1391 = vunpack.c.l.b16 %v966
        %v1392 = vunpack.c.l.b16 %v967
        %v1393 = vunpack.c.l.b16 %v968
        %v1394 = vpack.c.b16 %v1387, %v1386
        %v1395 = vpack.c.b16 %v1389, %v1388
        %v1396 = vpack.c.b16 %v1391, %v1390
        %v1397 = vpack.c.b16 %v1393, %v1392
        %vm1402 = vcmask 523264
        %v1404 = vsel %vm1402, %v1371, 0
        %1406 = vmatprep.subr.bf16.mxu0 0
        %1407 = vmatpush1.bf16.msra.mxu0 %v1394
        %1408 = vmatprep.subr.bf16.mxu0 0
        %1409 = vmatpush1.bf16.msra.mxu0 %v1395
        %1410 = vmatprep.subr.bf16.mxu0 0
        %1411 = vmatpush1.bf16.msra.mxu0 %v1396
        %1412 = vmatprep.subr.bf16.mxu0 0
        %1413 = vmatpush1.bf16.msra.mxu0 %v1397
        %1414 = vmatprep.subr.bf16.mxu0 0
        %1415 = vmatpush1.bf16.msra.mxu0 0
        %1416 = vmatprep.subr.bf16.mxu0 0
        %1417 = vmatpush1.bf16.msra.mxu0 0
        %1418 = vmatprep.subr.bf16.mxu0 0
        %1419 = vmatpush1.bf16.msra.mxu0 0
        %1420 = vmatprep.subr.bf16.mxu0 0
        %1421 = vmatpush1.bf16.msra.mxu0 0
        %1422 = vmatprep.subr.bf16.mxu0 0
        %1423 = vmatpush1.bf16.msra.mxu0 0
        %1424 = vmatprep.subr.bf16.mxu0 0
        %1425 = vmatpush1.bf16.msra.mxu0 0
        %1426 = vmatprep.subr.bf16.mxu0 0
        %1427 = vmatpush1.bf16.msra.mxu0 0
        %1428 = vmatprep.subr.bf16.mxu0 0
        %1429 = vmatpush1.bf16.msra.mxu0 0
        %1430 = vmatprep.subr.bf16.mxu0 0
        %1431 = vmatpush1.bf16.msra.mxu0 0
        %1432 = vmatprep.subr.bf16.mxu0 0
        %1433 = vmatpush1.bf16.msra.mxu0 0
        %1434 = vmatprep.subr.bf16.mxu0 0
        %1435 = vmatpush1.bf16.msra.mxu0 0
        %1436 = vmatprep.subr.bf16.mxu0 0
        %1437 = vmatpush1.bf16.msra.mxu0 0
        %1438 = vmatprep.mubr.bf16.mxu0 0
        %1439 = vmatmul.mubr.bf16.gmra.mrb[0].mxu0 %v1404
        %v1440 = vpop.f32.mrb[0].mxu0
        %v1441 = vadd.f32 %v1376, %v1440
        %v1442 = vpop.f32.mrb[0].mxu0
        %v1443 = vpop.f32.mrb[0].mxu0
        %v1444 = vpop.f32.mrb[0].mxu0
        %1445 = vdwg.mxu0
        %v1446 = vadd.f32 %v1441, %v1307
        %v1447 = vsel %vm1279, %v1446, 0.0
        %1448 = vadd.xlane.f32.xlu0 %v1447
        %v1449 = vpop.xlane.xlu0 %1448
        %v1450 = vmul.f32 %v1449, %v1283
        %v1451 = vsub.f32 %v1446, %v1450
        %v1452 = vmul.f32 %v1451, %v1451
        %v1453 = vsel %vm1279, %v1452, 0.0
        %1454 = vadd.xlane.f32.xlu0 %v1453
        %v1455 = vpop.xlane.xlu0 %1454
        %v1456 = vmul.f32 %v1455, %v1283
        %v1457 = vadd.f32 %v1456, 1e-05
        %v1458 = vrsqrt.pop %v1457
        %v1459 = vmul.f32 %v1451, %v1458
        %v1461 = vlaneseq
        %v1462 = vshrl.u32 %v1461, 7
        %v1463 = vsub.s32 0, %v1462
        %v1464 = vrot.slane %v970, %v1463
        %v1466 = vmul.f32 %v1459, %v1464
        %v1468 = vlaneseq
        %v1469 = vshrl.u32 %v1468, 7
        %v1470 = vsub.s32 0, %v1469
        %v1471 = vrot.slane %v971, %v1470
        %v1473 = vadd.f32 %v1466, %v1471
        %1474 = vst.msk [vmem:[#allocation2] sm:$0xf] %vm1279, %v1473
        %p1475 = scmp.eq.s32.totalorder %s37, 1
        // Predicated region
        $region97: #{_lambda_.3} parent=91 // pred_check
          %p1476 = pneg %p1475
        $region98: #{_lambda_.3} parent=91 // pred_check_branch
          %1478 = sbr.rel (%p1476) target = $region100
        $region99: #{_lambda_.3} parent=91 // pred_region
          %1479 = vst.msk [vmem:[%s763] sm:$0xf] %vm1279, %v1473
        $region100: #{_lambda_.3} parent=91 // pred_fallthru
          _
        %s1480 = sand.u32 %s510, 1
        %s1481 = scalar_lea.sflag [#allocation4], %s1480
        %s1482 = sand.u32 %s510, 1
        %s1483 = smul.addr %s1482, 4
        %s1484 = scalar_lea.vmem [#allocation3], %s1483
        // Predicated region
        $region101: #{_lambda_.3} parent=91 // pred_check
          %p1485 = pneg %p520
        $region102: #{_lambda_.3} parent=91 // pred_check_branch
          %1487 = sbr.rel (%p1485) target = $region104
        $region103: #{_lambda_.3} parent=91 // pred_region
          %s1489 = ssub.s32 64, 64
          %1490 = vsyncadd %s1481, %s1489
          %s1491 = smul.addr %s36, 64
          %s1492 = scalar_lea.hbm %s18, %s1491
          %s1494 = sshll.u32 %s1484, 4
          %s1495 = int_to_ptr.vmem [resolvable:$true] %s1494
          %1497 = dma.vmem_to_hbm [thread:$0]  %s1495, 64, %s1492, %s1481
        $region104: #{_lambda_.3} parent=91 // pred_fallthru
          _
      $region92: #{_lambda_.3} parent=5 // pred_fallthru
        _
      %p1498 = scmp.le.s32.totalorder 2, %s27
      // Predicated region
      $region105: #{_lambda_.3} parent=5 // pred_check
        %p1499 = pneg %p1498
      $region106: #{_lambda_.3} parent=5 // pred_check_branch
        %1501 = sbr.rel (%p1499) target = $region108
      $region107: #{_lambda_.3} parent=5 // pred_region
        %s1502 = ssub.s32 %s27, 2
        // Predicated region
        $region109: #{_lambda_.3} parent=107 // pred_check
          %p1503 = pneg %p526
        $region110: #{_lambda_.3} parent=107 // pred_check_branch
          %1505 = sbr.rel (%p1503) target = $region112
        $region111: #{_lambda_.3} parent=107 // pred_region
          %s1506 = sand.u32 %s511, 1
          %s1507 = scalar_lea.sflag [#allocation4], %s1506
          %s1508 = sand.u32 %s511, 1
          %s1509 = smul.addr %s1508, 4
          %s1510 = scalar_lea.vmem [#allocation3], %s1509
          %1511 = dma.done %s1507, 64
        $region112: #{_lambda_.3} parent=107 // pred_fallthru
          _
      $region108: #{_lambda_.3} parent=5 // pred_fallthru
        _
    $region6: #{_lambda_.3} parent=1 // loop_footer
      %s31 = sadd.s32 1, %s27
    $region7: #{_lambda_.3} parent=1 // loop_footer_branch
      %26 = sbr.rel target = $region3
    $region8: #{_lambda_.3} parent=1 // loop_exit
      _
    %1512 = vsyncpa [#allocation4], 1
    %s1513 = scalar_lea.sflag [#allocation4], 1
    %1514 = vsyncpa %s1513, 1

// kernel: _lambda_.2
$region0: #{_lambda_.2}
  #allocation0 [shape = 'u32[]', space=smem, size = 0x4, offset = 0x4, fixed_abs, tag = 'smem constant byte address 0x4 - core index']
  #allocation1 [shape = 'u32[144,128]{1,0:T(1,128)}', space=vmem, size = 0x12000, scoped, tag = 'internal scratch']
  #allocation2 [shape = 'f32[8,32]{1,0:T(8,128)}', space=vmem, size = 0x1000, scoped, tag = 'scratch operand']
  %s0 = inlined_call_operand.vmem [shape: bf16[8,768], index: 0, kind: input, shape index: {}]
  %s1 = inlined_call_operand.vmem [shape: f32[8,32], index: 1, kind: input, shape index: {}]
  %s2 = inlined_call_operand.vmem [shape: f32[20,20], index: 2, kind: input, shape index: {}]
  %s3 = inlined_call_operand.vmem [shape: bf16[768,96], index: 3, kind: input, shape index: {}]
  %s4 = inlined_call_operand.vmem [shape: f32[1,96], index: 4, kind: input, shape index: {}]
  %s5 = inlined_call_operand.vmem [shape: bf16[96,32], index: 5, kind: input, shape index: {}]
  %s6 = inlined_call_operand.vmem [shape: f32[1,32], index: 6, kind: input, shape index: {}]
  %s7 = inlined_call_operand.vmem [shape: bf16[2,20,32], index: 7, kind: input, shape index: {}]
  %s8 = inlined_call_operand.vmem [shape: bf16[2,20,32], index: 8, kind: input, shape index: {}]
  %s9 = inlined_call_operand.vmem [shape: bf16[2,32,32], index: 9, kind: input, shape index: {}]
  %s10 = inlined_call_operand.vmem [shape: f32[2,1,32], index: 10, kind: input, shape index: {}]
  %s11 = inlined_call_operand.vmem [shape: bf16[2,32,32], index: 11, kind: input, shape index: {}]
  %s12 = inlined_call_operand.vmem [shape: f32[2,1,32], index: 12, kind: input, shape index: {}]
  %s13 = inlined_call_operand.vmem [shape: f32[2,1,32], index: 13, kind: input, shape index: {}]
  %s14 = inlined_call_operand.vmem [shape: f32[2,1,32], index: 14, kind: input, shape index: {}]
  %s15 = inlined_call_operand.vmem [shape: bf16[2,32,64], index: 15, kind: input, shape index: {}]
  %s16 = inlined_call_operand.vmem [shape: f32[2,1,64], index: 16, kind: input, shape index: {}]
  %s17 = inlined_call_operand.vmem [shape: bf16[2,64,32], index: 17, kind: input, shape index: {}]
  %s18 = inlined_call_operand.vmem [shape: f32[2,1,32], index: 18, kind: input, shape index: {}]
  %s19 = inlined_call_operand.vmem [shape: f32[2,1,32], index: 19, kind: input, shape index: {}]
  %s20 = inlined_call_operand.vmem [shape: f32[2,1,32], index: 20, kind: input, shape index: {}]
  %s21 = inlined_call_operand.vmem [shape: f32[8,32], index: 21, kind: output, shape index: {}]
  %s22 = sld [smem:[#allocation0]]
  $region125: #{_lambda_.2} parent=0
    _
  %s24 = ssub.s32 1, %s22
  %s25 = scalar_select 0, %s24, %s22
  loop: start=0, step=1, limit=4
  $region2: #{_lambda_.2} parent=0 // loop_pre_header
    _
  $region3: #{_lambda_.2} parent=0 // loop_header
    %s27 = sphi 0, %s31
    %p28 = scmp.ge.s32.totalorder %s27, 4
    %s34 = sphi 0, %s46
    %s35 = sphi 0, %s42
    %s36 = sphi 0, %s34
    %s37 = sphi 0, %s35
    %s38 = sphi 0, %s36
    %s39 = sphi 0, %s37
    %s49 = sphi 0, %s51
    %s52 = sphi 0, %s49
    %s53 = sphi 0, %s52
    %s69 = sphi 0, %s53
    %s75 = sphi 0, %s77
    %s78 = sphi 0, %s75
    %s79 = sphi 0, %s78
    %s95 = sphi 0, %s79
    %s99 = sphi 0, %s99
    %s101 = sphi 0, %s99
    %s102 = sphi 0, %s101
    %s116 = sphi 0, %s102
    %s120 = sphi 0, %s120
    %s122 = sphi 0, %s120
    %s123 = sphi 0, %s122
    %s137 = sphi 0, %s123
    %s141 = sphi 0, %s141
    %s143 = sphi 0, %s141
    %s144 = sphi 0, %s143
    %s158 = sphi 0, %s144
    %s162 = sphi 0, %s162
    %s164 = sphi 0, %s162
    %s165 = sphi 0, %s164
    %s179 = sphi 0, %s165
    %s183 = sphi 0, %s183
    %s185 = sphi 0, %s183
    %s186 = sphi 0, %s185
    %s200 = sphi 0, %s186
    %s206 = sphi 0, %s208
    %s209 = sphi 0, %s206
    %s210 = sphi 0, %s209
    %s226 = sphi 0, %s210
    %s232 = sphi 0, %s234
    %s235 = sphi 0, %s232
    %s236 = sphi 0, %s235
    %s252 = sphi 0, %s236
    %s258 = sphi 0, %s260
    %s261 = sphi 0, %s258
    %s262 = sphi 0, %s261
    %s278 = sphi 0, %s262
    %s284 = sphi 0, %s286
    %s287 = sphi 0, %s284
    %s288 = sphi 0, %s287
    %s304 = sphi 0, %s288
    %s310 = sphi 0, %s312
    %s313 = sphi 0, %s310
    %s314 = sphi 0, %s313
    %s330 = sphi 0, %s314
    %s336 = sphi 0, %s338
    %s339 = sphi 0, %s336
    %s340 = sphi 0, %s339
    %s356 = sphi 0, %s340
    %s362 = sphi 0, %s364
    %s365 = sphi 0, %s362
    %s366 = sphi 0, %s365
    %s382 = sphi 0, %s366
    %s388 = sphi 0, %s390
    %s391 = sphi 0, %s388
    %s392 = sphi 0, %s391
    %s408 = sphi 0, %s392
    %s414 = sphi 0, %s416
    %s417 = sphi 0, %s414
    %s418 = sphi 0, %s417
    %s434 = sphi 0, %s418
    %s440 = sphi 0, %s442
    %s443 = sphi 0, %s440
    %s444 = sphi 0, %s443
    %s460 = sphi 0, %s444
    %s466 = sphi 0, %s468
    %s469 = sphi 0, %s466
    %s470 = sphi 0, %s469
    %s486 = sphi 0, %s470
    %s492 = sphi 0, %s494
    %s495 = sphi 0, %s492
    %s496 = sphi 0, %s495
    %s512 = sphi 0, %s496
    %s518 = sphi 0, %s520
    %s521 = sphi 0, %s518
    %s522 = sphi 0, %s521
    %s538 = sphi 0, %s522
    %s544 = sphi 0, %s546
    %s547 = sphi 0, %s544
    %s548 = sphi 0, %s547
    %s564 = sphi 0, %s548
    %s570 = sphi 0, %s572
    %s573 = sphi 0, %s570
    %s574 = sphi 0, %s573
    %s590 = sphi 0, %s574
  $region4: #{_lambda_.2} parent=0 // loop_header_branch
    %30 = sbr.rel (%p28) target = $region8
  $region5: #{_lambda_.2} parent=0 // loop_body
    %s32 = ssub.s32 %s27, 1
    %s33 = ssub.s32 %s27, 2
    %s40 = sadd.s32 1, %s35
    %p41 = scmp.ge.s32.totalorder %s40, 2
    %s42 = scalar_select %p41, 0, %s40
    %s43 = sadd.s32 1, %s34
    %s44 = scalar_select %p41, %s43, %s34
    %p45 = scmp.ge.s32.totalorder %s44, 1
    %s46 = scalar_select %p45, 0, %s44
    %s47 = ssub.s32 %s34, %s46
    %p48 = scmp.eq.s32.totalorder %s47, 0
    %s50 = sadd.s32 %s49, 1
    %s51 = scalar_select %p48, %s49, %s50
    %p54 = pneg %p48
    %p55 = scmp.eq.s32.totalorder %s27, 1
    %p56 = por %p54, %p55
    %p57 = scmp.ne.s32.totalorder %s49, %s52
    %p58 = scmp.eq.s32.totalorder %s27, 0
    %p59 = por %p57, %p58
    %p60 = scmp.ne.s32.totalorder %s49, %s52
    %p61 = scmp.eq.s32.totalorder %s32, 1
    %p62 = por %p60, %p61
    %p63 = scmp.ne.s32.totalorder %s52, %s53
    %p64 = scmp.eq.s32.totalorder %s32, 0
    %p65 = por %p63, %p64
    %p66 = scmp.ne.s32.totalorder %s52, %s53
    %p67 = scmp.eq.s32.totalorder %s33, 1
    %p68 = por %p66, %p67
    %p70 = scmp.ne.s32.totalorder %s53, %s69
    %p71 = scmp.eq.s32.totalorder %s33, 0
    %p72 = por %p70, %p71
    %s73 = ssub.s32 %s34, %s46
    %p74 = scmp.eq.s32.totalorder %s73, 0
    %s76 = sadd.s32 %s75, 1
    %s77 = scalar_select %p74, %s75, %s76
    %p80 = pneg %p74
    %p81 = scmp.eq.s32.totalorder %s27, 1
    %p82 = por %p80, %p81
    %p83 = scmp.ne.s32.totalorder %s75, %s78
    %p84 = scmp.eq.s32.totalorder %s27, 0
    %p85 = por %p83, %p84
    %p86 = scmp.ne.s32.totalorder %s75, %s78
    %p87 = scmp.eq.s32.totalorder %s32, 1
    %p88 = por %p86, %p87
    %p89 = scmp.ne.s32.totalorder %s78, %s79
    %p90 = scmp.eq.s32.totalorder %s32, 0
    %p91 = por %p89, %p90
    %p92 = scmp.ne.s32.totalorder %s78, %s79
    %p93 = scmp.eq.s32.totalorder %s33, 1
    %p94 = por %p92, %p93
    %p96 = scmp.ne.s32.totalorder %s79, %s95
    %p97 = scmp.eq.s32.totalorder %s33, 0
    %p98 = por %p96, %p97
    %s100 = sadd.s32 %s99, 1
    %p103 = scmp.eq.s32.totalorder %s27, 1
    %p104 = scmp.ne.s32.totalorder %s99, %s101
    %p105 = scmp.eq.s32.totalorder %s27, 0
    %p106 = por %p104, %p105
    %p107 = scmp.ne.s32.totalorder %s99, %s101
    %p108 = scmp.eq.s32.totalorder %s32, 1
    %p109 = por %p107, %p108
    %p110 = scmp.ne.s32.totalorder %s101, %s102
    %p111 = scmp.eq.s32.totalorder %s32, 0
    %p112 = por %p110, %p111
    %p113 = scmp.ne.s32.totalorder %s101, %s102
    %p114 = scmp.eq.s32.totalorder %s33, 1
    %p115 = por %p113, %p114
    %p117 = scmp.ne.s32.totalorder %s102, %s116
    %p118 = scmp.eq.s32.totalorder %s33, 0
    %p119 = por %p117, %p118
    %s121 = sadd.s32 %s120, 1
    %p124 = scmp.eq.s32.totalorder %s27, 1
    %p125 = scmp.ne.s32.totalorder %s120, %s122
    %p126 = scmp.eq.s32.totalorder %s27, 0
    %p127 = por %p125, %p126
    %p128 = scmp.ne.s32.totalorder %s120, %s122
    %p129 = scmp.eq.s32.totalorder %s32, 1
    %p130 = por %p128, %p129
    %p131 = scmp.ne.s32.totalorder %s122, %s123
    %p132 = scmp.eq.s32.totalorder %s32, 0
    %p133 = por %p131, %p132
    %p134 = scmp.ne.s32.totalorder %s122, %s123
    %p135 = scmp.eq.s32.totalorder %s33, 1
    %p136 = por %p134, %p135
    %p138 = scmp.ne.s32.totalorder %s123, %s137
    %p139 = scmp.eq.s32.totalorder %s33, 0
    %p140 = por %p138, %p139
    %s142 = sadd.s32 %s141, 1
    %p145 = scmp.eq.s32.totalorder %s27, 1
    %p146 = scmp.ne.s32.totalorder %s141, %s143
    %p147 = scmp.eq.s32.totalorder %s27, 0
    %p148 = por %p146, %p147
    %p149 = scmp.ne.s32.totalorder %s141, %s143
    %p150 = scmp.eq.s32.totalorder %s32, 1
    %p151 = por %p149, %p150
    %p152 = scmp.ne.s32.totalorder %s143, %s144
    %p153 = scmp.eq.s32.totalorder %s32, 0
    %p154 = por %p152, %p153
    %p155 = scmp.ne.s32.totalorder %s143, %s144
    %p156 = scmp.eq.s32.totalorder %s33, 1
    %p157 = por %p155, %p156
    %p159 = scmp.ne.s32.totalorder %s144, %s158
    %p160 = scmp.eq.s32.totalorder %s33, 0
    %p161 = por %p159, %p160
    %s163 = sadd.s32 %s162, 1
    %p166 = scmp.eq.s32.totalorder %s27, 1
    %p167 = scmp.ne.s32.totalorder %s162, %s164
    %p168 = scmp.eq.s32.totalorder %s27, 0
    %p169 = por %p167, %p168
    %p170 = scmp.ne.s32.totalorder %s162, %s164
    %p171 = scmp.eq.s32.totalorder %s32, 1
    %p172 = por %p170, %p171
    %p173 = scmp.ne.s32.totalorder %s164, %s165
    %p174 = scmp.eq.s32.totalorder %s32, 0
    %p175 = por %p173, %p174
    %p176 = scmp.ne.s32.totalorder %s164, %s165
    %p177 = scmp.eq.s32.totalorder %s33, 1
    %p178 = por %p176, %p177
    %p180 = scmp.ne.s32.totalorder %s165, %s179
    %p181 = scmp.eq.s32.totalorder %s33, 0
    %p182 = por %p180, %p181
    %s184 = sadd.s32 %s183, 1
    %p187 = scmp.eq.s32.totalorder %s27, 1
    %p188 = scmp.ne.s32.totalorder %s183, %s185
    %p189 = scmp.eq.s32.totalorder %s27, 0
    %p190 = por %p188, %p189
    %p191 = scmp.ne.s32.totalorder %s183, %s185
    %p192 = scmp.eq.s32.totalorder %s32, 1
    %p193 = por %p191, %p192
    %p194 = scmp.ne.s32.totalorder %s185, %s186
    %p195 = scmp.eq.s32.totalorder %s32, 0
    %p196 = por %p194, %p195
    %p197 = scmp.ne.s32.totalorder %s185, %s186
    %p198 = scmp.eq.s32.totalorder %s33, 1
    %p199 = por %p197, %p198
    %p201 = scmp.ne.s32.totalorder %s186, %s200
    %p202 = scmp.eq.s32.totalorder %s33, 0
    %p203 = por %p201, %p202
    %s204 = ssub.s32 %s35, %s42
    %p205 = scmp.eq.s32.totalorder %s204, 0
    %s207 = sadd.s32 %s206, 1
    %s208 = scalar_select %p205, %s206, %s207
    %p211 = pneg %p205
    %p212 = scmp.eq.s32.totalorder %s27, 1
    %p213 = por %p211, %p212
    %p214 = scmp.ne.s32.totalorder %s206, %s209
    %p215 = scmp.eq.s32.totalorder %s27, 0
    %p216 = por %p214, %p215
    %p217 = scmp.ne.s32.totalorder %s206, %s209
    %p218 = scmp.eq.s32.totalorder %s32, 1
    %p219 = por %p217, %p218
    %p220 = scmp.ne.s32.totalorder %s209, %s210
    %p221 = scmp.eq.s32.totalorder %s32, 0
    %p222 = por %p220, %p221
    %p223 = scmp.ne.s32.totalorder %s209, %s210
    %p224 = scmp.eq.s32.totalorder %s33, 1
    %p225 = por %p223, %p224
    %p227 = scmp.ne.s32.totalorder %s210, %s226
    %p228 = scmp.eq.s32.totalorder %s33, 0
    %p229 = por %p227, %p228
    %s230 = ssub.s32 %s35, %s42
    %p231 = scmp.eq.s32.totalorder %s230, 0
    %s233 = sadd.s32 %s232, 1
    %s234 = scalar_select %p231, %s232, %s233
    %p237 = pneg %p231
    %p238 = scmp.eq.s32.totalorder %s27, 1
    %p239 = por %p237, %p238
    %p240 = scmp.ne.s32.totalorder %s232, %s235
    %p241 = scmp.eq.s32.totalorder %s27, 0
    %p242 = por %p240, %p241
    %p243 = scmp.ne.s32.totalorder %s232, %s235
    %p244 = scmp.eq.s32.totalorder %s32, 1
    %p245 = por %p243, %p244
    %p246 = scmp.ne.s32.totalorder %s235, %s236
    %p247 = scmp.eq.s32.totalorder %s32, 0
    %p248 = por %p246, %p247
    %p249 = scmp.ne.s32.totalorder %s235, %s236
    %p250 = scmp.eq.s32.totalorder %s33, 1
    %p251 = por %p249, %p250
    %p253 = scmp.ne.s32.totalorder %s236, %s252
    %p254 = scmp.eq.s32.totalorder %s33, 0
    %p255 = por %p253, %p254
    %s256 = ssub.s32 %s35, %s42
    %p257 = scmp.eq.s32.totalorder %s256, 0
    %s259 = sadd.s32 %s258, 1
    %s260 = scalar_select %p257, %s258, %s259
    %p263 = pneg %p257
    %p264 = scmp.eq.s32.totalorder %s27, 1
    %p265 = por %p263, %p264
    %p266 = scmp.ne.s32.totalorder %s258, %s261
    %p267 = scmp.eq.s32.totalorder %s27, 0
    %p268 = por %p266, %p267
    %p269 = scmp.ne.s32.totalorder %s258, %s261
    %p270 = scmp.eq.s32.totalorder %s32, 1
    %p271 = por %p269, %p270
    %p272 = scmp.ne.s32.totalorder %s261, %s262
    %p273 = scmp.eq.s32.totalorder %s32, 0
    %p274 = por %p272, %p273
    %p275 = scmp.ne.s32.totalorder %s261, %s262
    %p276 = scmp.eq.s32.totalorder %s33, 1
    %p277 = por %p275, %p276
    %p279 = scmp.ne.s32.totalorder %s262, %s278
    %p280 = scmp.eq.s32.totalorder %s33, 0
    %p281 = por %p279, %p280
    %s282 = ssub.s32 %s35, %s42
    %p283 = scmp.eq.s32.totalorder %s282, 0
    %s285 = sadd.s32 %s284, 1
    %s286 = scalar_select %p283, %s284, %s285
    %p289 = pneg %p283
    %p290 = scmp.eq.s32.totalorder %s27, 1
    %p291 = por %p289, %p290
    %p292 = scmp.ne.s32.totalorder %s284, %s287
    %p293 = scmp.eq.s32.totalorder %s27, 0
    %p294 = por %p292, %p293
    %p295 = scmp.ne.s32.totalorder %s284, %s287
    %p296 = scmp.eq.s32.totalorder %s32, 1
    %p297 = por %p295, %p296
    %p298 = scmp.ne.s32.totalorder %s287, %s288
    %p299 = scmp.eq.s32.totalorder %s32, 0
    %p300 = por %p298, %p299
    %p301 = scmp.ne.s32.totalorder %s287, %s288
    %p302 = scmp.eq.s32.totalorder %s33, 1
    %p303 = por %p301, %p302
    %p305 = scmp.ne.s32.totalorder %s288, %s304
    %p306 = scmp.eq.s32.totalorder %s33, 0
    %p307 = por %p305, %p306
    %s308 = ssub.s32 %s35, %s42
    %p309 = scmp.eq.s32.totalorder %s308, 0
    %s311 = sadd.s32 %s310, 1
    %s312 = scalar_select %p309, %s310, %s311
    %p315 = pneg %p309
    %p316 = scmp.eq.s32.totalorder %s27, 1
    %p317 = por %p315, %p316
    %p318 = scmp.ne.s32.totalorder %s310, %s313
    %p319 = scmp.eq.s32.totalorder %s27, 0
    %p320 = por %p318, %p319
    %p321 = scmp.ne.s32.totalorder %s310, %s313
    %p322 = scmp.eq.s32.totalorder %s32, 1
    %p323 = por %p321, %p322
    %p324 = scmp.ne.s32.totalorder %s313, %s314
    %p325 = scmp.eq.s32.totalorder %s32, 0
    %p326 = por %p324, %p325
    %p327 = scmp.ne.s32.totalorder %s313, %s314
    %p328 = scmp.eq.s32.totalorder %s33, 1
    %p329 = por %p327, %p328
    %p331 = scmp.ne.s32.totalorder %s314, %s330
    %p332 = scmp.eq.s32.totalorder %s33, 0
    %p333 = por %p331, %p332
    %s334 = ssub.s32 %s35, %s42
    %p335 = scmp.eq.s32.totalorder %s334, 0
    %s337 = sadd.s32 %s336, 1
    %s338 = scalar_select %p335, %s336, %s337
    %p341 = pneg %p335
    %p342 = scmp.eq.s32.totalorder %s27, 1
    %p343 = por %p341, %p342
    %p344 = scmp.ne.s32.totalorder %s336, %s339
    %p345 = scmp.eq.s32.totalorder %s27, 0
    %p346 = por %p344, %p345
    %p347 = scmp.ne.s32.totalorder %s336, %s339
    %p348 = scmp.eq.s32.totalorder %s32, 1
    %p349 = por %p347, %p348
    %p350 = scmp.ne.s32.totalorder %s339, %s340
    %p351 = scmp.eq.s32.totalorder %s32, 0
    %p352 = por %p350, %p351
    %p353 = scmp.ne.s32.totalorder %s339, %s340
    %p354 = scmp.eq.s32.totalorder %s33, 1
    %p355 = por %p353, %p354
    %p357 = scmp.ne.s32.totalorder %s340, %s356
    %p358 = scmp.eq.s32.totalorder %s33, 0
    %p359 = por %p357, %p358
    %s360 = ssub.s32 %s35, %s42
    %p361 = scmp.eq.s32.totalorder %s360, 0
    %s363 = sadd.s32 %s362, 1
    %s364 = scalar_select %p361, %s362, %s363
    %p367 = pneg %p361
    %p368 = scmp.eq.s32.totalorder %s27, 1
    %p369 = por %p367, %p368
    %p370 = scmp.ne.s32.totalorder %s362, %s365
    %p371 = scmp.eq.s32.totalorder %s27, 0
    %p372 = por %p370, %p371
    %p373 = scmp.ne.s32.totalorder %s362, %s365
    %p374 = scmp.eq.s32.totalorder %s32, 1
    %p375 = por %p373, %p374
    %p376 = scmp.ne.s32.totalorder %s365, %s366
    %p377 = scmp.eq.s32.totalorder %s32, 0
    %p378 = por %p376, %p377
    %p379 = scmp.ne.s32.totalorder %s365, %s366
    %p380 = scmp.eq.s32.totalorder %s33, 1
    %p381 = por %p379, %p380
    %p383 = scmp.ne.s32.totalorder %s366, %s382
    %p384 = scmp.eq.s32.totalorder %s33, 0
    %p385 = por %p383, %p384
    %s386 = ssub.s32 %s35, %s42
    %p387 = scmp.eq.s32.totalorder %s386, 0
    %s389 = sadd.s32 %s388, 1
    %s390 = scalar_select %p387, %s388, %s389
    %p393 = pneg %p387
    %p394 = scmp.eq.s32.totalorder %s27, 1
    %p395 = por %p393, %p394
    %p396 = scmp.ne.s32.totalorder %s388, %s391
    %p397 = scmp.eq.s32.totalorder %s27, 0
    %p398 = por %p396, %p397
    %p399 = scmp.ne.s32.totalorder %s388, %s391
    %p400 = scmp.eq.s32.totalorder %s32, 1
    %p401 = por %p399, %p400
    %p402 = scmp.ne.s32.totalorder %s391, %s392
    %p403 = scmp.eq.s32.totalorder %s32, 0
    %p404 = por %p402, %p403
    %p405 = scmp.ne.s32.totalorder %s391, %s392
    %p406 = scmp.eq.s32.totalorder %s33, 1
    %p407 = por %p405, %p406
    %p409 = scmp.ne.s32.totalorder %s392, %s408
    %p410 = scmp.eq.s32.totalorder %s33, 0
    %p411 = por %p409, %p410
    %s412 = ssub.s32 %s35, %s42
    %p413 = scmp.eq.s32.totalorder %s412, 0
    %s415 = sadd.s32 %s414, 1
    %s416 = scalar_select %p413, %s414, %s415
    %p419 = pneg %p413
    %p420 = scmp.eq.s32.totalorder %s27, 1
    %p421 = por %p419, %p420
    %p422 = scmp.ne.s32.totalorder %s414, %s417
    %p423 = scmp.eq.s32.totalorder %s27, 0
    %p424 = por %p422, %p423
    %p425 = scmp.ne.s32.totalorder %s414, %s417
    %p426 = scmp.eq.s32.totalorder %s32, 1
    %p427 = por %p425, %p426
    %p428 = scmp.ne.s32.totalorder %s417, %s418
    %p429 = scmp.eq.s32.totalorder %s32, 0
    %p430 = por %p428, %p429
    %p431 = scmp.ne.s32.totalorder %s417, %s418
    %p432 = scmp.eq.s32.totalorder %s33, 1
    %p433 = por %p431, %p432
    %p435 = scmp.ne.s32.totalorder %s418, %s434
    %p436 = scmp.eq.s32.totalorder %s33, 0
    %p437 = por %p435, %p436
    %s438 = ssub.s32 %s35, %s42
    %p439 = scmp.eq.s32.totalorder %s438, 0
    %s441 = sadd.s32 %s440, 1
    %s442 = scalar_select %p439, %s440, %s441
    %p445 = pneg %p439
    %p446 = scmp.eq.s32.totalorder %s27, 1
    %p447 = por %p445, %p446
    %p448 = scmp.ne.s32.totalorder %s440, %s443
    %p449 = scmp.eq.s32.totalorder %s27, 0
    %p450 = por %p448, %p449
    %p451 = scmp.ne.s32.totalorder %s440, %s443
    %p452 = scmp.eq.s32.totalorder %s32, 1
    %p453 = por %p451, %p452
    %p454 = scmp.ne.s32.totalorder %s443, %s444
    %p455 = scmp.eq.s32.totalorder %s32, 0
    %p456 = por %p454, %p455
    %p457 = scmp.ne.s32.totalorder %s443, %s444
    %p458 = scmp.eq.s32.totalorder %s33, 1
    %p459 = por %p457, %p458
    %p461 = scmp.ne.s32.totalorder %s444, %s460
    %p462 = scmp.eq.s32.totalorder %s33, 0
    %p463 = por %p461, %p462
    %s464 = ssub.s32 %s35, %s42
    %p465 = scmp.eq.s32.totalorder %s464, 0
    %s467 = sadd.s32 %s466, 1
    %s468 = scalar_select %p465, %s466, %s467
    %p471 = pneg %p465
    %p472 = scmp.eq.s32.totalorder %s27, 1
    %p473 = por %p471, %p472
    %p474 = scmp.ne.s32.totalorder %s466, %s469
    %p475 = scmp.eq.s32.totalorder %s27, 0
    %p476 = por %p474, %p475
    %p477 = scmp.ne.s32.totalorder %s466, %s469
    %p478 = scmp.eq.s32.totalorder %s32, 1
    %p479 = por %p477, %p478
    %p480 = scmp.ne.s32.totalorder %s469, %s470
    %p481 = scmp.eq.s32.totalorder %s32, 0
    %p482 = por %p480, %p481
    %p483 = scmp.ne.s32.totalorder %s469, %s470
    %p484 = scmp.eq.s32.totalorder %s33, 1
    %p485 = por %p483, %p484
    %p487 = scmp.ne.s32.totalorder %s470, %s486
    %p488 = scmp.eq.s32.totalorder %s33, 0
    %p489 = por %p487, %p488
    %s490 = ssub.s32 %s35, %s42
    %p491 = scmp.eq.s32.totalorder %s490, 0
    %s493 = sadd.s32 %s492, 1
    %s494 = scalar_select %p491, %s492, %s493
    %p497 = pneg %p491
    %p498 = scmp.eq.s32.totalorder %s27, 1
    %p499 = por %p497, %p498
    %p500 = scmp.ne.s32.totalorder %s492, %s495
    %p501 = scmp.eq.s32.totalorder %s27, 0
    %p502 = por %p500, %p501
    %p503 = scmp.ne.s32.totalorder %s492, %s495
    %p504 = scmp.eq.s32.totalorder %s32, 1
    %p505 = por %p503, %p504
    %p506 = scmp.ne.s32.totalorder %s495, %s496
    %p507 = scmp.eq.s32.totalorder %s32, 0
    %p508 = por %p506, %p507
    %p509 = scmp.ne.s32.totalorder %s495, %s496
    %p510 = scmp.eq.s32.totalorder %s33, 1
    %p511 = por %p509, %p510
    %p513 = scmp.ne.s32.totalorder %s496, %s512
    %p514 = scmp.eq.s32.totalorder %s33, 0
    %p515 = por %p513, %p514
    %s516 = ssub.s32 %s35, %s42
    %p517 = scmp.eq.s32.totalorder %s516, 0
    %s519 = sadd.s32 %s518, 1
    %s520 = scalar_select %p517, %s518, %s519
    %p523 = pneg %p517
    %p524 = scmp.eq.s32.totalorder %s27, 1
    %p525 = por %p523, %p524
    %p526 = scmp.ne.s32.totalorder %s518, %s521
    %p527 = scmp.eq.s32.totalorder %s27, 0
    %p528 = por %p526, %p527
    %p529 = scmp.ne.s32.totalorder %s518, %s521
    %p530 = scmp.eq.s32.totalorder %s32, 1
    %p531 = por %p529, %p530
    %p532 = scmp.ne.s32.totalorder %s521, %s522
    %p533 = scmp.eq.s32.totalorder %s32, 0
    %p534 = por %p532, %p533
    %p535 = scmp.ne.s32.totalorder %s521, %s522
    %p536 = scmp.eq.s32.totalorder %s33, 1
    %p537 = por %p535, %p536
    %p539 = scmp.ne.s32.totalorder %s522, %s538
    %p540 = scmp.eq.s32.totalorder %s33, 0
    %p541 = por %p539, %p540
    %s542 = ssub.s32 %s35, %s42
    %p543 = scmp.eq.s32.totalorder %s542, 0
    %s545 = sadd.s32 %s544, 1
    %s546 = scalar_select %p543, %s544, %s545
    %p549 = pneg %p543
    %p550 = scmp.eq.s32.totalorder %s27, 1
    %p551 = por %p549, %p550
    %p552 = scmp.ne.s32.totalorder %s544, %s547
    %p553 = scmp.eq.s32.totalorder %s27, 0
    %p554 = por %p552, %p553
    %p555 = scmp.ne.s32.totalorder %s544, %s547
    %p556 = scmp.eq.s32.totalorder %s32, 1
    %p557 = por %p555, %p556
    %p558 = scmp.ne.s32.totalorder %s547, %s548
    %p559 = scmp.eq.s32.totalorder %s32, 0
    %p560 = por %p558, %p559
    %p561 = scmp.ne.s32.totalorder %s547, %s548
    %p562 = scmp.eq.s32.totalorder %s33, 1
    %p563 = por %p561, %p562
    %p565 = scmp.ne.s32.totalorder %s548, %s564
    %p566 = scmp.eq.s32.totalorder %s33, 0
    %p567 = por %p565, %p566
    %s568 = ssub.s32 %s34, %s46
    %p569 = scmp.eq.s32.totalorder %s568, 0
    %s571 = sadd.s32 %s570, 1
    %s572 = scalar_select %p569, %s570, %s571
    %p575 = pneg %p569
    %p576 = scmp.eq.s32.totalorder %s27, 1
    %p577 = por %p575, %p576
    %p578 = scmp.ne.s32.totalorder %s570, %s573
    %p579 = scmp.eq.s32.totalorder %s27, 0
    %p580 = por %p578, %p579
    %p581 = scmp.ne.s32.totalorder %s570, %s573
    %p582 = scmp.eq.s32.totalorder %s32, 1
    %p583 = por %p581, %p582
    %p584 = scmp.ne.s32.totalorder %s573, %s574
    %p585 = scmp.eq.s32.totalorder %s32, 0
    %p586 = por %p584, %p585
    %p587 = scmp.ne.s32.totalorder %s573, %s574
    %p588 = scmp.eq.s32.totalorder %s33, 1
    %p589 = por %p587, %p588
    %p591 = scmp.ne.s32.totalorder %s574, %s590
    %p592 = scmp.eq.s32.totalorder %s33, 0
    %p593 = por %p591, %p592
    %p594 = scmp.le.s32.totalorder 1, %s27
    %p595 = scmp.lt.s32.totalorder %s27, 3
    %p596 = pnand %p594, %p595
    %p597 = pneg %p596
    // Predicated region
    $region9: #{_lambda_.2} parent=5 // pred_check
      _
    $region10: #{_lambda_.2} parent=5 // pred_check_branch
      %599 = sbr.rel (%p596) target = $region12
    $region11: #{_lambda_.2} parent=5 // pred_region
      %s600 = ssub.s32 %s27, 1
      // Predicated region
      $region13: #{_lambda_.2} parent=11 // pred_check
        %p601 = pneg %p65
      $region14: #{_lambda_.2} parent=11 // pred_check_branch
        %603 = sbr.rel (%p601) target = $region16
      $region15: #{_lambda_.2} parent=11 // pred_region
        %p604 = scmp.lt.s32.totalorder %s36, 0
        %s605 = scalar_select %p604, %s36, 0
        %s606 = smul.addr %s605, 6
        %s607 = smul.addr %s606, 4
        %s608 = scalar_lea.vmem %s0, %s607
      $region16: #{_lambda_.2} parent=11 // pred_fallthru
        _
      // Predicated region
      $region17: #{_lambda_.2} parent=11 // pred_check
        %p609 = pneg %p91
      $region18: #{_lambda_.2} parent=11 // pred_check_branch
        %611 = sbr.rel (%p609) target = $region20
      $region19: #{_lambda_.2} parent=11 // pred_region
        %p612 = scmp.lt.s32.totalorder %s36, 0
        %s613 = scalar_select %p612, %s36, 0
        %s614 = smul.addr %s613, 8
        %s615 = scalar_lea.vmem %s1, %s614
      $region20: #{_lambda_.2} parent=11 // pred_fallthru
        _
      // Predicated region
      $region21: #{_lambda_.2} parent=11 // pred_check
        %p616 = pneg %p112
      $region22: #{_lambda_.2} parent=11 // pred_check_branch
        %618 = sbr.rel (%p616) target = $region24
      $region23: #{_lambda_.2} parent=11 // pred_region
        _
      $region24: #{_lambda_.2} parent=11 // pred_fallthru
        _
      // Predicated region
      $region25: #{_lambda_.2} parent=11 // pred_check
        %p619 = pneg %p133
      $region26: #{_lambda_.2} parent=11 // pred_check_branch
        %621 = sbr.rel (%p619) target = $region28
      $region27: #{_lambda_.2} parent=11 // pred_region
        _
      $region28: #{_lambda_.2} parent=11 // pred_fallthru
        _
      // Predicated region
      $region29: #{_lambda_.2} parent=11 // pred_check
        %p622 = pneg %p154
      $region30: #{_lambda_.2} parent=11 // pred_check_branch
        %624 = sbr.rel (%p622) target = $region32
      $region31: #{_lambda_.2} parent=11 // pred_region
        _
      $region32: #{_lambda_.2} parent=11 // pred_fallthru
        _
      // Predicated region
      $region33: #{_lambda_.2} parent=11 // pred_check
        %p625 = pneg %p175
      $region34: #{_lambda_.2} parent=11 // pred_check_branch
        %627 = sbr.rel (%p625) target = $region36
      $region35: #{_lambda_.2} parent=11 // pred_region
        _
      $region36: #{_lambda_.2} parent=11 // pred_fallthru
        _
      // Predicated region
      $region37: #{_lambda_.2} parent=11 // pred_check
        %p628 = pneg %p196
      $region38: #{_lambda_.2} parent=11 // pred_check_branch
        %630 = sbr.rel (%p628) target = $region40
      $region39: #{_lambda_.2} parent=11 // pred_region
        _
      $region40: #{_lambda_.2} parent=11 // pred_fallthru
        _
    $region12: #{_lambda_.2} parent=5 // pred_fallthru
      _
    %p631 = scmp.lt.s32.totalorder %s27, 2
    // Predicated region
    $region41: #{_lambda_.2} parent=5 // pred_check
      %p632 = pneg %p631
    $region42: #{_lambda_.2} parent=5 // pred_check_branch
      %634 = sbr.rel (%p632) target = $region44
    $region43: #{_lambda_.2} parent=5 // pred_region
      // Predicated region
      $region45: #{_lambda_.2} parent=43 // pred_check
        %p635 = pneg %p216
      $region46: #{_lambda_.2} parent=43 // pred_check_branch
        %637 = sbr.rel (%p635) target = $region48
      $region47: #{_lambda_.2} parent=43 // pred_region
        %p638 = scmp.lt.s32.totalorder %s35, 1
        %s639 = scalar_select %p638, %s35, 1
        %s640 = smul.addr %s639, 3
        %s641 = smul.addr %s640, 4
        %s642 = scalar_lea.vmem %s7, %s641
      $region48: #{_lambda_.2} parent=43 // pred_fallthru
        _
      // Predicated region
      $region49: #{_lambda_.2} parent=43 // pred_check
        %p643 = pneg %p242
      $region50: #{_lambda_.2} parent=43 // pred_check_branch
        %645 = sbr.rel (%p643) target = $region52
      $region51: #{_lambda_.2} parent=43 // pred_region
        %p646 = scmp.lt.s32.totalorder %s35, 1
        %s647 = scalar_select %p646, %s35, 1
        %s648 = smul.addr %s647, 3
        %s649 = smul.addr %s648, 4
        %s650 = scalar_lea.vmem %s8, %s649
      $region52: #{_lambda_.2} parent=43 // pred_fallthru
        _
      // Predicated region
      $region53: #{_lambda_.2} parent=43 // pred_check
        %p651 = pneg %p268
      $region54: #{_lambda_.2} parent=43 // pred_check_branch
        %653 = sbr.rel (%p651) target = $region56
      $region55: #{_lambda_.2} parent=43 // pred_region
        %p654 = scmp.lt.s32.totalorder %s35, 1
        %s655 = scalar_select %p654, %s35, 1
        %s656 = smul.addr %s655, 4
        %s657 = smul.addr %s656, 4
        %s658 = scalar_lea.vmem %s9, %s657
      $region56: #{_lambda_.2} parent=43 // pred_fallthru
        _
      // Predicated region
      $region57: #{_lambda_.2} parent=43 // pred_check
        %p659 = pneg %p294
      $region58: #{_lambda_.2} parent=43 // pred_check_branch
        %661 = sbr.rel (%p659) target = $region60
      $region59: #{_lambda_.2} parent=43 // pred_region
        %p662 = scmp.lt.s32.totalorder %s35, 1
        %s663 = scalar_select %p662, %s35, 1
        %s664 = scalar_lea.vmem %s10, %s663
      $region60: #{_lambda_.2} parent=43 // pred_fallthru
        _
      // Predicated region
      $region61: #{_lambda_.2} parent=43 // pred_check
        %p665 = pneg %p320
      $region62: #{_lambda_.2} parent=43 // pred_check_branch
        %667 = sbr.rel (%p665) target = $region64
      $region63: #{_lambda_.2} parent=43 // pred_region
        %p668 = scmp.lt.s32.totalorder %s35, 1
        %s669 = scalar_select %p668, %s35, 1
        %s670 = smul.addr %s669, 4
        %s671 = smul.addr %s670, 4
        %s672 = scalar_lea.vmem %s11, %s671
      $region64: #{_lambda_.2} parent=43 // pred_fallthru
        _
      // Predicated region
      $region65: #{_lambda_.2} parent=43 // pred_check
        %p673 = pneg %p346
      $region66: #{_lambda_.2} parent=43 // pred_check_branch
        %675 = sbr.rel (%p673) target = $region68
      $region67: #{_lambda_.2} parent=43 // pred_region
        %p676 = scmp.lt.s32.totalorder %s35, 1
        %s677 = scalar_select %p676, %s35, 1
        %s678 = scalar_lea.vmem %s12, %s677
      $region68: #{_lambda_.2} parent=43 // pred_fallthru
        _
      // Predicated region
      $region69: #{_lambda_.2} parent=43 // pred_check
        %p679 = pneg %p372
      $region70: #{_lambda_.2} parent=43 // pred_check_branch
        %681 = sbr.rel (%p679) target = $region72
      $region71: #{_lambda_.2} parent=43 // pred_region
        %p682 = scmp.lt.s32.totalorder %s35, 1
        %s683 = scalar_select %p682, %s35, 1
        %s684 = scalar_lea.vmem %s13, %s683
      $region72: #{_lambda_.2} parent=43 // pred_fallthru
        _
      // Predicated region
      $region73: #{_lambda_.2} parent=43 // pred_check
        %p685 = pneg %p398
      $region74: #{_lambda_.2} parent=43 // pred_check_branch
        %687 = sbr.rel (%p685) target = $region76
      $region75: #{_lambda_.2} parent=43 // pred_region
        %p688 = scmp.lt.s32.totalorder %s35, 1
        %s689 = scalar_select %p688, %s35, 1
        %s690 = scalar_lea.vmem %s14, %s689
      $region76: #{_lambda_.2} parent=43 // pred_fallthru
        _
      // Predicated region
      $region77: #{_lambda_.2} parent=43 // pred_check
        %p691 = pneg %p424
      $region78: #{_lambda_.2} parent=43 // pred_check_branch
        %693 = sbr.rel (%p691) target = $region80
      $region79: #{_lambda_.2} parent=43 // pred_region
        %p694 = scmp.lt.s32.totalorder %s35, 1
        %s695 = scalar_select %p694, %s35, 1
        %s696 = smul.addr %s695, 4
        %s697 = smul.addr %s696, 4
        %s698 = scalar_lea.vmem %s15, %s697
      $region80: #{_lambda_.2} parent=43 // pred_fallthru
        _
      // Predicated region
      $region81: #{_lambda_.2} parent=43 // pred_check
        %p699 = pneg %p450
      $region82: #{_lambda_.2} parent=43 // pred_check_branch
        %701 = sbr.rel (%p699) target = $region84
      $region83: #{_lambda_.2} parent=43 // pred_region
        %p702 = scmp.lt.s32.totalorder %s35, 1
        %s703 = scalar_select %p702, %s35, 1
        %s704 = scalar_lea.vmem %s16, %s703
      $region84: #{_lambda_.2} parent=43 // pred_fallthru
        _
      // Predicated region
      $region85: #{_lambda_.2} parent=43 // pred_check
        %p705 = pneg %p476
      $region86: #{_lambda_.2} parent=43 // pred_check_branch
        %707 = sbr.rel (%p705) target = $region88
      $region87: #{_lambda_.2} parent=43 // pred_region
        %p708 = scmp.lt.s32.totalorder %s35, 1
        %s709 = scalar_select %p708, %s35, 1
        %s710 = smul.addr %s709, 8
        %s711 = smul.addr %s710, 4
        %s712 = scalar_lea.vmem %s17, %s711
      $region88: #{_lambda_.2} parent=43 // pred_fallthru
        _
      // Predicated region
      $region89: #{_lambda_.2} parent=43 // pred_check
        %p713 = pneg %p502
      $region90: #{_lambda_.2} parent=43 // pred_check_branch
        %715 = sbr.rel (%p713) target = $region92
      $region91: #{_lambda_.2} parent=43 // pred_region
        %p716 = scmp.lt.s32.totalorder %s35, 1
        %s717 = scalar_select %p716, %s35, 1
        %s718 = scalar_lea.vmem %s18, %s717
      $region92: #{_lambda_.2} parent=43 // pred_fallthru
        _
      // Predicated region
      $region93: #{_lambda_.2} parent=43 // pred_check
        %p719 = pneg %p528
      $region94: #{_lambda_.2} parent=43 // pred_check_branch
        %721 = sbr.rel (%p719) target = $region96
      $region95: #{_lambda_.2} parent=43 // pred_region
        %p722 = scmp.lt.s32.totalorder %s35, 1
        %s723 = scalar_select %p722, %s35, 1
        %s724 = scalar_lea.vmem %s19, %s723
      $region96: #{_lambda_.2} parent=43 // pred_fallthru
        _
      // Predicated region
      $region97: #{_lambda_.2} parent=43 // pred_check
        %p725 = pneg %p554
      $region98: #{_lambda_.2} parent=43 // pred_check_branch
        %727 = sbr.rel (%p725) target = $region100
      $region99: #{_lambda_.2} parent=43 // pred_region
        %p728 = scmp.lt.s32.totalorder %s35, 1
        %s729 = scalar_select %p728, %s35, 1
        %s730 = scalar_lea.vmem %s20, %s729
      $region100: #{_lambda_.2} parent=43 // pred_fallthru
        _
    $region44: #{_lambda_.2} parent=5 // pred_fallthru
      _
    %p731 = scmp.le.s32.totalorder 1, %s27
    %p732 = scmp.lt.s32.totalorder %s27, 3
    %p733 = pnand %p731, %p732
    %p734 = pneg %p733
    // Predicated region
    $region101: #{_lambda_.2} parent=5 // pred_check
      _
    $region102: #{_lambda_.2} parent=5 // pred_check_branch
      %736 = sbr.rel (%p733) target = $region104
    $region103: #{_lambda_.2} parent=5 // pred_region
      %s737 = ssub.s32 %s27, 1
      %p738 = scmp.lt.s32.totalorder %s36, 0
      %s739 = scalar_select %p738, %s36, 0
      %s740 = smul.addr %s739, 6
      %s741 = smul.addr %s740, 4
      %s742 = scalar_lea.vmem %s0, %s741
      %p743 = pneg %p65
      %p744 = pneg %p62
      %p745 = scmp.lt.s32.totalorder %s36, 0
      %s746 = scalar_select %p745, %s36, 0
      %s747 = smul.addr %s746, 8
      %s748 = scalar_lea.vmem %s1, %s747
      %p749 = pneg %p91
      %p750 = pneg %p88
      %p751 = pneg %p112
      %p752 = pneg %p109
      %p753 = pneg %p133
      %p754 = pneg %p130
      %p755 = pneg %p154
      %p756 = pneg %p151
      %p757 = pneg %p175
      %p758 = pneg %p172
      %p759 = pneg %p196
      %p760 = pneg %p193
      %p761 = scmp.lt.s32.totalorder %s37, 1
      %s762 = scalar_select %p761, %s37, 1
      %s763 = smul.addr %s762, 3
      %s764 = smul.addr %s763, 4
      %s765 = scalar_lea.vmem %s7, %s764
      %p766 = pneg %p222
      %p767 = pneg %p219
      %p768 = scmp.lt.s32.totalorder %s37, 1
      %s769 = scalar_select %p768, %s37, 1
      %s770 = smul.addr %s769, 3
      %s771 = smul.addr %s770, 4
      %s772 = scalar_lea.vmem %s8, %s771
      %p773 = pneg %p248
      %p774 = pneg %p245
      %p775 = scmp.lt.s32.totalorder %s37, 1
      %s776 = scalar_select %p775, %s37, 1
      %s777 = smul.addr %s776, 4
      %s778 = smul.addr %s777, 4
      %s779 = scalar_lea.vmem %s9, %s778
      %p780 = pneg %p274
      %p781 = pneg %p271
      %p782 = scmp.lt.s32.totalorder %s37, 1
      %s783 = scalar_select %p782, %s37, 1
      %s784 = scalar_lea.vmem %s10, %s783
      %p785 = pneg %p300
      %p786 = pneg %p297
      %p787 = scmp.lt.s32.totalorder %s37, 1
      %s788 = scalar_select %p787, %s37, 1
      %s789 = smul.addr %s788, 4
      %s790 = smul.addr %s789, 4
      %s791 = scalar_lea.vmem %s11, %s790
      %p792 = pneg %p326
      %p793 = pneg %p323
      %p794 = scmp.lt.s32.totalorder %s37, 1
      %s795 = scalar_select %p794, %s37, 1
      %s796 = scalar_lea.vmem %s12, %s795
      %p797 = pneg %p352
      %p798 = pneg %p349
      %p799 = scmp.lt.s32.totalorder %s37, 1
      %s800 = scalar_select %p799, %s37, 1
      %s801 = scalar_lea.vmem %s13, %s800
      %p802 = pneg %p378
      %p803 = pneg %p375
      %p804 = scmp.lt.s32.totalorder %s37, 1
      %s805 = scalar_select %p804, %s37, 1
      %s806 = scalar_lea.vmem %s14, %s805
      %p807 = pneg %p404
      %p808 = pneg %p401
      %p809 = scmp.lt.s32.totalorder %s37, 1
      %s810 = scalar_select %p809, %s37, 1
      %s811 = smul.addr %s810, 4
      %s812 = smul.addr %s811, 4
      %s813 = scalar_lea.vmem %s15, %s812
      %p814 = pneg %p430
      %p815 = pneg %p427
      %p816 = scmp.lt.s32.totalorder %s37, 1
      %s817 = scalar_select %p816, %s37, 1
      %s818 = scalar_lea.vmem %s16, %s817
      %p819 = pneg %p456
      %p820 = pneg %p453
      %p821 = scmp.lt.s32.totalorder %s37, 1
      %s822 = scalar_select %p821, %s37, 1
      %s823 = smul.addr %s822, 8
      %s824 = smul.addr %s823, 4
      %s825 = scalar_lea.vmem %s17, %s824
      %p826 = pneg %p482
      %p827 = pneg %p479
      %p828 = scmp.lt.s32.totalorder %s37, 1
      %s829 = scalar_select %p828, %s37, 1
      %s830 = scalar_lea.vmem %s18, %s829
      %p831 = pneg %p508
      %p832 = pneg %p505
      %p833 = scmp.lt.s32.totalorder %s37, 1
      %s834 = scalar_select %p833, %s37, 1
      %s835 = scalar_lea.vmem %s19, %s834
      %p836 = pneg %p534
      %p837 = pneg %p531
      %p838 = scmp.lt.s32.totalorder %s37, 1
      %s839 = scalar_select %p838, %s37, 1
      %s840 = scalar_lea.vmem %s20, %s839
      %p841 = pneg %p560
      %p842 = pneg %p557
      %p843 = pneg %p586
      %p844 = pneg %p583
      %p845 = scmp.lt.s32.totalorder %s36, 0
      %s846 = scalar_select %p845, %s36, 0
      %s847 = smul.addr %s846, 8
      %s848 = scalar_lea.vmem %s21, %s847
      %p849 = scmp.lt.s32.totalorder %s36, 0
      %s850 = scalar_select %p849, %s36, 0
      %s851 = smul.addr %s850, 6
      %s852 = smul.addr %s851, 4
      %s853 = scalar_lea.vmem %s0, %s852
      %p854 = scmp.lt.s32.totalorder %s36, 0
      %s855 = scalar_select %p854, %s36, 0
      %s856 = smul.addr %s855, 8
      %s857 = scalar_lea.vmem %s1, %s856
      %p858 = scmp.lt.s32.totalorder %s37, 1
      %s859 = scalar_select %p858, %s37, 1
      %s860 = smul.addr %s859, 3
      %s861 = smul.addr %s860, 4
      %s862 = scalar_lea.vmem %s7, %s861
      %p863 = scmp.lt.s32.totalorder %s37, 1
      %s864 = scalar_select %p863, %s37, 1
      %s865 = smul.addr %s864, 3
      %s866 = smul.addr %s865, 4
      %s867 = scalar_lea.vmem %s8, %s866
      %p868 = scmp.lt.s32.totalorder %s37, 1
      %s869 = scalar_select %p868, %s37, 1
      %s870 = smul.addr %s869, 4
      %s871 = smul.addr %s870, 4
      %s872 = scalar_lea.vmem %s9, %s871
      %p873 = scmp.lt.s32.totalorder %s37, 1
      %s874 = scalar_select %p873, %s37, 1
      %s875 = scalar_lea.vmem %s10, %s874
      %p876 = scmp.lt.s32.totalorder %s37, 1
      %s877 = scalar_select %p876, %s37, 1
      %s878 = smul.addr %s877, 4
      %s879 = smul.addr %s878, 4
      %s880 = scalar_lea.vmem %s11, %s879
      %p881 = scmp.lt.s32.totalorder %s37, 1
      %s882 = scalar_select %p881, %s37, 1
      %s883 = scalar_lea.vmem %s12, %s882
      %p884 = scmp.lt.s32.totalorder %s37, 1
      %s885 = scalar_select %p884, %s37, 1
      %s886 = scalar_lea.vmem %s13, %s885
      %p887 = scmp.lt.s32.totalorder %s37, 1
      %s888 = scalar_select %p887, %s37, 1
      %s889 = scalar_lea.vmem %s14, %s888
      %p890 = scmp.lt.s32.totalorder %s37, 1
      %s891 = scalar_select %p890, %s37, 1
      %s892 = smul.addr %s891, 4
      %s893 = smul.addr %s892, 4
      %s894 = scalar_lea.vmem %s15, %s893
      %p895 = scmp.lt.s32.totalorder %s37, 1
      %s896 = scalar_select %p895, %s37, 1
      %s897 = scalar_lea.vmem %s16, %s896
      %p898 = scmp.lt.s32.totalorder %s37, 1
      %s899 = scalar_select %p898, %s37, 1
      %s900 = smul.addr %s899, 8
      %s901 = smul.addr %s900, 4
      %s902 = scalar_lea.vmem %s17, %s901
      %p903 = scmp.lt.s32.totalorder %s37, 1
      %s904 = scalar_select %p903, %s37, 1
      %s905 = scalar_lea.vmem %s18, %s904
      %p906 = scmp.lt.s32.totalorder %s37, 1
      %s907 = scalar_select %p906, %s37, 1
      %s908 = scalar_lea.vmem %s19, %s907
      %p909 = scmp.lt.s32.totalorder %s37, 1
      %s910 = scalar_select %p909, %s37, 1
      %s911 = scalar_lea.vmem %s20, %s910
      %p912 = scmp.lt.s32.totalorder %s36, 0
      %s913 = scalar_select %p912, %s36, 0
      %s914 = smul.addr %s913, 8
      %s915 = scalar_lea.vmem %s21, %s914
      %p917 = scmp.eq.s32.totalorder %s37, 0
      // Predicated region
      $region105: #{_lambda_.2} parent=103 // pred_check
        %p918 = pneg %p917
      $region106: #{_lambda_.2} parent=103 // pred_check_branch
        %920 = sbr.rel (%p918) target = $region108
      $region107: #{_lambda_.2} parent=103 // pred_region
        %v921 = vld [vmem:[%s853] sm:$0xff]
        %v922 = vld [vmem:[%s853 + $0x8] sm:$0xff]
        %v923 = vld [vmem:[%s853 + $0x10] sm:$0xff]
        %v924 = vld [vmem:[%s3] sm:$0xf]
        %v925 = vld [vmem:[%s3 + $0x4] sm:$0xf]
        %v926 = vld [vmem:[%s3 + $0x8] sm:$0xf]
        %v927 = vld [vmem:[%s3 + $0xc] sm:$0xf]
        %v928 = vld [vmem:[%s3 + $0x10] sm:$0xf]
        %v929 = vld [vmem:[%s3 + $0x14] sm:$0xf]
        %v930 = vld [vmem:[%s3 + $0x18] sm:$0xf]
        %v931 = vld [vmem:[%s3 + $0x1c] sm:$0xf]
        %v932 = vld [vmem:[%s3 + $0x20] sm:$0xf]
        %v933 = vld [vmem:[%s3 + $0x24] sm:$0xf]
        %v934 = vld [vmem:[%s3 + $0x28] sm:$0xf]
        %v935 = vld [vmem:[%s3 + $0x2c] sm:$0xf]
        %v936 = vld [vmem:[%s3 + $0x30] sm:$0xf]
        %v937 = vld [vmem:[%s3 + $0x34] sm:$0xf]
        %v938 = vld [vmem:[%s3 + $0x38] sm:$0xf]
        %v939 = vld [vmem:[%s3 + $0x3c] sm:$0xf]
        %v940 = vld [vmem:[%s3 + $0x40] sm:$0xf]
        %v941 = vld [vmem:[%s3 + $0x44] sm:$0xf]
        %v942 = vld [vmem:[%s3 + $0x48] sm:$0xf]
        %v943 = vld [vmem:[%s3 + $0x4c] sm:$0xf]
        %v944 = vld [vmem:[%s3 + $0x50] sm:$0xf]
        %v945 = vld [vmem:[%s3 + $0x54] sm:$0xf]
        %v946 = vld [vmem:[%s3 + $0x58] sm:$0xf]
        %v947 = vld [vmem:[%s3 + $0x5c] sm:$0xf]
        %v948 = vld [vmem:[%s3 + $0x60] sm:$0xf]
        %v949 = vld [vmem:[%s3 + $0x64] sm:$0xf]
        %v950 = vld [vmem:[%s3 + $0x68] sm:$0xf]
        %v951 = vld [vmem:[%s3 + $0x6c] sm:$0xf]
        %v952 = vld [vmem:[%s3 + $0x70] sm:$0xf]
        %v953 = vld [vmem:[%s3 + $0x74] sm:$0xf]
        %v954 = vld [vmem:[%s3 + $0x78] sm:$0xf]
        %v955 = vld [vmem:[%s3 + $0x7c] sm:$0xf]
        %v956 = vld [vmem:[%s3 + $0x80] sm:$0xf]
        %v957 = vld [vmem:[%s3 + $0x84] sm:$0xf]
        %v958 = vld [vmem:[%s3 + $0x88] sm:$0xf]
        %v959 = vld [vmem:[%s3 + $0x8c] sm:$0xf]
        %v960 = vld [vmem:[%s3 + $0x90] sm:$0xf]
        %v961 = vld [vmem:[%s3 + $0x94] sm:$0xf]
        %v962 = vld [vmem:[%s3 + $0x98] sm:$0xf]
        %v963 = vld [vmem:[%s3 + $0x9c] sm:$0xf]
        %v964 = vld [vmem:[%s3 + $0xa0] sm:$0xf]
        %v965 = vld [vmem:[%s3 + $0xa4] sm:$0xf]
        %v966 = vld [vmem:[%s3 + $0xa8] sm:$0xf]
        %v967 = vld [vmem:[%s3 + $0xac] sm:$0xf]
        %v968 = vld [vmem:[%s3 + $0xb0] sm:$0xf]
        %v969 = vld [vmem:[%s3 + $0xb4] sm:$0xf]
        %v970 = vld [vmem:[%s3 + $0xb8] sm:$0xf]
        %v971 = vld [vmem:[%s3 + $0xbc] sm:$0xf]
        %v972 = vld [vmem:[%s3 + $0xc0] sm:$0xf]
        %v973 = vld [vmem:[%s3 + $0xc4] sm:$0xf]
        %v974 = vld [vmem:[%s3 + $0xc8] sm:$0xf]
        %v975 = vld [vmem:[%s3 + $0xcc] sm:$0xf]
        %v976 = vld [vmem:[%s3 + $0xd0] sm:$0xf]
        %v977 = vld [vmem:[%s3 + $0xd4] sm:$0xf]
        %v978 = vld [vmem:[%s3 + $0xd8] sm:$0xf]
        %v979 = vld [vmem:[%s3 + $0xdc] sm:$0xf]
        %v980 = vld [vmem:[%s3 + $0xe0] sm:$0xf]
        %v981 = vld [vmem:[%s3 + $0xe4] sm:$0xf]
        %v982 = vld [vmem:[%s3 + $0xe8] sm:$0xf]
        %v983 = vld [vmem:[%s3 + $0xec] sm:$0xf]
        %v984 = vld [vmem:[%s3 + $0xf0] sm:$0xf]
        %v985 = vld [vmem:[%s3 + $0xf4] sm:$0xf]
        %v986 = vld [vmem:[%s3 + $0xf8] sm:$0xf]
        %v987 = vld [vmem:[%s3 + $0xfc] sm:$0xf]
        %v988 = vld [vmem:[%s3 + $0x100] sm:$0xf]
        %v989 = vld [vmem:[%s3 + $0x104] sm:$0xf]
        %v990 = vld [vmem:[%s3 + $0x108] sm:$0xf]
        %v991 = vld [vmem:[%s3 + $0x10c] sm:$0xf]
        %v992 = vld [vmem:[%s3 + $0x110] sm:$0xf]
        %v993 = vld [vmem:[%s3 + $0x114] sm:$0xf]
        %v994 = vld [vmem:[%s3 + $0x118] sm:$0xf]
        %v995 = vld [vmem:[%s3 + $0x11c] sm:$0xf]
        %v996 = vld [vmem:[%s3 + $0x120] sm:$0xf]
        %v997 = vld [vmem:[%s3 + $0x124] sm:$0xf]
        %v998 = vld [vmem:[%s3 + $0x128] sm:$0xf]
        %v999 = vld [vmem:[%s3 + $0x12c] sm:$0xf]
        %v1000 = vld [vmem:[%s3 + $0x130] sm:$0xf]
        %v1001 = vld [vmem:[%s3 + $0x134] sm:$0xf]
        %v1002 = vld [vmem:[%s3 + $0x138] sm:$0xf]
        %v1003 = vld [vmem:[%s3 + $0x13c] sm:$0xf]
        %v1004 = vld [vmem:[%s3 + $0x140] sm:$0xf]
        %v1005 = vld [vmem:[%s3 + $0x144] sm:$0xf]
        %v1006 = vld [vmem:[%s3 + $0x148] sm:$0xf]
        %v1007 = vld [vmem:[%s3 + $0x14c] sm:$0xf]
        %v1008 = vld [vmem:[%s3 + $0x150] sm:$0xf]
        %v1009 = vld [vmem:[%s3 + $0x154] sm:$0xf]
        %v1010 = vld [vmem:[%s3 + $0x158] sm:$0xf]
        %v1011 = vld [vmem:[%s3 + $0x15c] sm:$0xf]
        %v1012 = vld [vmem:[%s3 + $0x160] sm:$0xf]
        %v1013 = vld [vmem:[%s3 + $0x164] sm:$0xf]
        %v1014 = vld [vmem:[%s3 + $0x168] sm:$0xf]
        %v1015 = vld [vmem:[%s3 + $0x16c] sm:$0xf]
        %v1016 = vld [vmem:[%s3 + $0x170] sm:$0xf]
        %v1017 = vld [vmem:[%s3 + $0x174] sm:$0xf]
        %v1018 = vld [vmem:[%s3 + $0x178] sm:$0xf]
        %v1019 = vld [vmem:[%s3 + $0x17c] sm:$0xf]
        %v1020 = vld [vmem:[%s4] sm:$0x1]
        %v1022 = vlaneseq
        %v1023 = vshrl.u32 %v1022, 7
        %v1024 = vsub.s32 0, %v1023
        %v1025 = vrot.slane %v1020, %v1024
        %v1030 = vunpack.c.l.b16 %v921
        %v1031 = vunpack.c.h.b16 %v921
        %v1032 = vunpack.c.l.b16 %v922
        %v1033 = vunpack.c.h.b16 %v922
        %v1034 = vunpack.c.l.b16 %v923
        %v1035 = vunpack.c.h.b16 %v923
        %v1036 = vpack.c.b16 %v1030, %v1030
        %v1037 = vpack.c.b16 %v1031, %v1031
        %v1038 = vpack.c.b16 %v1032, %v1032
        %v1039 = vpack.c.b16 %v1033, %v1033
        %v1040 = vpack.c.b16 %v1034, %v1034
        %v1041 = vpack.c.b16 %v1035, %v1035
        %v1144 = vunpack.c.l.b16 %v924
        %v1145 = vunpack.c.l.b16 %v925
        %v1146 = vunpack.c.l.b16 %v926
        %v1147 = vunpack.c.l.b16 %v927
        %v1148 = vunpack.c.l.b16 %v928
        %v1149 = vunpack.c.l.b16 %v929
        %v1150 = vunpack.c.l.b16 %v930
        %v1151 = vunpack.c.l.b16 %v931
        %v1152 = vunpack.c.l.b16 %v932
        %v1153 = vunpack.c.l.b16 %v933
        %v1154 = vunpack.c.l.b16 %v934
        %v1155 = vunpack.c.l.b16 %v935
        %v1156 = vunpack.c.l.b16 %v936
        %v1157 = vunpack.c.l.b16 %v937
        %v1158 = vunpack.c.l.b16 %v938
        %v1159 = vunpack.c.l.b16 %v939
        %v1160 = vunpack.c.l.b16 %v940
        %v1161 = vunpack.c.l.b16 %v941
        %v1162 = vunpack.c.l.b16 %v942
        %v1163 = vunpack.c.l.b16 %v943
        %v1164 = vunpack.c.l.b16 %v944
        %v1165 = vunpack.c.l.b16 %v945
        %v1166 = vunpack.c.l.b16 %v946
        %v1167 = vunpack.c.l.b16 %v947
        %v1168 = vunpack.c.l.b16 %v948
        %v1169 = vunpack.c.l.b16 %v949
        %v1170 = vunpack.c.l.b16 %v950
        %v1171 = vunpack.c.l.b16 %v951
        %v1172 = vunpack.c.l.b16 %v952
        %v1173 = vunpack.c.l.b16 %v953
        %v1174 = vunpack.c.l.b16 %v954
        %v1175 = vunpack.c.l.b16 %v955
        %v1176 = vunpack.c.l.b16 %v956
        %v1177 = vunpack.c.l.b16 %v957
        %v1178 = vunpack.c.l.b16 %v958
        %v1179 = vunpack.c.l.b16 %v959
        %v1180 = vunpack.c.l.b16 %v960
        %v1181 = vunpack.c.l.b16 %v961
        %v1182 = vunpack.c.l.b16 %v962
        %v1183 = vunpack.c.l.b16 %v963
        %v1184 = vunpack.c.l.b16 %v964
        %v1185 = vunpack.c.l.b16 %v965
        %v1186 = vunpack.c.l.b16 %v966
        %v1187 = vunpack.c.l.b16 %v967
        %v1188 = vunpack.c.l.b16 %v968
        %v1189 = vunpack.c.l.b16 %v969
        %v1190 = vunpack.c.l.b16 %v970
        %v1191 = vunpack.c.l.b16 %v971
        %v1192 = vunpack.c.l.b16 %v972
        %v1193 = vunpack.c.l.b16 %v973
        %v1194 = vunpack.c.l.b16 %v974
        %v1195 = vunpack.c.l.b16 %v975
        %v1196 = vunpack.c.l.b16 %v976
        %v1197 = vunpack.c.l.b16 %v977
        %v1198 = vunpack.c.l.b16 %v978
        %v1199 = vunpack.c.l.b16 %v979
        %v1200 = vunpack.c.l.b16 %v980
        %v1201 = vunpack.c.l.b16 %v981
        %v1202 = vunpack.c.l.b16 %v982
        %v1203 = vunpack.c.l.b16 %v983
        %v1204 = vunpack.c.l.b16 %v984
        %v1205 = vunpack.c.l.b16 %v985
        %v1206 = vunpack.c.l.b16 %v986
        %v1207 = vunpack.c.l.b16 %v987
        %v1208 = vunpack.c.l.b16 %v988
        %v1209 = vunpack.c.l.b16 %v989
        %v1210 = vunpack.c.l.b16 %v990
        %v1211 = vunpack.c.l.b16 %v991
        %v1212 = vunpack.c.l.b16 %v992
        %v1213 = vunpack.c.l.b16 %v993
        %v1214 = vunpack.c.l.b16 %v994
        %v1215 = vunpack.c.l.b16 %v995
        %v1216 = vunpack.c.l.b16 %v996
        %v1217 = vunpack.c.l.b16 %v997
        %v1218 = vunpack.c.l.b16 %v998
        %v1219 = vunpack.c.l.b16 %v999
        %v1220 = vunpack.c.l.b16 %v1000
        %v1221 = vunpack.c.l.b16 %v1001
        %v1222 = vunpack.c.l.b16 %v1002
        %v1223 = vunpack.c.l.b16 %v1003
        %v1224 = vunpack.c.l.b16 %v1004
        %v1225 = vunpack.c.l.b16 %v1005
        %v1226 = vunpack.c.l.b16 %v1006
        %v1227 = vunpack.c.l.b16 %v1007
        %v1228 = vunpack.c.l.b16 %v1008
        %v1229 = vunpack.c.l.b16 %v1009
        %v1230 = vunpack.c.l.b16 %v1010
        %v1231 = vunpack.c.l.b16 %v1011
        %v1232 = vunpack.c.l.b16 %v1012
        %v1233 = vunpack.c.l.b16 %v1013
        %v1234 = vunpack.c.l.b16 %v1014
        %v1235 = vunpack.c.l.b16 %v1015
        %v1236 = vunpack.c.l.b16 %v1016
        %v1237 = vunpack.c.l.b16 %v1017
        %v1238 = vunpack.c.l.b16 %v1018
        %v1239 = vunpack.c.l.b16 %v1019
        %v1240 = vpack.c.b16 %v1145, %v1144
        %v1241 = vpack.c.b16 %v1147, %v1146
        %v1242 = vpack.c.b16 %v1149, %v1148
        %v1243 = vpack.c.b16 %v1151, %v1150
        %v1244 = vpack.c.b16 %v1153, %v1152
        %v1245 = vpack.c.b16 %v1155, %v1154
        %v1246 = vpack.c.b16 %v1157, %v1156
        %v1247 = vpack.c.b16 %v1159, %v1158
        %v1248 = vpack.c.b16 %v1161, %v1160
        %v1249 = vpack.c.b16 %v1163, %v1162
        %v1250 = vpack.c.b16 %v1165, %v1164
        %v1251 = vpack.c.b16 %v1167, %v1166
        %v1252 = vpack.c.b16 %v1169, %v1168
        %v1253 = vpack.c.b16 %v1171, %v1170
        %v1254 = vpack.c.b16 %v1173, %v1172
        %v1255 = vpack.c.b16 %v1175, %v1174
        %v1256 = vpack.c.b16 %v1177, %v1176
        %v1257 = vpack.c.b16 %v1179, %v1178
        %v1258 = vpack.c.b16 %v1181, %v1180
        %v1259 = vpack.c.b16 %v1183, %v1182
        %v1260 = vpack.c.b16 %v1185, %v1184
        %v1261 = vpack.c.b16 %v1187, %v1186
        %v1262 = vpack.c.b16 %v1189, %v1188
        %v1263 = vpack.c.b16 %v1191, %v1190
        %v1264 = vpack.c.b16 %v1193, %v1192
        %v1265 = vpack.c.b16 %v1195, %v1194
        %v1266 = vpack.c.b16 %v1197, %v1196
        %v1267 = vpack.c.b16 %v1199, %v1198
        %v1268 = vpack.c.b16 %v1201, %v1200
        %v1269 = vpack.c.b16 %v1203, %v1202
        %v1270 = vpack.c.b16 %v1205, %v1204
        %v1271 = vpack.c.b16 %v1207, %v1206
        %v1272 = vpack.c.b16 %v1209, %v1208
        %v1273 = vpack.c.b16 %v1211, %v1210
        %v1274 = vpack.c.b16 %v1213, %v1212
        %v1275 = vpack.c.b16 %v1215, %v1214
        %v1276 = vpack.c.b16 %v1217, %v1216
        %v1277 = vpack.c.b16 %v1219, %v1218
        %v1278 = vpack.c.b16 %v1221, %v1220
        %v1279 = vpack.c.b16 %v1223, %v1222
        %v1280 = vpack.c.b16 %v1225, %v1224
        %v1281 = vpack.c.b16 %v1227, %v1226
        %v1282 = vpack.c.b16 %v1229, %v1228
        %v1283 = vpack.c.b16 %v1231, %v1230
        %v1284 = vpack.c.b16 %v1233, %v1232
        %v1285 = vpack.c.b16 %v1235, %v1234
        %v1286 = vpack.c.b16 %v1237, %v1236
        %v1287 = vpack.c.b16 %v1239, %v1238
        %1336 = vmatprep.subr.bf16.mxu0 0
        %1337 = vmatpush1.bf16.msra.mxu0 %v1240
        %1338 = vmatprep.subr.bf16.mxu0 0
        %1339 = vmatpush1.bf16.msra.mxu0 %v1241
        %1340 = vmatprep.subr.bf16.mxu0 0
        %1341 = vmatpush1.bf16.msra.mxu0 %v1242
        %1342 = vmatprep.subr.bf16.mxu0 0
        %1343 = vmatpush1.bf16.msra.mxu0 %v1243
        %1344 = vmatprep.subr.bf16.mxu0 0
        %1345 = vmatpush1.bf16.msra.mxu0 %v1244
        %1346 = vmatprep.subr.bf16.mxu0 0
        %1347 = vmatpush1.bf16.msra.mxu0 %v1245
        %1348 = vmatprep.subr.bf16.mxu0 0
        %1349 = vmatpush1.bf16.msra.mxu0 %v1246
        %1350 = vmatprep.subr.bf16.mxu0 0
        %1351 = vmatpush1.bf16.msra.mxu0 %v1247
        %1352 = vmatprep.subr.bf16.mxu0 0
        %1353 = vmatpush1.bf16.msra.mxu0 %v1248
        %1354 = vmatprep.subr.bf16.mxu0 0
        %1355 = vmatpush1.bf16.msra.mxu0 %v1249
        %1356 = vmatprep.subr.bf16.mxu0 0
        %1357 = vmatpush1.bf16.msra.mxu0 %v1250
        %1358 = vmatprep.subr.bf16.mxu0 0
        %1359 = vmatpush1.bf16.msra.mxu0 %v1251
        %1360 = vmatprep.subr.bf16.mxu0 0
        %1361 = vmatpush1.bf16.msra.mxu0 %v1252
        %1362 = vmatprep.subr.bf16.mxu0 0
        %1363 = vmatpush1.bf16.msra.mxu0 %v1253
        %1364 = vmatprep.subr.bf16.mxu0 0
        %1365 = vmatpush1.bf16.msra.mxu0 %v1254
        %1366 = vmatprep.subr.bf16.mxu0 0
        %1367 = vmatpush1.bf16.msra.mxu0 %v1255
        %1368 = vmatprep.mubr.bf16.mxu0 %v1037
        %1369 = vmatmul.mubr.bf16.gmra.mrb[0].mxu0 %v1036
        %v1370 = vpop.f32.mrb[0].mxu0
        %v1371 = vadd.f32 %v1025, %v1370
        %v1372 = vpop.f32.mrb[0].mxu0
        %v1373 = vpop.f32.mrb[0].mxu0
        %v1374 = vpop.f32.mrb[0].mxu0
        %1375 = vdwg.mxu0
        %1376 = vmatprep.subr.bf16.mxu0 0
        %1377 = vmatpush1.bf16.msra.mxu0 %v1256
        %1378 = vmatprep.subr.bf16.mxu0 0
        %1379 = vmatpush1.bf16.msra.mxu0 %v1257
        %1380 = vmatprep.subr.bf16.mxu0 0
        %1381 = vmatpush1.bf16.msra.mxu0 %v1258
        %1382 = vmatprep.subr.bf16.mxu0 0
        %1383 = vmatpush1.bf16.msra.mxu0 %v1259
        %1384 = vmatprep.subr.bf16.mxu0 0
        %1385 = vmatpush1.bf16.msra.mxu0 %v1260
        %1386 = vmatprep.subr.bf16.mxu0 0
        %1387 = vmatpush1.bf16.msra.mxu0 %v1261
        %1388 = vmatprep.subr.bf16.mxu0 0
        %1389 = vmatpush1.bf16.msra.mxu0 %v1262
        %1390 = vmatprep.subr.bf16.mxu0 0
        %1391 = vmatpush1.bf16.msra.mxu0 %v1263
        %1392 = vmatprep.subr.bf16.mxu0 0
        %1393 = vmatpush1.bf16.msra.mxu0 %v1264
        %1394 = vmatprep.subr.bf16.mxu0 0
        %1395 = vmatpush1.bf16.msra.mxu0 %v1265
        %1396 = vmatprep.subr.bf16.mxu0 0
        %1397 = vmatpush1.bf16.msra.mxu0 %v1266
        %1398 = vmatprep.subr.bf16.mxu0 0
        %1399 = vmatpush1.bf16.msra.mxu0 %v1267
        %1400 = vmatprep.subr.bf16.mxu0 0
        %1401 = vmatpush1.bf16.msra.mxu0 %v1268
        %1402 = vmatprep.subr.bf16.mxu0 0
        %1403 = vmatpush1.bf16.msra.mxu0 %v1269
        %1404 = vmatprep.subr.bf16.mxu0 0
        %1405 = vmatpush1.bf16.msra.mxu0 %v1270
        %1406 = vmatprep.subr.bf16.mxu0 0
        %1407 = vmatpush1.bf16.msra.mxu0 %v1271
        %1408 = vmatprep.mubr.bf16.mxu0 %v1039
        %1409 = vmatmul.mubr.bf16.gmra.mrb[0].mxu0 %v1038
        %v1410 = vpop.f32.mrb[0].mxu0
        %v1411 = vadd.f32 %v1371, %v1410
        %v1412 = vpop.f32.mrb[0].mxu0
        %v1413 = vpop.f32.mrb[0].mxu0
        %v1414 = vpop.f32.mrb[0].mxu0
        %1415 = vdwg.mxu0
        %1416 = vmatprep.subr.bf16.mxu0 0
        %1417 = vmatpush1.bf16.msra.mxu0 %v1272
        %1418 = vmatprep.subr.bf16.mxu0 0
        %1419 = vmatpush1.bf16.msra.mxu0 %v1273
        %1420 = vmatprep.subr.bf16.mxu0 0
        %1421 = vmatpush1.bf16.msra.mxu0 %v1274
        %1422 = vmatprep.subr.bf16.mxu0 0
        %1423 = vmatpush1.bf16.msra.mxu0 %v1275
        %1424 = vmatprep.subr.bf16.mxu0 0
        %1425 = vmatpush1.bf16.msra.mxu0 %v1276
        %1426 = vmatprep.subr.bf16.mxu0 0
        %1427 = vmatpush1.bf16.msra.mxu0 %v1277
        %1428 = vmatprep.subr.bf16.mxu0 0
        %1429 = vmatpush1.bf16.msra.mxu0 %v1278
        %1430 = vmatprep.subr.bf16.mxu0 0
        %1431 = vmatpush1.bf16.msra.mxu0 %v1279
        %1432 = vmatprep.subr.bf16.mxu0 0
        %1433 = vmatpush1.bf16.msra.mxu0 %v1280
        %1434 = vmatprep.subr.bf16.mxu0 0
        %1435 = vmatpush1.bf16.msra.mxu0 %v1281
        %1436 = vmatprep.subr.bf16.mxu0 0
        %1437 = vmatpush1.bf16.msra.mxu0 %v1282
        %1438 = vmatprep.subr.bf16.mxu0 0
        %1439 = vmatpush1.bf16.msra.mxu0 %v1283
        %1440 = vmatprep.subr.bf16.mxu0 0
        %1441 = vmatpush1.bf16.msra.mxu0 %v1284
        %1442 = vmatprep.subr.bf16.mxu0 0
        %1443 = vmatpush1.bf16.msra.mxu0 %v1285
        %1444 = vmatprep.subr.bf16.mxu0 0
        %1445 = vmatpush1.bf16.msra.mxu0 %v1286
        %1446 = vmatprep.subr.bf16.mxu0 0
        %1447 = vmatpush1.bf16.msra.mxu0 %v1287
        %1448 = vmatprep.mubr.bf16.mxu0 %v1041
        %1449 = vmatmul.mubr.bf16.gmra.mrb[0].mxu0 %v1040
        %v1450 = vpop.f32.mrb[0].mxu0
        %v1451 = vadd.f32 %v1411, %v1450
        %v1452 = vpop.f32.mrb[0].mxu0
        %v1453 = vpop.f32.mrb[0].mxu0
        %v1454 = vpop.f32.mrb[0].mxu0
        %1455 = vdwg.mxu0
        %v1456 = vpack.c.bf16 %v1451, %v1451
        %v1457 = vld [vmem:[%s5] sm:$0xf]
        %v1458 = vld [vmem:[%s5 + $0x4] sm:$0xf]
        %v1459 = vld [vmem:[%s5 + $0x8] sm:$0xf]
        %v1460 = vld [vmem:[%s5 + $0xc] sm:$0xf]
        %v1461 = vld [vmem:[%s5 + $0x10] sm:$0xf]
        %v1462 = vld [vmem:[%s5 + $0x14] sm:$0xf]
        %v1463 = vld [vmem:[%s5 + $0x18] sm:$0xf]
        %v1464 = vld [vmem:[%s5 + $0x1c] sm:$0xf]
        %v1465 = vld [vmem:[%s5 + $0x20] sm:$0xf]
        %v1466 = vld [vmem:[%s5 + $0x24] sm:$0xf]
        %v1467 = vld [vmem:[%s5 + $0x28] sm:$0xf]
        %v1468 = vld [vmem:[%s5 + $0x2c] sm:$0xf]
        %v1469 = vld [vmem:[%s6] sm:$0x1]
        %v1471 = vlaneseq
        %v1472 = vshrl.u32 %v1471, 7
        %v1473 = vsub.s32 0, %v1472
        %v1474 = vrot.slane %v1469, %v1473
        %v1488 = vunpack.c.l.b16 %v1457
        %v1489 = vunpack.c.l.b16 %v1458
        %v1490 = vunpack.c.l.b16 %v1459
        %v1491 = vunpack.c.l.b16 %v1460
        %v1492 = vunpack.c.l.b16 %v1461
        %v1493 = vunpack.c.l.b16 %v1462
        %v1494 = vunpack.c.l.b16 %v1463
        %v1495 = vunpack.c.l.b16 %v1464
        %v1496 = vunpack.c.l.b16 %v1465
        %v1497 = vunpack.c.l.b16 %v1466
        %v1498 = vunpack.c.l.b16 %v1467
        %v1499 = vunpack.c.l.b16 %v1468
        %v1500 = vpack.c.b16 %v1489, %v1488
        %v1501 = vpack.c.b16 %v1491, %v1490
        %v1502 = vpack.c.b16 %v1493, %v1492
        %v1503 = vpack.c.b16 %v1495, %v1494
        %v1504 = vpack.c.b16 %v1497, %v1496
        %v1505 = vpack.c.b16 %v1499, %v1498
        %vm1512 = vcmask 785408
        %v1514 = vsel %vm1512, %v1456, 0
        %1516 = vmatprep.subr.bf16.mxu0 0
        %1517 = vmatpush1.bf16.msra.mxu0 %v1500
        %1518 = vmatprep.subr.bf16.mxu0 0
        %1519 = vmatpush1.bf16.msra.mxu0 %v1501
        %1520 = vmatprep.subr.bf16.mxu0 0
        %1521 = vmatpush1.bf16.msra.mxu0 %v1502
        %1522 = vmatprep.subr.bf16.mxu0 0
        %1523 = vmatpush1.bf16.msra.mxu0 %v1503
        %1524 = vmatprep.subr.bf16.mxu0 0
        %1525 = vmatpush1.bf16.msra.mxu0 %v1504
        %1526 = vmatprep.subr.bf16.mxu0 0
        %1527 = vmatpush1.bf16.msra.mxu0 %v1505
        %1528 = vmatprep.subr.bf16.mxu0 0
        %1529 = vmatpush1.bf16.msra.mxu0 0
        %1530 = vmatprep.subr.bf16.mxu0 0
        %1531 = vmatpush1.bf16.msra.mxu0 0
        %1532 = vmatprep.subr.bf16.mxu0 0
        %1533 = vmatpush1.bf16.msra.mxu0 0
        %1534 = vmatprep.subr.bf16.mxu0 0
        %1535 = vmatpush1.bf16.msra.mxu0 0
        %1536 = vmatprep.subr.bf16.mxu0 0
        %1537 = vmatpush1.bf16.msra.mxu0 0
        %1538 = vmatprep.subr.bf16.mxu0 0
        %1539 = vmatpush1.bf16.msra.mxu0 0
        %1540 = vmatprep.subr.bf16.mxu0 0
        %1541 = vmatpush1.bf16.msra.mxu0 0
        %1542 = vmatprep.subr.bf16.mxu0 0
        %1543 = vmatpush1.bf16.msra.mxu0 0
        %1544 = vmatprep.subr.bf16.mxu0 0
        %1545 = vmatpush1.bf16.msra.mxu0 0
        %1546 = vmatprep.subr.bf16.mxu0 0
        %1547 = vmatpush1.bf16.msra.mxu0 0
        %1548 = vmatprep.mubr.bf16.mxu0 0
        %1549 = vmatmul.mubr.bf16.gmra.mrb[0].mxu0 %v1514
        %v1550 = vpop.f32.mrb[0].mxu0
        %v1551 = vadd.f32 %v1474, %v1550
        %v1552 = vpop.f32.mrb[0].mxu0
        %v1553 = vpop.f32.mrb[0].mxu0
        %v1554 = vpop.f32.mrb[0].mxu0
        %1555 = vdwg.mxu0
        %vm1556 = vcmask 261120
        %1557 = vst.msk [vmem:[#allocation2] sm:$0xff] %vm1556, %v1551
      $region108: #{_lambda_.2} parent=103 // pred_fallthru
        _
      %v1558 = vld [vmem:[%s872] sm:$0xf]
      %v1559 = vld [vmem:[%s872 + $0x4] sm:$0xf]
      %v1560 = vld [vmem:[%s872 + $0x8] sm:$0xf]
      %v1561 = vld [vmem:[%s872 + $0xc] sm:$0xf]
      %v1562 = vld [vmem:[%s875] sm:$0x1]
      %v1563 = vld [vmem:[%s880] sm:$0xf]
      %v1564 = vld [vmem:[%s880 + $0x4] sm:$0xf]
      %v1565 = vld [vmem:[%s880 + $0x8] sm:$0xf]
      %v1566 = vld [vmem:[%s880 + $0xc] sm:$0xf]
      %v1567 = vld [vmem:[%s883] sm:$0x1]
      %v1568 = vld [vmem:[%s886] sm:$0x1]
      %v1569 = vld [vmem:[%s889] sm:$0x1]
      %v1570 = vld [vmem:[%s894] sm:$0xf]
      %v1571 = vld [vmem:[%s894 + $0x4] sm:$0xf]
      %v1572 = vld [vmem:[%s894 + $0x8] sm:$0xf]
      %v1573 = vld [vmem:[%s894 + $0xc] sm:$0xf]
      %v1574 = vld [vmem:[%s897] sm:$0x1]
      %v1575 = vld [vmem:[%s902] sm:$0xf]
      %v1576 = vld [vmem:[%s902 + $0x4] sm:$0xf]
      %v1577 = vld [vmem:[%s902 + $0x8] sm:$0xf]
      %v1578 = vld [vmem:[%s902 + $0xc] sm:$0xf]
      %v1579 = vld [vmem:[%s902 + $0x10] sm:$0xf]
      %v1580 = vld [vmem:[%s902 + $0x14] sm:$0xf]
      %v1581 = vld [vmem:[%s902 + $0x18] sm:$0xf]
      %v1582 = vld [vmem:[%s902 + $0x1c] sm:$0xf]
      %v1583 = vld [vmem:[%s905] sm:$0x1]
      %v1584 = vld [vmem:[%s908] sm:$0x1]
      %v1585 = vld [vmem:[%s911] sm:$0x1]
      %v1586 = vld [vmem:[#allocation2] sm:$0xff]
      %v1587 = vld [vmem:[%s862] sm:$0xf]
      %v1588 = vld [vmem:[%s862 + $0x4] sm:$0xf]
      %v1589 = vld [vmem:[%s862 + $0x8] sm:$0x3]
      %v1590 = vld [vmem:[%s867] sm:$0xf]
      %v1591 = vld [vmem:[%s867 + $0x4] sm:$0xf]
      %v1592 = vld [vmem:[%s867 + $0x8] sm:$0x3]
      %v1593 = vld [vmem:[%s2] sm:$0xff]
      %v1594 = vld [vmem:[%s2 + $0x8] sm:$0xff]
      %v1595 = vld [vmem:[%s2 + $0x10] sm:$0xf]
      %v1596 = vpack.c.bf16 %v1586, %v1586
      %v1598 = vlaneseq
      %v1599 = vshrl.u32 %v1598, 7
      %v1600 = vsub.s32 0, %v1599
      %v1601 = vrot.slane %v1562, %v1600
      %v1607 = vunpack.c.l.b16 %v1558
      %v1608 = vunpack.c.l.b16 %v1559
      %v1609 = vunpack.c.l.b16 %v1560
      %v1610 = vunpack.c.l.b16 %v1561
      %v1611 = vpack.c.b16 %v1608, %v1607
      %v1612 = vpack.c.b16 %v1610, %v1609
      %vm1615 = vcmask 261120
      %v1617 = vsel %vm1615, %v1596, 0
      %1619 = vmatprep.subr.bf16.mxu0 0
      %1620 = vmatpush1.bf16.msra.mxu0 %v1611
      %1621 = vmatprep.subr.bf16.mxu0 0
      %1622 = vmatpush1.bf16.msra.mxu0 %v1612
      %1623 = vmatprep.subr.bf16.mxu0 0
      %1624 = vmatpush1.bf16.msra.mxu0 0
      %1625 = vmatprep.subr.bf16.mxu0 0
      %1626 = vmatpush1.bf16.msra.mxu0 0
      %1627 = vmatprep.subr.bf16.mxu0 0
      %1628 = vmatpush1.bf16.msra.mxu0 0
      %1629 = vmatprep.subr.bf16.mxu0 0
      %1630 = vmatpush1.bf16.msra.mxu0 0
      %1631 = vmatprep.subr.bf16.mxu0 0
      %1632 = vmatpush1.bf16.msra.mxu0 0
      %1633 = vmatprep.subr.bf16.mxu0 0
      %1634 = vmatpush1.bf16.msra.mxu0 0
      %1635 = vmatprep.subr.bf16.mxu0 0
      %1636 = vmatpush1.bf16.msra.mxu0 0
      %1637 = vmatprep.subr.bf16.mxu0 0
      %1638 = vmatpush1.bf16.msra.mxu0 0
      %1639 = vmatprep.subr.bf16.mxu0 0
      %1640 = vmatpush1.bf16.msra.mxu0 0
      %1641 = vmatprep.subr.bf16.mxu0 0
      %1642 = vmatpush1.bf16.msra.mxu0 0
      %1643 = vmatprep.subr.bf16.mxu0 0
      %1644 = vmatpush1.bf16.msra.mxu0 0
      %1645 = vmatprep.subr.bf16.mxu0 0
      %1646 = vmatpush1.bf16.msra.mxu0 0
      %1647 = vmatprep.subr.bf16.mxu0 0
      %1648 = vmatpush1.bf16.msra.mxu0 0
      %1649 = vmatprep.subr.bf16.mxu0 0
      %1650 = vmatpush1.bf16.msra.mxu0 0
      %1651 = vmatprep.mubr.bf16.mxu0 0
      %1652 = vmatmul.mubr.bf16.gmra.mrb[0].mxu0 %v1617
      %v1653 = vpop.f32.mrb[0].mxu0
      %v1654 = vadd.f32 %v1601, %v1653
      %v1655 = vpop.f32.mrb[0].mxu0
      %v1656 = vpop.f32.mrb[0].mxu0
      %v1657 = vpop.f32.mrb[0].mxu0
      %1658 = vdwg.mxu0
      %v1659 = vpack.c.bf16 %v1654, %v1654
      %v1663 = vunpack.c.l.b16 %v1587
      %v1664 = vunpack.c.l.b16 %v1588
      %v1665 = vunpack.c.l.b16 %v1589
      %v1666 = vpack.c.b16 %v1664, %v1663
      %v1667 = vpack.c.b16 %v1665, %v1665
      %v1669 = vsel %vm1615, %v1659, 0
      %v1672 = vsel %vm1615, %v1666, 0
      %v1675 = vsel %vm1615, %v1667, 0
      %1677 = vmatprep.subr.bf16.mxu0 0
      %1678 = vmatpush1.bf16.xpose.msra.mxu0 %v1672
      %1679 = vmatprep.subr.bf16.mxu0 0
      %1680 = vmatpush1.bf16.xpose.msra.mxu0 %v1675
      %1681 = vmatprep.subr.bf16.mxu0 0
      %1682 = vmatpush1.bf16.xpose.msra.mxu0 0
      %1683 = vmatprep.subr.bf16.mxu0 0
      %1684 = vmatpush1.bf16.xpose.msra.mxu0 0
      %1685 = vmatprep.subr.bf16.mxu0 0
      %1686 = vmatpush1.bf16.xpose.msra.mxu0 0
      %1687 = vmatprep.subr.bf16.mxu0 0
      %1688 = vmatpush1.bf16.xpose.msra.mxu0 0
      %1689 = vmatprep.subr.bf16.mxu0 0
      %1690 = vmatpush1.bf16.xpose.msra.mxu0 0
      %1691 = vmatprep.subr.bf16.mxu0 0
      %1692 = vmatpush1.bf16.xpose.msra.mxu0 0
      %1693 = vmatprep.subr.bf16.mxu0 0
      %1694 = vmatpush1.bf16.xpose.msra.mxu0 0
      %1695 = vmatprep.subr.bf16.mxu0 0
      %1696 = vmatpush1.bf16.xpose.msra.mxu0 0
      %1697 = vmatprep.subr.bf16.mxu0 0
      %1698 = vmatpush1.bf16.xpose.msra.mxu0 0
      %1699 = vmatprep.subr.bf16.mxu0 0
      %1700 = vmatpush1.bf16.xpose.msra.mxu0 0
      %1701 = vmatprep.subr.bf16.mxu0 0
      %1702 = vmatpush1.bf16.xpose.msra.mxu0 0
      %1703 = vmatprep.subr.bf16.mxu0 0
      %1704 = vmatpush1.bf16.xpose.msra.mxu0 0
      %1705 = vmatprep.subr.bf16.mxu0 0
      %1706 = vmatpush1.bf16.xpose.msra.mxu0 0
      %1707 = vmatprep.subr.bf16.mxu0 0
      %1708 = vmatpush1.bf16.xpose.msra.mxu0 0
      %1709 = vmatprep.mubr.bf16.mxu0 0
      %1710 = vmatmul.mubr.bf16.gmra.mrb[0].mxu0 %v1669
      %v1711 = vpop.f32.mrb[0].mxu0
      %v1712 = vadd.f32 0.0, %v1711
      %v1713 = vpop.f32.mrb[0].mxu0
      %v1714 = vpop.f32.mrb[0].mxu0
      %v1715 = vpop.f32.mrb[0].mxu0
      %1716 = vdwg.mxu0
      %v1717 = vmul.f32 %v1712, 0.35355338
      %vm1718 = vcmask 162816
      %v1719 = vsel %vm1718, %v1717, -inf
      %1720 = vmax.xlane.f32.xlu0 %v1719
      %v1721 = vpop.xlane.xlu0 %1720
      %v1722 = vsub.f32 %v1717, %v1721
      %v1723 = vmul.f32 %v1722, 1.442695
      %v1724 = vpow.pop %v1723
      %v1726 = vsel %vm1718, %v1724, 0
      %vm1728 = vcmask 1043456
      %v1730 = vsel %vm1728, %v1595, 0
      %1732 = vmatprep.subr.mxu0 0.0
      %1733 = vmatpush1.msra.mxu0 %v1593
      %1734 = vmatprep.subr.mxu0 0.0
      %1735 = vmatpush1.msra.mxu0 %v1594
      %1736 = vmatprep.subr.mxu0 0.0
      %1737 = vmatpush1.msra.mxu0 %v1730
      %1738 = vmatprep.subr.mxu0 0.0
      %1739 = vmatpush1.msra.mxu0 0.0
      %1740 = vmatprep.subr.mxu0 0.0
      %1741 = vmatpush1.msra.mxu0 0.0
      %1742 = vmatprep.subr.mxu0 0.0
      %1743 = vmatpush1.msra.mxu0 0.0
      %1744 = vmatprep.subr.mxu0 0.0
      %1745 = vmatpush1.msra.mxu0 0.0
      %1746 = vmatprep.subr.mxu0 0.0
      %1747 = vmatpush1.msra.mxu0 0.0
      %1748 = vmatprep.subr.mxu0 0.0
      %1749 = vmatpush1.msra.mxu0 0.0
      %1750 = vmatprep.subr.mxu0 0.0
      %1751 = vmatpush1.msra.mxu0 0.0
      %1752 = vmatprep.subr.mxu0 0.0
      %1753 = vmatpush1.msra.mxu0 0.0
      %1754 = vmatprep.subr.mxu0 0.0
      %1755 = vmatpush1.msra.mxu0 0.0
      %1756 = vmatprep.subr.mxu0 0.0
      %1757 = vmatpush1.msra.mxu0 0.0
      %1758 = vmatprep.subr.mxu0 0.0
      %1759 = vmatpush1.msra.mxu0 0.0
      %1760 = vmatprep.subr.mxu0 0.0
      %1761 = vmatpush1.msra.mxu0 0.0
      %1762 = vmatprep.subr.mxu0 0.0
      %1763 = vmatpush1.msra.mxu0 0.0
      %1764 = vmatprep.subr.mxu0 0.0
      %1765 = vmatpush1.msra.mxu0 0.0
      %1766 = vmatprep.subr.mxu0 0.0
      %1767 = vmatpush1.msra.mxu0 0.0
      %1768 = vmatprep.subr.mxu0 0.0
      %1769 = vmatpush1.msra.mxu0 0.0
      %1770 = vmatprep.subr.mxu0 0.0
      %1771 = vmatpush1.msra.mxu0 0.0
      %1772 = vmatprep.subr.mxu0 0.0
      %1773 = vmatpush1.msra.mxu0 0.0
      %1774 = vmatprep.subr.mxu0 0.0
      %1775 = vmatpush1.msra.mxu0 0.0
      %1776 = vmatprep.subr.mxu0 0.0
      %1777 = vmatpush1.msra.mxu0 0.0
      %1778 = vmatprep.subr.mxu0 0.0
      %1779 = vmatpush1.msra.mxu0 0.0
      %1780 = vmatprep.subr.mxu0 0.0
      %1781 = vmatpush1.msra.mxu0 0.0
      %1782 = vmatprep.subr.mxu0 0.0
      %1783 = vmatpush1.msra.mxu0 0.0
      %1784 = vmatprep.subr.mxu0 0.0
      %1785 = vmatpush1.msra.mxu0 0.0
      %1786 = vmatprep.subr.mxu0 0.0
      %1787 = vmatpush1.msra.mxu0 0.0
      %1788 = vmatprep.subr.mxu0 0.0
      %1789 = vmatpush1.msra.mxu0 0.0
      %1790 = vmatprep.subr.mxu0 0.0
      %1791 = vmatpush1.msra.mxu0 0.0
      %1792 = vmatprep.subr.mxu0 0.0
      %1793 = vmatpush1.msra.mxu0 0.0
      %1794 = vmatprep.subr.mxu0 0.0
      %1795 = vmatpush1.msra.mxu0 0.0
      %1796 = vmatprep.mubr.f32.mxu0 0.0
      %1797 = vmatmul.mubr.f32.gmra.mrb[0].mxu0 %v1726
      %v1798 = vpop.f32.mrb[0].mxu0
      %v1799 = vadd.f32 0.0, %v1798
      %v1800 = vpop.f32.mrb[0].mxu0
      %1801 = vdwg.mxu0
      %v1802 = vrcp.pop %v1799
      %v1803 = vmul.f32 %v1724, %v1802
      %v1804 = vpack.c.bf16 %v1803, %v1803
      %v1808 = vunpack.c.l.b16 %v1590
      %v1809 = vunpack.c.l.b16 %v1591
      %v1810 = vunpack.c.l.b16 %v1592
      %v1811 = vpack.c.b16 %v1809, %v1808
      %v1812 = vpack.c.b16 %v1810, %v1810
      %v1815 = vsel %vm1718, %v1804, 0
      %vm1817 = vcmask 1041408
      %v1819 = vsel %vm1817, %v1812, 0
      %1821 = vmatprep.subr.bf16.mxu0 0
      %1822 = vmatpush1.bf16.msra.mxu0 %v1811
      %1823 = vmatprep.subr.bf16.mxu0 0
      %1824 = vmatpush1.bf16.msra.mxu0 %v1819
      %1825 = vmatprep.subr.bf16.mxu0 0
      %1826 = vmatpush1.bf16.msra.mxu0 0
      %1827 = vmatprep.subr.bf16.mxu0 0
      %1828 = vmatpush1.bf16.msra.mxu0 0
      %1829 = vmatprep.subr.bf16.mxu0 0
      %1830 = vmatpush1.bf16.msra.mxu0 0
      %1831 = vmatprep.subr.bf16.mxu0 0
      %1832 = vmatpush1.bf16.msra.mxu0 0
      %1833 = vmatprep.subr.bf16.mxu0 0
      %1834 = vmatpush1.bf16.msra.mxu0 0
      %1835 = vmatprep.subr.bf16.mxu0 0
      %1836 = vmatpush1.bf16.msra.mxu0 0
      %1837 = vmatprep.subr.bf16.mxu0 0
      %1838 = vmatpush1.bf16.msra.mxu0 0
      %1839 = vmatprep.subr.bf16.mxu0 0
      %1840 = vmatpush1.bf16.msra.mxu0 0
      %1841 = vmatprep.subr.bf16.mxu0 0
      %1842 = vmatpush1.bf16.msra.mxu0 0
      %1843 = vmatprep.subr.bf16.mxu0 0
      %1844 = vmatpush1.bf16.msra.mxu0 0
      %1845 = vmatprep.subr.bf16.mxu0 0
      %1846 = vmatpush1.bf16.msra.mxu0 0
      %1847 = vmatprep.subr.bf16.mxu0 0
      %1848 = vmatpush1.bf16.msra.mxu0 0
      %1849 = vmatprep.subr.bf16.mxu0 0
      %1850 = vmatpush1.bf16.msra.mxu0 0
      %1851 = vmatprep.subr.bf16.mxu0 0
      %1852 = vmatpush1.bf16.msra.mxu0 0
      %1853 = vmatprep.mubr.bf16.mxu0 0
      %1854 = vmatmul.mubr.bf16.gmra.mrb[0].mxu0 %v1815
      %v1855 = vpop.f32.mrb[0].mxu0
      %v1856 = vadd.f32 0.0, %v1855
      %v1857 = vpop.f32.mrb[0].mxu0
      %v1858 = vpop.f32.mrb[0].mxu0
      %v1859 = vpop.f32.mrb[0].mxu0
      %1860 = vdwg.mxu0
      %v1861 = vpack.c.bf16 %v1856, %v1856
      %v1863 = vlaneseq
      %v1864 = vshrl.u32 %v1863, 7
      %v1865 = vsub.s32 0, %v1864
      %v1866 = vrot.slane %v1567, %v1865
      %v1872 = vunpack.c.l.b16 %v1563
      %v1873 = vunpack.c.l.b16 %v1564
      %v1874 = vunpack.c.l.b16 %v1565
      %v1875 = vunpack.c.l.b16 %v1566
      %v1876 = vpack.c.b16 %v1873, %v1872
      %v1877 = vpack.c.b16 %v1875, %v1874
      %v1881 = vsel %vm1615, %v1861, 0
      %1883 = vmatprep.subr.bf16.mxu0 0
      %1884 = vmatpush1.bf16.msra.mxu0 %v1876
      %1885 = vmatprep.subr.bf16.mxu0 0
      %1886 = vmatpush1.bf16.msra.mxu0 %v1877
      %1887 = vmatprep.subr.bf16.mxu0 0
      %1888 = vmatpush1.bf16.msra.mxu0 0
      %1889 = vmatprep.subr.bf16.mxu0 0
      %1890 = vmatpush1.bf16.msra.mxu0 0
      %1891 = vmatprep.subr.bf16.mxu0 0
      %1892 = vmatpush1.bf16.msra.mxu0 0
      %1893 = vmatprep.subr.bf16.mxu0 0
      %1894 = vmatpush1.bf16.msra.mxu0 0
      %1895 = vmatprep.subr.bf16.mxu0 0
      %1896 = vmatpush1.bf16.msra.mxu0 0
      %1897 = vmatprep.subr.bf16.mxu0 0
      %1898 = vmatpush1.bf16.msra.mxu0 0
      %1899 = vmatprep.subr.bf16.mxu0 0
      %1900 = vmatpush1.bf16.msra.mxu0 0
      %1901 = vmatprep.subr.bf16.mxu0 0
      %1902 = vmatpush1.bf16.msra.mxu0 0
      %1903 = vmatprep.subr.bf16.mxu0 0
      %1904 = vmatpush1.bf16.msra.mxu0 0
      %1905 = vmatprep.subr.bf16.mxu0 0
      %1906 = vmatpush1.bf16.msra.mxu0 0
      %1907 = vmatprep.subr.bf16.mxu0 0
      %1908 = vmatpush1.bf16.msra.mxu0 0
      %1909 = vmatprep.subr.bf16.mxu0 0
      %1910 = vmatpush1.bf16.msra.mxu0 0
      %1911 = vmatprep.subr.bf16.mxu0 0
      %1912 = vmatpush1.bf16.msra.mxu0 0
      %1913 = vmatprep.subr.bf16.mxu0 0
      %1914 = vmatpush1.bf16.msra.mxu0 0
      %1915 = vmatprep.mubr.bf16.mxu0 0
      %1916 = vmatmul.mubr.bf16.gmra.mrb[0].mxu0 %v1881
      %v1917 = vpop.f32.mrb[0].mxu0
      %v1918 = vadd.f32 %v1866, %v1917
      %v1919 = vpop.f32.mrb[0].mxu0
      %v1920 = vpop.f32.mrb[0].mxu0
      %v1921 = vpop.f32.mrb[0].mxu0
      %1922 = vdwg.mxu0
      %v1923 = vadd.f32 %v1918, %v1586
      %v1924 = vsel %vm1615, %v1923, 0.0
      %1925 = vadd.xlane.f32.xlu0 %v1924
      %v1926 = vpop.xlane.xlu0 %1925
      %v1927 = vrcp.pop 32.0
      %v1928 = vmul.f32 %v1926, %v1927
      %v1929 = vsub.f32 %v1923, %v1928
      %v1930 = vmul.f32 %v1929, %v1929
      %v1931 = vsel %vm1615, %v1930, 0.0
      %1932 = vadd.xlane.f32.xlu0 %v1931
      %v1933 = vpop.xlane.xlu0 %1932
      %v1934 = vmul.f32 %v1933, %v1927
      %v1935 = vadd.f32 %v1934, 1e-05
      %v1936 = vrsqrt.pop %v1935
      %v1937 = vmul.f32 %v1929, %v1936
      %v1939 = vlaneseq
      %v1940 = vshrl.u32 %v1939, 7
      %v1941 = vsub.s32 0, %v1940
      %v1942 = vrot.slane %v1568, %v1941
      %v1944 = vmul.f32 %v1937, %v1942
      %v1946 = vlaneseq
      %v1947 = vshrl.u32 %v1946, 7
      %v1948 = vsub.s32 0, %v1947
      %v1949 = vrot.slane %v1569, %v1948
      %v1951 = vadd.f32 %v1944, %v1949
      %v1952 = vpack.c.bf16 %v1951, %v1951
      %v1954 = vlaneseq
      %v1955 = vshrl.u32 %v1954, 7
      %v1956 = vsub.s32 0, %v1955
      %v1957 = vrot.slane %v1574, %v1956
      %v1963 = vunpack.c.l.b16 %v1570
      %v1964 = vunpack.c.l.b16 %v1571
      %v1965 = vunpack.c.l.b16 %v1572
      %v1966 = vunpack.c.l.b16 %v1573
      %v1967 = vpack.c.b16 %v1964, %v1963
      %v1968 = vpack.c.b16 %v1966, %v1965
      %v1972 = vsel %vm1615, %v1952, 0
      %1974 = vmatprep.subr.bf16.mxu0 0
      %1975 = vmatpush1.bf16.msra.mxu0 %v1967
      %1976 = vmatprep.subr.bf16.mxu0 0
      %1977 = vmatpush1.bf16.msra.mxu0 %v1968
      %1978 = vmatprep.subr.bf16.mxu0 0
      %1979 = vmatpush1.bf16.msra.mxu0 0
      %1980 = vmatprep.subr.bf16.mxu0 0
      %1981 = vmatpush1.bf16.msra.mxu0 0
      %1982 = vmatprep.subr.bf16.mxu0 0
      %1983 = vmatpush1.bf16.msra.mxu0 0
      %1984 = vmatprep.subr.bf16.mxu0 0
      %1985 = vmatpush1.bf16.msra.mxu0 0
      %1986 = vmatprep.subr.bf16.mxu0 0
      %1987 = vmatpush1.bf16.msra.mxu0 0
      %1988 = vmatprep.subr.bf16.mxu0 0
      %1989 = vmatpush1.bf16.msra.mxu0 0
      %1990 = vmatprep.subr.bf16.mxu0 0
      %1991 = vmatpush1.bf16.msra.mxu0 0
      %1992 = vmatprep.subr.bf16.mxu0 0
      %1993 = vmatpush1.bf16.msra.mxu0 0
      %1994 = vmatprep.subr.bf16.mxu0 0
      %1995 = vmatpush1.bf16.msra.mxu0 0
      %1996 = vmatprep.subr.bf16.mxu0 0
      %1997 = vmatpush1.bf16.msra.mxu0 0
      %1998 = vmatprep.subr.bf16.mxu0 0
      %1999 = vmatpush1.bf16.msra.mxu0 0
      %2000 = vmatprep.subr.bf16.mxu0 0
      %2001 = vmatpush1.bf16.msra.mxu0 0
      %2002 = vmatprep.subr.bf16.mxu0 0
      %2003 = vmatpush1.bf16.msra.mxu0 0
      %2004 = vmatprep.subr.bf16.mxu0 0
      %2005 = vmatpush1.bf16.msra.mxu0 0
      %2006 = vmatprep.mubr.bf16.mxu0 0
      %2007 = vmatmul.mubr.bf16.gmra.mrb[0].mxu0 %v1972
      %v2008 = vpop.f32.mrb[0].mxu0
      %v2009 = vadd.f32 %v1957, %v2008
      %v2010 = vpop.f32.mrb[0].mxu0
      %v2011 = vpop.f32.mrb[0].mxu0
      %v2012 = vpop.f32.mrb[0].mxu0
      %2013 = vdwg.mxu0
      %v2014 = vmax.f32 %v2009, 0.0
      %v2015 = vpack.c.bf16 %v2014, %v2014
      %v2017 = vlaneseq
      %v2018 = vshrl.u32 %v2017, 7
      %v2019 = vsub.s32 0, %v2018
      %v2020 = vrot.slane %v1583, %v2019
      %v2030 = vunpack.c.l.b16 %v1575
      %v2031 = vunpack.c.l.b16 %v1576
      %v2032 = vunpack.c.l.b16 %v1577
      %v2033 = vunpack.c.l.b16 %v1578
      %v2034 = vunpack.c.l.b16 %v1579
      %v2035 = vunpack.c.l.b16 %v1580
      %v2036 = vunpack.c.l.b16 %v1581
      %v2037 = vunpack.c.l.b16 %v1582
      %v2038 = vpack.c.b16 %v2031, %v2030
      %v2039 = vpack.c.b16 %v2033, %v2032
      %v2040 = vpack.c.b16 %v2035, %v2034
      %v2041 = vpack.c.b16 %v2037, %v2036
      %vm2046 = vcmask 523264
      %v2048 = vsel %vm2046, %v2015, 0
      %2050 = vmatprep.subr.bf16.mxu0 0
      %2051 = vmatpush1.bf16.msra.mxu0 %v2038
      %2052 = vmatprep.subr.bf16.mxu0 0
      %2053 = vmatpush1.bf16.msra.mxu0 %v2039
      %2054 = vmatprep.subr.bf16.mxu0 0
      %2055 = vmatpush1.bf16.msra.mxu0 %v2040
      %2056 = vmatprep.subr.bf16.mxu0 0
      %2057 = vmatpush1.bf16.msra.mxu0 %v2041
      %2058 = vmatprep.subr.bf16.mxu0 0
      %2059 = vmatpush1.bf16.msra.mxu0 0
      %2060 = vmatprep.subr.bf16.mxu0 0
      %2061 = vmatpush1.bf16.msra.mxu0 0
      %2062 = vmatprep.subr.bf16.mxu0 0
      %2063 = vmatpush1.bf16.msra.mxu0 0
      %2064 = vmatprep.subr.bf16.mxu0 0
      %2065 = vmatpush1.bf16.msra.mxu0 0
      %2066 = vmatprep.subr.bf16.mxu0 0
      %2067 = vmatpush1.bf16.msra.mxu0 0
      %2068 = vmatprep.subr.bf16.mxu0 0
      %2069 = vmatpush1.bf16.msra.mxu0 0
      %2070 = vmatprep.subr.bf16.mxu0 0
      %2071 = vmatpush1.bf16.msra.mxu0 0
      %2072 = vmatprep.subr.bf16.mxu0 0
      %2073 = vmatpush1.bf16.msra.mxu0 0
      %2074 = vmatprep.subr.bf16.mxu0 0
      %2075 = vmatpush1.bf16.msra.mxu0 0
      %2076 = vmatprep.subr.bf16.mxu0 0
      %2077 = vmatpush1.bf16.msra.mxu0 0
      %2078 = vmatprep.subr.bf16.mxu0 0
      %2079 = vmatpush1.bf16.msra.mxu0 0
      %2080 = vmatprep.subr.bf16.mxu0 0
      %2081 = vmatpush1.bf16.msra.mxu0 0
      %2082 = vmatprep.mubr.bf16.mxu0 0
      %2083 = vmatmul.mubr.bf16.gmra.mrb[0].mxu0 %v2048
      %v2084 = vpop.f32.mrb[0].mxu0
      %v2085 = vadd.f32 %v2020, %v2084
      %v2086 = vpop.f32.mrb[0].mxu0
      %v2087 = vpop.f32.mrb[0].mxu0
      %v2088 = vpop.f32.mrb[0].mxu0
      %2089 = vdwg.mxu0
      %v2090 = vadd.f32 %v2085, %v1951
      %v2091 = vsel %vm1615, %v2090, 0.0
      %2092 = vadd.xlane.f32.xlu0 %v2091
      %v2093 = vpop.xlane.xlu0 %2092
      %v2094 = vmul.f32 %v2093, %v1927
      %v2095 = vsub.f32 %v2090, %v2094
      %v2096 = vmul.f32 %v2095, %v2095
      %v2097 = vsel %vm1615, %v2096, 0.0
      %2098 = vadd.xlane.f32.xlu0 %v2097
      %v2099 = vpop.xlane.xlu0 %2098
      %v2100 = vmul.f32 %v2099, %v1927
      %v2101 = vadd.f32 %v2100, 1e-05
      %v2102 = vrsqrt.pop %v2101
      %v2103 = vmul.f32 %v2095, %v2102
      %v2105 = vlaneseq
      %v2106 = vshrl.u32 %v2105, 7
      %v2107 = vsub.s32 0, %v2106
      %v2108 = vrot.slane %v1584, %v2107
      %v2110 = vmul.f32 %v2103, %v2108
      %v2112 = vlaneseq
      %v2113 = vshrl.u32 %v2112, 7
      %v2114 = vsub.s32 0, %v2113
      %v2115 = vrot.slane %v1585, %v2114
      %v2117 = vadd.f32 %v2110, %v2115
      %2118 = vst.msk [vmem:[#allocation2] sm:$0xff] %vm1615, %v2117
      %p2119 = scmp.eq.s32.totalorder %s37, 1
      // Predicated region
      $region109: #{_lambda_.2} parent=103 // pred_check
        %p2120 = pneg %p2119
      $region110: #{_lambda_.2} parent=103 // pred_check_branch
        %2122 = sbr.rel (%p2120) target = $region112
      $region111: #{_lambda_.2} parent=103 // pred_region
        %v2123 = vld [vmem:[%s857] sm:$0xff]
        %v2124 = vadd.f32 %v2117, %v2123
        %2125 = vst.msk [vmem:[%s915] sm:$0xff] %vm1615, %v2124
      $region112: #{_lambda_.2} parent=103 // pred_fallthru
        _
      %p2126 = scmp.lt.s32.totalorder %s36, 0
      %s2127 = scalar_select %p2126, %s36, 0
      %s2128 = smul.addr %s2127, 8
      %s2129 = scalar_lea.vmem %s21, %s2128
      // Predicated region
      $region113: #{_lambda_.2} parent=103 // pred_check
        %p2130 = pneg %p583
      $region114: #{_lambda_.2} parent=103 // pred_check_branch
        %2132 = sbr.rel (%p2130) target = $region116
      $region115: #{_lambda_.2} parent=103 // pred_region
        _
      $region116: #{_lambda_.2} parent=103 // pred_fallthru
        _
      // Predicated region
      $region117: #{_lambda_.2} parent=103 // pred_check
        %p2133 = pneg %p583
      $region118: #{_lambda_.2} parent=103 // pred_check_branch
        %2135 = sbr.rel (%p2133) target = $region120
      $region119: #{_lambda_.2} parent=103 // pred_region
        %p2136 = scmp.lt.s32.totalorder %s36, 0
        %s2137 = scalar_select %p2136, %s36, 0
        %s2138 = smul.addr %s2137, 8
        %s2139 = scalar_lea.vmem %s21, %s2138
      $region120: #{_lambda_.2} parent=103 // pred_fallthru
        _
    $region104: #{_lambda_.2} parent=5 // pred_fallthru
      _
    %p2140 = scmp.le.s32.totalorder 2, %s27
    // Predicated region
    $region121: #{_lambda_.2} parent=5 // pred_check
      %p2141 = pneg %p2140
    $region122: #{_lambda_.2} parent=5 // pred_check_branch
      %2143 = sbr.rel (%p2141) target = $region124
    $region123: #{_lambda_.2} parent=5 // pred_region
      %s2144 = ssub.s32 %s27, 2
    $region124: #{_lambda_.2} parent=5 // pred_fallthru
      _
  $region6: #{_lambda_.2} parent=0 // loop_footer
    %s31 = sadd.s32 1, %s27
  $region7: #{_lambda_.2} parent=0 // loop_footer_branch
    %26 = sbr.rel target = $region3
  $region8: #{_lambda_.2} parent=0 // loop_exit
    _

</llo_original>
